<compile_context>
chip_gen: v7x
topology: tpu7x:2x2x1
jax: 0.10.0
libtpu: 0.0.40
codegen_flags: <defaults>
</compile_context>

<pallas_src>
import functools
import math

import jax
import jax.numpy as jnp
from jax.experimental import pallas as pl
from jax.experimental.pallas import tpu as pltpu


# ----------------------------------------------------------------------------
# tiling / VMEM helpers
# ----------------------------------------------------------------------------
def _choose_tile(dim, max_tile, align):
    """Largest tile <= max_tile that divides `dim` and is a multiple of `align`
    (falls back to the full dim, which is always a legal block)."""
    if dim <= max_tile:
        return dim
    t = (min(max_tile, dim) // align) * align
    while t >= align:
        if dim % t == 0:
            return t
        t -= align
    return dim


def _vmem_capacity_bytes():
    try:
        return int(pltpu.get_tpu_info().vmem_capacity_bytes)
    except Exception:
        return 64 * 1024 * 1024        # v7x per-core physical; safe lower bound


def _vmem_limit_bytes():
    # ~75% of physical: ~96 MiB on v5e/v6e (raises the 16/32 MiB scoped
    # defaults), ~48 MiB on v7x.
    return min(int(_vmem_capacity_bytes() * 0.75), 112 * 1024 * 1024)


def _attention_tiles(S, hd, elem_bytes, has_mask, q_tile=None, kv_chunk=None):
    """Generation-aware (tq, tk) choice: keep resident K/V (double buffered),
    the (tk, tk) ones matrix, ~8 live (tq, tk) f32 temporaries, the f32
    accumulator and the optional streamed (tq, S) mask inside ~60% of this
    chip's VMEM."""
    tk = kv_chunk if kv_chunk is not None else _choose_tile(S, 512, 128)
    budget = int(_vmem_capacity_bytes() * 0.6)
    fixed = 2 * 2 * S * hd * elem_bytes + 4 * tk * tk
    per_row = 8 * 4 * tk + 4 * hd + 4 * elem_bytes * hd
    if has_mask:
        per_row += 2 * 4 * S
    cap_rows = max(8, (budget - fixed) // per_row)
    tq = q_tile if q_tile is not None else _choose_tile(S, int(min(512, cap_rows)), 8)
    if S % tq or S % tk:
        raise ValueError(f"tiles must divide seq_len: S={S} tq={tq} tk={tk}")
    if S > 1024 and max(tq, tk) > 1024:
        # (perf-review correctness concern: fail loudly instead of silently
        # falling back to (S, S)-sized blocks for awkward sequence lengths)
        raise ValueError(
            f"seq_len={S} has no TPU-friendly tile divisor; pad the sequence "
            "to a multiple of 128")
    return tq, tk


# ----------------------------------------------------------------------------
# Tiled matmul kernel (fused QKV projection and output projection)
# ----------------------------------------------------------------------------
def _matmul_kernel(x_ref, w_ref, o_ref, acc_ref):
    @pl.when(pl.program_id(2) == 0)
    def _():
        acc_ref[...] = jnp.zeros_like(acc_ref)

    acc_ref[...] += jnp.dot(x_ref[...], w_ref[...],
                            preferred_element_type=jnp.float32)

    @pl.when(pl.program_id(2) == pl.num_programs(2) - 1)
    def _():
        o_ref[...] = acc_ref[...].astype(o_ref.dtype)


def pallas_matmul(x, w, out_dtype=jnp.float32, tm=512, tn=512, tk=512):
    """(M, K) @ (K, N) -> (M, N), tiled for the MXU with an f32 accumulator."""
    M, K = x.shape
    K2, N = w.shape
    assert K == K2
    tm = _choose_tile(M, tm, 8)
    tn = _choose_tile(N, tn, 128)
    tk = _choose_tile(K, tk, 128)
    return pl.pallas_call(
        _matmul_kernel,
        out_shape=jax.ShapeDtypeStruct((M, N), out_dtype),
        grid_spec=pltpu.PrefetchScalarGridSpec(
            num_scalar_prefetch=0,
            grid=(M // tm, N // tn, K // tk),
            in_specs=[
                pl.BlockSpec((tm, tk), lambda i, j, k: (i, k)),
                pl.BlockSpec((tk, tn), lambda i, j, k: (k, j)),
            ],
            out_specs=pl.BlockSpec((tm, tn), lambda i, j, k: (i, j)),
            scratch_shapes=[pltpu.VMEM((tm, tn), jnp.float32)],
        ),
        compiler_params=pltpu.CompilerParams(
            dimension_semantics=("parallel", "parallel", "arbitrary"),
            vmem_limit_bytes=_vmem_limit_bytes()),
    )(x, w)


# ----------------------------------------------------------------------------
# CoPE + GQA attention kernel (one query tile per grid step, KV-chunked loop)
# ----------------------------------------------------------------------------
def _cope_attn_kernel(q_ref, k_ref, v_ref, pe_ref, *rest,
                      causal, has_mask, kv_chunk):
    if has_mask:
        mask_ref, o_ref = rest
    else:
        (o_ref,) = rest

    q = q_ref[...]                               # (tq, hd)  compute dtype
    tq, hd = q.shape
    S = k_ref.shape[0]
    tk = kv_chunk
    n_chunks = S // tk
    n_pos = pe_ref.shape[-1]
    qi = pl.program_id(2)
    sm_scale = 1.0 / math.sqrt(hd)

    # CoPE position-embedding logits for this query tile, computed once (f32).
    logits_int = jnp.dot(q.astype(jnp.float32), pe_ref[...].astype(jnp.float32),
                         preferred_element_type=jnp.float32)     # (tq, n_pos)

    # Lower-triangular ones (tk, tk): gates @ tri is the within-chunk reverse
    # inclusive cumsum.  It runs on the otherwise-idle MXU (the kernel is
    # VALU-bound on the CoPE interpolation), costs O(S*tk) per query row, and
    # needs no VMEM shift scratch / cross-lane shifts / VPU adds.
    r_idx = jax.lax.broadcasted_iota(jnp.int32, (tk, tk), 0)
    c_idx = jax.lax.broadcasted_iota(jnp.int32, (tk, tk), 1)
    tri = jnp.where(r_idx >= c_idx, 1.0, 0.0).astype(jnp.float32)

    if causal:
        row_g = jax.lax.broadcasted_iota(jnp.int32, (tq, tk), 0) + qi * tq
        col_l = jax.lax.broadcasted_iota(jnp.int32, (tq, tk), 1)
        # Exact skip of KV chunks fully above the diagonal: sigmoid(-1e9) == 0
        # and exp underflows, so they contribute nothing to pos / softmax / PV.
        n_active = (qi * tq + tq - 1) // tk + 1
    else:
        n_active = n_chunks

    def chunk_step(i, carry):
        m_prev, l_prev, acc_prev, gsum = carry
        c = n_active - 1 - i                     # right-to-left over KV chunks
        start = pl.multiple_of(c * tk, tk)
        k_c = k_ref[pl.ds(start, tk), :]         # (tk, hd)
        v_c = v_ref[pl.ds(start, tk), :]

        logits = jax.lax.dot_general(
            q, k_c, (((1,), (1,)), ((), ())),
            preferred_element_type=jnp.float32) * sm_scale       # (tq, tk)

        if causal:
            logits = logits + jnp.where(col_l + c * tk <= row_g, 0.0, -1e9)
        if has_mask:
            logits = logits + mask_ref[:, pl.ds(start, tk)]

        # ---- CoPE contextual position (all f32) ---------------------------
        gates = jax.nn.sigmoid(logits)
        rc = jnp.dot(gates, tri, preferred_element_type=jnp.float32)
        pos = jnp.minimum(rc + gsum, float(n_pos - 1))

        # interpolated bias: sum_p logits_int[:, p] * relu(1 - |pos - p|)
        # (== logits_ceil * w + logits_floor * (1 - w)); statically unrolled,
        # running (pos - p) is decremented instead of recomputed each step.
        a = pos
        bias = jnp.zeros_like(logits)
        for p in range(n_pos):
            bias = bias + logits_int[:, p:p + 1] * jnp.maximum(
                0.0, 1.0 - jnp.abs(a))
            a = a - 1.0
        logits = logits + bias

        # ---- online softmax + PV -------------------------------------------
        m_c = jnp.max(logits, axis=-1, keepdims=True)
        m_new = jnp.maximum(m_prev, m_c)
        alpha = jnp.exp(m_prev - m_new)
        e = jnp.exp(logits - m_new)
        l_new = l_prev * alpha + jnp.sum(e, axis=-1, keepdims=True)
        acc_new = acc_prev * alpha + jnp.dot(
            e.astype(v_c.dtype), v_c, preferred_element_type=jnp.float32)
        gsum_new = gsum + jnp.sum(gates, axis=-1, keepdims=True)
        return m_new, l_new, acc_new, gsum_new

    init = (jnp.full((tq, 1), -1e30, jnp.float32),
            jnp.zeros((tq, 1), jnp.float32),
            jnp.zeros((tq, hd), jnp.float32),
            jnp.zeros((tq, 1), jnp.float32))
    _, l_fin, acc_fin, _ = jax.lax.fori_loop(0, n_active, chunk_step, init)

    # deferred softmax normalisation on the (tq, hd) result; EUP approx recip.
    o_ref[...] = (acc_fin * pl.reciprocal(l_fin, approx=True)).astype(o_ref.dtype)


def _attention_call(kernel, args, in_specs, out_spec, out_shape, grid):
    return pl.pallas_call(
        kernel,
        out_shape=out_shape,
        grid_spec=pltpu.PrefetchScalarGridSpec(
            num_scalar_prefetch=0, grid=grid,
            in_specs=in_specs, out_specs=out_spec),
        compiler_params=pltpu.CompilerParams(
            # qi stays "arbitrary" so v7x megacore shards only B and H and the
            # per-(b, kv-head) K/V blocks are fetched once per core and stay
            # resident across all query tiles of the head group.
            dimension_semantics=("parallel", "parallel", "arbitrary"),
            vmem_limit_bytes=_vmem_limit_bytes()),
    )(*args)


def cope_gqa_attention_fused(qkv, pe, mask, *, B, S, H, n_kv, hd, n_rep,
                             causal, out_dtype, tq, tk):
    """Fast path (head_dim % 128 == 0): heads are split straight out of the
    fused (B*S, (H + 2*n_kv) * hd) projection slab by the BlockSpec index_maps
    (GQA mapping h -> h // n_rep, no K/V replication), and the output is a
    lane-dense (B*S, H*hd) slab consumed directly by the wo matmul."""
    n_pos = pe.shape[-1]
    nq_blk = S // tq

    def q_index(b, h, qi):
        return (b * nq_blk + qi, h)

    # column blocks (width hd): [0, H) = Q, [H, H+n_kv) = K, [H+n_kv, ...) = V
    # TODO(synk): on v7x consider pipeline_mode=pl.Buffered(1) for K/V (their
    # block index only changes every n_rep * (S // tq) steps) to halve VMEM.
    in_specs = [
        pl.BlockSpec((tq, hd), q_index),
        pl.BlockSpec((S, hd), lambda b, h, qi: (b, H + h // n_rep)),
        pl.BlockSpec((S, hd), lambda b, h, qi: (b, H + n_kv + h // n_rep)),
        pl.BlockSpec((None, hd, n_pos), lambda b, h, qi: (h, 0, 0)),
    ]
    args = [qkv, qkv, qkv, pe]
    if mask is not None:
        in_specs.append(pl.BlockSpec((tq, S), lambda b, h, qi: (qi, 0)))
        args.append(mask)

    kernel = functools.partial(_cope_attn_kernel, causal=causal,
                               has_mask=mask is not None, kv_chunk=tk)
    return _attention_call(
        kernel, args, in_specs,
        pl.BlockSpec((tq, hd), q_index),
        jax.ShapeDtypeStruct((B * S, H * hd), out_dtype),
        (B, H, S // tq))


def cope_gqa_attention_split(xq, xk, xv, pe, mask, *, n_rep, causal,
                             out_dtype, tq, tk):
    """Fallback path for head_dim not a multiple of 128: explicit
    (B, H, S, hd) / (B, n_kv, S, hd) layouts (K/V still un-replicated)."""
    B, H, S, hd = xq.shape
    n_pos = pe.shape[-1]

    in_specs = [
        pl.BlockSpec((None, None, tq, hd), lambda b, h, qi: (b, h, qi, 0)),
        pl.BlockSpec((None, None, S, hd), lambda b, h, qi: (b, h // n_rep, 0, 0)),
        pl.BlockSpec((None, None, S, hd), lambda b, h, qi: (b, h // n_rep, 0, 0)),
        pl.BlockSpec((None, hd, n_pos), lambda b, h, qi: (h, 0, 0)),
    ]
    args = [xq, xk, xv, pe]
    if mask is not None:
        in_specs.append(pl.BlockSpec((tq, S), lambda b, h, qi: (qi, 0)))
        args.append(mask)

    kernel = functools.partial(_cope_attn_kernel, causal=causal,
                               has_mask=mask is not None, kv_chunk=tk)
    return _attention_call(
        kernel, args, in_specs,
        pl.BlockSpec((None, None, tq, hd), lambda b, h, qi: (b, h, qi, 0)),
        jax.ShapeDtypeStruct((B, H, S, hd), out_dtype),
        (B, H, S // tq))


# ----------------------------------------------------------------------------
# Full forward pass
# ----------------------------------------------------------------------------
def prepare_params(params, compute_dtype=jnp.bfloat16):
    """One-time weight packing (perf review: do the concat / transpose /
    compute-dtype cast at setup, not on every forward call)."""
    cd = compute_dtype
    w_qkv = jnp.concatenate(
        [params["wq"].T, params["wk"].T, params["wv"].T], axis=1).astype(cd)
    return {
        "w_qkv": w_qkv,                              # (D, D + 2*kv_dim)
        "wo_t": params["wo"].T.astype(cd),           # (D, D)
        "pe": params["pe"].astype(jnp.float32),      # keep CoPE table in f32
        "compute_dtype": cd,
    }


def cope_gqa_forward(x, prepared, mask=None, *, n_q_heads, n_kv_heads,
                     n_positions, causal=False, q_tile=None, kv_chunk=None):
    B, S, D = x.shape
    assert D % n_q_heads == 0 and n_q_heads % n_kv_heads == 0
    hd = D // n_q_heads
    n_rep = n_q_heads // n_kv_heads
    kv_dim = n_kv_heads * hd
    cd = prepared["compute_dtype"]
    assert prepared["pe"].shape == (n_q_heads, hd, n_positions)

    # Fused Q/K/V projection: one tiled MXU matmul over the packed weight.
    qkv = pallas_matmul(x.reshape(B * S, D).astype(cd), prepared["w_qkv"],
                        out_dtype=cd)                  # (B*S, D + 2*kv_dim)

    mask_f32 = None if mask is None else mask.astype(jnp.float32)
    tq, tk = _attention_tiles(S, hd, jnp.dtype(cd).itemsize,
                              mask is not None, q_tile, kv_chunk)

    if hd % 128 == 0:
        # Fast path: head split / GQA mapping / output layout handled entirely
        # by BlockSpec index_maps -> no XLA transposes around the kernel.
        attn2d = cope_gqa_attention_fused(
            qkv, prepared["pe"], mask_f32, B=B, S=S, H=n_q_heads,
            n_kv=n_kv_heads, hd=hd, n_rep=n_rep, causal=causal,
            out_dtype=cd, tq=tq, tk=tk)
    else:
        # head_dim not lane-aligned: explicit split layout.
        # TODO(synk): pack two adjacent heads per block to keep lane-dense
        # stores for head_dim == 64.
        xq = qkv[:, :D].reshape(B, S, n_q_heads, hd).transpose(0, 2, 1, 3)
        xk = qkv[:, D:D + kv_dim].reshape(B, S, n_kv_heads, hd).transpose(0, 2, 1, 3)
        xv = qkv[:, D + kv_dim:].reshape(B, S, n_kv_heads, hd).transpose(0, 2, 1, 3)
        attn = cope_gqa_attention_split(
            xq, xk, xv, prepared["pe"], mask_f32, n_rep=n_rep, causal=causal,
            out_dtype=cd, tq=tq, tk=tk)
        attn2d = attn.transpose(0, 2, 1, 3).reshape(B * S, D)

    return pallas_matmul(attn2d, prepared["wo_t"],
                         out_dtype=jnp.float32).reshape(B, S, D)


# ----------------------------------------------------------------------------
# Pure-JAX reference (mirrors the PyTorch module; HIGHEST-precision matmuls)
# ----------------------------------------------------------------------------
def reference_forward(x, params, mask=None, *, n_q_heads, n_kv_heads,
                      n_positions):
    B, S, D = x.shape
    hd = D // n_q_heads
    n_rep = n_q_heads // n_kv_heads
    hp = jax.lax.Precision.HIGHEST

    xq = jnp.einsum("bsd,od->bso", x, params["wq"], precision=hp)
    xq = xq.reshape(B, S, n_q_heads, hd).transpose(0, 2, 1, 3)
    xk = jnp.einsum("bsd,od->bso", x, params["wk"],
                    precision=hp).reshape(B, S, n_kv_heads, hd)
    xv = jnp.einsum("bsd,od->bso", x, params["wv"],
                    precision=hp).reshape(B, S, n_kv_heads, hd)
    k = jnp.repeat(xk, n_rep, axis=2).transpose(0, 2, 1, 3)
    v = jnp.repeat(xv, n_rep, axis=2).transpose(0, 2, 1, 3)

    logits = jnp.einsum("bhqd,bhkd->bhqk", xq, k, precision=hp) / math.sqrt(hd)
    if mask is not None:
        logits = logits + mask

    gates = jax.nn.sigmoid(logits)
    pos = jnp.flip(jnp.cumsum(jnp.flip(gates, -1), -1), -1)
    pos = jnp.minimum(pos, float(n_positions - 1))
    pos_ceil = jnp.ceil(pos).astype(jnp.int32)
    pos_floor = jnp.floor(pos).astype(jnp.int32)
    logits_int = jnp.einsum("bhqd,hdp->bhqp", xq, params["pe"], precision=hp)
    lc = jnp.take_along_axis(logits_int, pos_ceil, axis=-1)
    lf = jnp.take_along_axis(logits_int, pos_floor, axis=-1)
    w = pos - pos_floor
    logits = logits + lc * w + lf * (1.0 - w)

    probs = jax.nn.softmax(logits, axis=-1)
    out = jnp.einsum("bhqk,bhkd->bhqd", probs, v, precision=hp)
    out = out.transpose(0, 2, 1, 3).reshape(B, S, D)
    return jnp.einsum("bsd,od->bso", out, params["wo"], precision=hp)


def init_params(key, *, input_dim, n_q_heads, n_kv_heads, n_positions):
    hd = input_dim // n_q_heads
    kv_dim = n_kv_heads * hd
    kq, kk, kv, ko, kp = jax.random.split(key, 5)
    s = 1.0 / math.sqrt(input_dim)
    return {
        # torch nn.Linear convention: weight is (out_features, in_features)
        "wq": jax.random.normal(kq, (input_dim, input_dim), jnp.float32) * s,
        "wk": jax.random.normal(kk, (kv_dim, input_dim), jnp.float32) * s,
        "wv": jax.random.normal(kv, (kv_dim, input_dim), jnp.float32) * s,
        "wo": jax.random.normal(ko, (input_dim, input_dim), jnp.float32) * s,
        # CoPE position_emb (leading 1 squeezed): (H, head_dim, n_positions)
        "pe": jax.random.normal(kp, (n_q_heads, hd, n_positions),
                                jnp.float32) * 0.02,
    }


# ----------------------------------------------------------------------------
if __name__ == "__main__":
    n_q_heads, n_kv_heads, n_positions = 4, 2, 8
    cfg = dict(n_q_heads=n_q_heads, n_kv_heads=n_kv_heads,
               n_positions=n_positions)

    key = jax.random.PRNGKey(0)
    kx, kp, km, kx2, kp2 = jax.random.split(key, 5)

    # Tolerances are sized so that matmul-precision differences (XLA/Mosaic may
    # run f32 MXU matmuls with bf16 passes at default precision) stay well
    # below them, while semantic bugs (mask / GQA mapping / CoPE pos) would be
    # O(1).  The CoPE table is amplified so its contribution dominates noise.

    # ---- main config: head_dim = 128 -> fused-slab fast path ---------------
    B, S, D = 2, 256, 512
    x = jax.random.normal(kx, (B, S, D), jnp.float32)
    params = init_params(kp, input_dim=D, **cfg)
    params["pe"] = params["pe"] * 10.0
    causal_add = jnp.where(jnp.tril(jnp.ones((S, S), jnp.float32)) == 1.0,
                           0.0, -1e9)
    ref_causal = jax.block_until_ready(
        reference_forward(x, params, causal_add, **cfg))

    # 1) f32 path, in-kernel causal mask, multi-chunk KV loop with exact skip.
    prep_f32 = prepare_params(params, jnp.float32)
    out = jax.block_until_ready(
        cope_gqa_forward(x, prep_f32, mask=None, causal=True,
                         q_tile=128, kv_chunk=128, **cfg))
    assert out.shape == (B, S, D), out.shape
    err = float(jnp.max(jnp.abs(out - ref_causal)))
    assert err < 0.15, f"f32/causal mismatch vs reference: {err}"

    # 2) arbitrary additive mask streamed as (tq, S) blocks, f32, no skip.
    rand_mask = jax.random.normal(km, (S, S), jnp.float32) * 0.5
    ref_mask = jax.block_until_ready(
        reference_forward(x, params, rand_mask, **cfg))
    out2 = jax.block_until_ready(
        cope_gqa_forward(x, prep_f32, mask=rand_mask, causal=False,
                         q_tile=128, kv_chunk=128, **cfg))
    err2 = float(jnp.max(jnp.abs(out2 - ref_mask)))
    assert err2 < 0.15, f"f32/explicit-mask mismatch vs reference: {err2}"

    # 3) performance configuration: bf16 MXU operands, f32 accumulation and
    #    f32 gates/pos/softmax.  Loose sanity gate only (f32 checks above are
    #    the correctness gates).
    prep_bf16 = prepare_params(params, jnp.bfloat16)
    out3 = jax.block_until_ready(
        cope_gqa_forward(x, prep_bf16, mask=None, causal=True, **cfg))
    err3 = float(jnp.max(jnp.abs(out3 - ref_causal)))
    assert bool(jnp.isfinite(out3).all()) and err3 < 0.75, \
        f"bf16 path sanity check failed: {err3}"

    # ---- secondary config: head_dim = 64 -> split-layout fallback ----------
    B2, S2, D2 = 2, 256, 256
    x2 = jax.random.normal(kx2, (B2, S2, D2), jnp.float32)
    params2 = init_params(kp2, input_dim=D2, **cfg)
    params2["pe"] = params2["pe"] * 10.0
    causal_add2 = jnp.where(jnp.tril(jnp.ones((S2, S2), jnp.float32)) == 1.0,
                            0.0, -1e9)
    ref2 = jax.block_until_ready(
        reference_forward(x2, params2, causal_add2, **cfg))
    out4 = jax.block_until_ready(
        cope_gqa_forward(x2, prepare_params(params2, jnp.float32), mask=None,
                         causal=True, q_tile=128, kv_chunk=128, **cfg))
    err4 = float(jnp.max(jnp.abs(out4 - ref2)))
    assert err4 < 0.15, f"f32/causal (head_dim=64 fallback) mismatch: {err4}"

    print("KERNEL_OK")
</pallas_src>

<mosaic_0001>
module attributes {stable_mosaic.version = 11 : i64} {
  func.func @_matmul_kernel(%arg0: i32, %arg1: i32, %arg2: i32, %arg3: memref<512x512xf32, #tpu.memory_space<vmem>>, %arg4: memref<512x512xf32, #tpu.memory_space<vmem>>, %arg5: memref<512x512xf32, #tpu.memory_space<vmem>>, %arg6: memref<512x512xf32, #tpu.memory_space<vmem>>) attributes {dimension_semantics = [#tpu.dimension_semantics<parallel>, #tpu.dimension_semantics<parallel>, #tpu.dimension_semantics<arbitrary>], iteration_bounds = array<i64: 1, 2, 1>, scalar_prefetch = 0 : i64, scratch_operands = 1 : i64, tpu.core_type = #tpu.core_type<tc>, window_params = [{transform_indices = @transform_0, window_bounds = array<i64: 512, 512>}, {transform_indices = @transform_1, window_bounds = array<i64: 512, 512>}, {transform_indices = @transform_2, window_bounds = array<i64: 512, 512>}]} {
    %c0_i32 = arith.constant 0 : i32
    %0 = arith.cmpi eq, %arg2, %c0_i32 : i32
    %1 = arith.extui %0 : i1 to i32
    %c0_i32_0 = arith.constant 0 : i32
    %2 = arith.cmpi ne, %1, %c0_i32_0 : i32
    scf.if %2 {
      %cst_10 = arith.constant 0.000000e+00 : f32
      %12 = vector.broadcast %cst_10 : f32 to vector<512x512xf32>
      %c0_11 = arith.constant 0 : index
      %c0_12 = arith.constant 0 : index
      %13 = vector.load %arg6[%c0_11, %c0_12] : memref<512x512xf32, #tpu.memory_space<vmem>>, vector<512x512xf32>
      tpu.vector_store %arg6[%c0_11, %c0_12], %12 {strides = array<i32>} : memref<512x512xf32, #tpu.memory_space<vmem>>, vector<512x512xf32>,
    } else {
    }
    %c0 = arith.constant 0 : index
    %c0_1 = arith.constant 0 : index
    %3 = vector.load %arg6[%c0, %c0_1] : memref<512x512xf32, #tpu.memory_space<vmem>>, vector<512x512xf32>
    %c0_2 = arith.constant 0 : index
    %c0_3 = arith.constant 0 : index
    %4 = vector.load %arg3[%c0_2, %c0_3] : memref<512x512xf32, #tpu.memory_space<vmem>>, vector<512x512xf32>
    %c0_4 = arith.constant 0 : index
    %c0_5 = arith.constant 0 : index
    %5 = vector.load %arg4[%c0_4, %c0_5] : memref<512x512xf32, #tpu.memory_space<vmem>>, vector<512x512xf32>
    %cst = arith.constant dense<0.000000e+00> : vector<512x512xf32>
    %6 = tpu.matmul %4, %5, %cst {dimension_numbers = #tpu.dot_dimension_numbers<[1], [0], [0], [1], [0, 0, 1, 1], [], []>} : vector<512x512xf32>, vector<512x512xf32>, vector<512x512xf32> -> vector<512x512xf32>
    %7 = arith.addf %3, %6 : vector<512x512xf32>
    %c0_6 = arith.constant 0 : index
    %c0_7 = arith.constant 0 : index
    %8 = vector.load %arg6[%c0_6, %c0_7] : memref<512x512xf32, #tpu.memory_space<vmem>>, vector<512x512xf32>
    tpu.vector_store %arg6[%c0_6, %c0_7], %7 {strides = array<i32>} : memref<512x512xf32, #tpu.memory_space<vmem>>, vector<512x512xf32>,
    %c0_i32_8 = arith.constant 0 : i32
    %9 = arith.cmpi eq, %arg2, %c0_i32_8 : i32
    %10 = arith.extui %9 : i1 to i32
    %c0_i32_9 = arith.constant 0 : i32
    %11 = arith.cmpi ne, %10, %c0_i32_9 : i32
    scf.if %11 {
      %c0_10 = arith.constant 0 : index
      %c0_11 = arith.constant 0 : index
      %12 = vector.load %arg6[%c0_10, %c0_11] : memref<512x512xf32, #tpu.memory_space<vmem>>, vector<512x512xf32>
      %c0_12 = arith.constant 0 : index
      %c0_13 = arith.constant 0 : index
      %13 = vector.load %arg5[%c0_12, %c0_13] : memref<512x512xf32, #tpu.memory_space<vmem>>, vector<512x512xf32>
      tpu.vector_store %arg5[%c0_12, %c0_13], %12 {strides = array<i32>} : memref<512x512xf32, #tpu.memory_space<vmem>>, vector<512x512xf32>,
    } else {
    }
    return
  }
  func.func @transform_0(%arg0: i32, %arg1: i32, %arg2: i32) -> (i32, i32) {
    %c0_i32 = arith.constant 0 : i32
    return %arg0, %arg2 : i32, i32
  }
  func.func @transform_1(%arg0: i32, %arg1: i32, %arg2: i32) -> (i32, i32) {
    %c0_i32 = arith.constant 0 : i32
    return %arg2, %arg1 : i32, i32
  }
  func.func @transform_2(%arg0: i32, %arg1: i32, %arg2: i32) -> (i32, i32) {
    %c0_i32 = arith.constant 0 : i32
    return %arg0, %arg1 : i32, i32
  }
}

</mosaic_0001>

<llo_original>
// kernel: tpu_custom_call.1
$region0: #{tpu_custom_call.1}
  #allocation0 [shape = 'u32[]', space=smem, size = 0x4, offset = 0x4, fixed_abs, tag = 'smem constant byte address 0x4 - core index']
  #allocation1 [shape = 'u32[144,128]{1,0:T(1,128)}', space=vmem, size = 0x12000, scoped, tag = 'internal scratch']
  #allocation2 [shape = 'f32[512,512]{1,0:T(8,128)}', space=vmem, size = 0x100000, scoped, tag = 'scratch operand']
  %s0 = inlined_call_operand.hbm [shape: f32[512,512], index: 0, kind: input, shape index: {}]
  %s1 = inlined_call_operand.hbm [shape: f32[512,1024], index: 1, kind: input, shape index: {}]
  %s2 = inlined_call_operand.hbm [shape: f32[512,1024], index: 2, kind: output, shape index: {}]
  %s3 = sld [smem:[#allocation0]]
  $region57: #{tpu_custom_call.1} parent=0
    _
  %s5 = ssub.s32 1, %s3
  %s6 = scalar_select 0, %s5, %s3
  $region1: #{tpu_custom_call.1} parent=0
    #allocation3 [shape = 'u8[1048576]{0}', space=vmem, size = 0x100000, scoped, tag = 'input window, operand 0, single buffered']
    #allocation4 [shape = 's32[2]{0}', space=sflag, size = 0x8, scoped, tag = 'scoped memory for tpu_custom_call.1']
    #allocation5 [shape = 's32[2]{0}', space=sflag, size = 0x8, scoped, tag = 'scoped memory for tpu_custom_call.1']
    #allocation6 [shape = 'u8[2097152]{0}', space=vmem, size = 0x200000, scoped, tag = 'input window, operand 1']
    #allocation7 [shape = 's32[2]{0}', space=sflag, size = 0x8, scoped, tag = 'scoped memory for tpu_custom_call.1']
    #allocation8 [shape = 'u8[2097152]{0}', space=vmem, size = 0x200000, scoped, tag = 'output window, operand 0']
    %7 = vsyncpa [#allocation4], 0
    %8 = vsyncpa [#allocation7], 0
    %s9 = scalar_lea.sflag [#allocation7], 1
    %10 = vsyncpa %s9, 0
    %11 = vsyncpa [#allocation5], 0
    %s12 = scalar_lea.sflag [#allocation5], 1
    %13 = vsyncpa %s12, 0
    loop: start=0, step=1, limit=4
    $region2: #{tpu_custom_call.1} parent=1 // loop_pre_header
      _
    $region3: #{tpu_custom_call.1} parent=1 // loop_header
      %s15 = sphi 0, %s19
      %p16 = scmp.ge.s32.totalorder %s15, 4
      %s22 = sphi 0, %s41
      %s23 = sphi 0, %s37
      %s24 = sphi 0, %s33
      %s25 = sphi 0, %s22
      %s26 = sphi 0, %s23
      %s27 = sphi 0, %s24
      %s28 = sphi 0, %s25
      %s29 = sphi 0, %s26
      %s30 = sphi 0, %s27
      %s46 = sphi 0, %s48
      %s49 = sphi 0, %s46
      %s50 = sphi 0, %s49
      %s66 = sphi 0, %s50
      %s74 = sphi 0, %s76
      %s77 = sphi 0, %s74
      %s78 = sphi 0, %s77
      %s94 = sphi 0, %s78
      %s102 = sphi 0, %s104
      %s105 = sphi 0, %s102
      %s106 = sphi 0, %s105
      %s122 = sphi 0, %s106
    $region4: #{tpu_custom_call.1} parent=1 // loop_header_branch
      %18 = sbr.rel (%p16) target = $region8
    $region5: #{tpu_custom_call.1} parent=1 // loop_body
      %s20 = ssub.s32 %s15, 1
      %s21 = ssub.s32 %s15, 2
      %s31 = sadd.s32 1, %s24
      %p32 = scmp.ge.s32.totalorder %s31, 1
      %s33 = scalar_select %p32, 0, %s31
      %s34 = sadd.s32 1, %s23
      %s35 = scalar_select %p32, %s34, %s23
      %p36 = scmp.ge.s32.totalorder %s35, 2
      %s37 = scalar_select %p36, 0, %s35
      %s38 = sadd.s32 1, %s22
      %s39 = scalar_select %p36, %s38, %s22
      %p40 = scmp.ge.s32.totalorder %s39, 1
      %s41 = scalar_select %p40, 0, %s39
      %s42 = ssub.s32 %s22, %s41
      %s43 = ssub.s32 %s24, %s33
      %s44 = sor.u32 %s42, %s43
      %p45 = scmp.eq.s32.totalorder %s44, 0
      %s47 = sadd.s32 %s46, 1
      %s48 = scalar_select %p45, %s46, %s47
      %p51 = pneg %p45
      %p52 = scmp.eq.s32.totalorder %s15, 1
      %p53 = por %p51, %p52
      %p54 = scmp.ne.s32.totalorder %s46, %s49
      %p55 = scmp.eq.s32.totalorder %s15, 0
      %p56 = por %p54, %p55
      %p57 = scmp.ne.s32.totalorder %s46, %s49
      %p58 = scmp.eq.s32.totalorder %s20, 1
      %p59 = por %p57, %p58
      %p60 = scmp.ne.s32.totalorder %s49, %s50
      %p61 = scmp.eq.s32.totalorder %s20, 0
      %p62 = por %p60, %p61
      %p63 = scmp.ne.s32.totalorder %s49, %s50
      %p64 = scmp.eq.s32.totalorder %s21, 1
      %p65 = por %p63, %p64
      %p67 = scmp.ne.s32.totalorder %s50, %s66
      %p68 = scmp.eq.s32.totalorder %s21, 0
      %p69 = por %p67, %p68
      %s70 = ssub.s32 %s24, %s33
      %s71 = ssub.s32 %s23, %s37
      %s72 = sor.u32 %s70, %s71
      %p73 = scmp.eq.s32.totalorder %s72, 0
      %s75 = sadd.s32 %s74, 1
      %s76 = scalar_select %p73, %s74, %s75
      %p79 = pneg %p73
      %p80 = scmp.eq.s32.totalorder %s15, 1
      %p81 = por %p79, %p80
      %p82 = scmp.ne.s32.totalorder %s74, %s77
      %p83 = scmp.eq.s32.totalorder %s15, 0
      %p84 = por %p82, %p83
      %p85 = scmp.ne.s32.totalorder %s74, %s77
      %p86 = scmp.eq.s32.totalorder %s20, 1
      %p87 = por %p85, %p86
      %p88 = scmp.ne.s32.totalorder %s77, %s78
      %p89 = scmp.eq.s32.totalorder %s20, 0
      %p90 = por %p88, %p89
      %p91 = scmp.ne.s32.totalorder %s77, %s78
      %p92 = scmp.eq.s32.totalorder %s21, 1
      %p93 = por %p91, %p92
      %p95 = scmp.ne.s32.totalorder %s78, %s94
      %p96 = scmp.eq.s32.totalorder %s21, 0
      %p97 = por %p95, %p96
      %s98 = ssub.s32 %s22, %s41
      %s99 = ssub.s32 %s23, %s37
      %s100 = sor.u32 %s98, %s99
      %p101 = scmp.eq.s32.totalorder %s100, 0
      %s103 = sadd.s32 %s102, 1
      %s104 = scalar_select %p101, %s102, %s103
      %p107 = pneg %p101
      %p108 = scmp.eq.s32.totalorder %s15, 1
      %p109 = por %p107, %p108
      %p110 = scmp.ne.s32.totalorder %s102, %s105
      %p111 = scmp.eq.s32.totalorder %s15, 0
      %p112 = por %p110, %p111
      %p113 = scmp.ne.s32.totalorder %s102, %s105
      %p114 = scmp.eq.s32.totalorder %s20, 1
      %p115 = por %p113, %p114
      %p116 = scmp.ne.s32.totalorder %s105, %s106
      %p117 = scmp.eq.s32.totalorder %s20, 0
      %p118 = por %p116, %p117
      %p119 = scmp.ne.s32.totalorder %s105, %s106
      %p120 = scmp.eq.s32.totalorder %s21, 1
      %p121 = por %p119, %p120
      %p123 = scmp.ne.s32.totalorder %s106, %s122
      %p124 = scmp.eq.s32.totalorder %s21, 0
      %p125 = por %p123, %p124
      %p126 = scmp.le.s32.totalorder 1, %s15
      %p127 = scmp.lt.s32.totalorder %s15, 3
      %p128 = pnand %p126, %p127
      %p129 = pneg %p128
      // Predicated region
      $region9: #{tpu_custom_call.1} parent=5 // pred_check
        _
      $region10: #{tpu_custom_call.1} parent=5 // pred_check_branch
        %131 = sbr.rel (%p128) target = $region12
      $region11: #{tpu_custom_call.1} parent=5 // pred_region
        %s132 = ssub.s32 %s15, 1
        // Predicated region
        $region13: #{tpu_custom_call.1} parent=11 // pred_check
          %p133 = pneg %p62
        $region14: #{tpu_custom_call.1} parent=11 // pred_check_branch
          %135 = sbr.rel (%p133) target = $region16
        $region15: #{tpu_custom_call.1} parent=11 // pred_region
          %s136 = smul.u32 64, %s25
          %s137 = smul.u32 4, %s27
          %s139 = ssub.s32 32768, 32768
          %140 = vsyncadd [#allocation4], %s139
          %s141 = smul.addr %s136, 4
          %s142 = sadd.s32 %s137, %s141
          %s143 = smul.addr %s142, 128
          %s144 = scalar_lea.hbm %s0, %s143
          %s145 = sshll.u32 [#allocation3], 4
          %s146 = int_to_ptr.vmem [resolvable:$true] %s145
          %151 = dma.hbm_to_vmem [thread:$0]  %s144, 32768, %s146, [#allocation4], 512, 512, 32
        $region16: #{tpu_custom_call.1} parent=11 // pred_fallthru
          _
      $region12: #{tpu_custom_call.1} parent=5 // pred_fallthru
        _
      %p152 = scmp.lt.s32.totalorder %s15, 2
      // Predicated region
      $region17: #{tpu_custom_call.1} parent=5 // pred_check
        %p153 = pneg %p152
      $region18: #{tpu_custom_call.1} parent=5 // pred_check_branch
        %155 = sbr.rel (%p153) target = $region20
      $region19: #{tpu_custom_call.1} parent=5 // pred_region
        // Predicated region
        $region21: #{tpu_custom_call.1} parent=19 // pred_check
          %p156 = pneg %p84
        $region22: #{tpu_custom_call.1} parent=19 // pred_check_branch
          %158 = sbr.rel (%p156) target = $region24
        $region23: #{tpu_custom_call.1} parent=19 // pred_region
          %s159 = sand.u32 %s74, 1
          %s160 = scalar_lea.sflag [#allocation7], %s159
          %s161 = sand.u32 %s74, 1
          %s162 = smul.addr %s161, 2048
          %s163 = scalar_lea.vmem [#allocation6], %s162
          %s164 = smul.u32 64, %s24
          %s165 = smul.u32 4, %s23
          %s167 = ssub.s32 32768, 32768
          %168 = vsyncadd %s160, %s167
          %s169 = smul.addr %s164, 8
          %s170 = sadd.s32 %s165, %s169
          %s171 = smul.addr %s170, 128
          %s172 = scalar_lea.hbm %s1, %s171
          %s173 = sshll.u32 %s163, 4
          %s174 = int_to_ptr.vmem [resolvable:$true] %s173
          %179 = dma.hbm_to_vmem [thread:$0]  %s172, 32768, %s174, %s160, 1024, 512, 32
        $region24: #{tpu_custom_call.1} parent=19 // pred_fallthru
          _
      $region20: #{tpu_custom_call.1} parent=5 // pred_fallthru
        _
      %p180 = scmp.le.s32.totalorder 1, %s15
      %p181 = scmp.lt.s32.totalorder %s15, 3
      %p182 = pnand %p180, %p181
      %p183 = pneg %p182
      // Predicated region
      $region25: #{tpu_custom_call.1} parent=5 // pred_check
        _
      $region26: #{tpu_custom_call.1} parent=5 // pred_check_branch
        %185 = sbr.rel (%p182) target = $region28
      $region27: #{tpu_custom_call.1} parent=5 // pred_region
        %s186 = ssub.s32 %s15, 1
        // Predicated region
        $region29: #{tpu_custom_call.1} parent=27 // pred_check
          %p187 = pneg %p62
        $region30: #{tpu_custom_call.1} parent=27 // pred_check_branch
          %189 = sbr.rel (%p187) target = $region32
        $region31: #{tpu_custom_call.1} parent=27 // pred_region
          %190 = dma.done [#allocation4], 32768
        $region32: #{tpu_custom_call.1} parent=27 // pred_fallthru
          _
        %s191 = sand.u32 %s77, 1
        %s192 = scalar_lea.sflag [#allocation7], %s191
        %s193 = sand.u32 %s77, 1
        %s194 = smul.addr %s193, 2048
        %s195 = scalar_lea.vmem [#allocation6], %s194
        // Predicated region
        $region33: #{tpu_custom_call.1} parent=27 // pred_check
          %p196 = pneg %p90
        $region34: #{tpu_custom_call.1} parent=27 // pred_check_branch
          %198 = sbr.rel (%p196) target = $region36
        $region35: #{tpu_custom_call.1} parent=27 // pred_region
          %199 = dma.done %s192, 32768
        $region36: #{tpu_custom_call.1} parent=27 // pred_fallthru
          _
        %p200 = pneg %p62
        %p201 = pneg %p59
        %s202 = sand.u32 %s77, 1
        %s203 = scalar_lea.sflag [#allocation7], %s202
        %s204 = sand.u32 %s77, 1
        %s205 = smul.addr %s204, 2048
        %s206 = scalar_lea.vmem [#allocation6], %s205
        %p207 = pneg %p90
        %p208 = pneg %p87
        %p209 = pneg %p118
        %p210 = pneg %p115
        %s211 = sand.u32 %s105, 1
        %s212 = scalar_lea.sflag [#allocation5], %s211
        %s213 = sand.u32 %s105, 1
        %s214 = smul.addr %s213, 2048
        %s215 = scalar_lea.vmem [#allocation8], %s214
        %s216 = smul.u32 64, %s25
        %s217 = smul.u32 4, %s27
        %s218 = smul.u32 64, %s27
        %s219 = smul.u32 4, %s26
        %s220 = smul.u32 64, %s25
        %s221 = smul.u32 4, %s26
        %p222 = scmp.eq.s32.totalorder %s27, 0
        // Predicated region
        $region37: #{tpu_custom_call.1} parent=27 // pred_check
          %p223 = pneg %p222
        $region38: #{tpu_custom_call.1} parent=27 // pred_check_branch
          %225 = sbr.rel (%p223) target = $region40
        $region39: #{tpu_custom_call.1} parent=27 // pred_region
          %226 = vst [vmem:[#allocation2] sm:$0xff] 0.0
          %227 = vst [vmem:[#allocation2 + $0x8] sm:$0xff] 0.0
          %228 = vst [vmem:[#allocation2 + $0x10] sm:$0xff] 0.0
          %229 = vst [vmem:[#allocation2 + $0x18] sm:$0xff] 0.0
          %230 = vst [vmem:[#allocation2 + $0x20] sm:$0xff] 0.0
          %231 = vst [vmem:[#allocation2 + $0x28] sm:$0xff] 0.0
          %232 = vst [vmem:[#allocation2 + $0x30] sm:$0xff] 0.0
          %233 = vst [vmem:[#allocation2 + $0x38] sm:$0xff] 0.0
          %234 = vst [vmem:[#allocation2 + $0x40] sm:$0xff] 0.0
          %235 = vst [vmem:[#allocation2 + $0x48] sm:$0xff] 0.0
          %236 = vst [vmem:[#allocation2 + $0x50] sm:$0xff] 0.0
          %237 = vst [vmem:[#allocation2 + $0x58] sm:$0xff] 0.0
          %238 = vst [vmem:[#allocation2 + $0x60] sm:$0xff] 0.0
          %239 = vst [vmem:[#allocation2 + $0x68] sm:$0xff] 0.0
          %240 = vst [vmem:[#allocation2 + $0x70] sm:$0xff] 0.0
          %241 = vst [vmem:[#allocation2 + $0x78] sm:$0xff] 0.0
          %242 = vst [vmem:[#allocation2 + $0x80] sm:$0xff] 0.0
          %243 = vst [vmem:[#allocation2 + $0x88] sm:$0xff] 0.0
          %244 = vst [vmem:[#allocation2 + $0x90] sm:$0xff] 0.0
          %245 = vst [vmem:[#allocation2 + $0x98] sm:$0xff] 0.0
          %246 = vst [vmem:[#allocation2 + $0xa0] sm:$0xff] 0.0
          %247 = vst [vmem:[#allocation2 + $0xa8] sm:$0xff] 0.0
          %248 = vst [vmem:[#allocation2 + $0xb0] sm:$0xff] 0.0
          %249 = vst [vmem:[#allocation2 + $0xb8] sm:$0xff] 0.0
          %250 = vst [vmem:[#allocation2 + $0xc0] sm:$0xff] 0.0
          %251 = vst [vmem:[#allocation2 + $0xc8] sm:$0xff] 0.0
          %252 = vst [vmem:[#allocation2 + $0xd0] sm:$0xff] 0.0
          %253 = vst [vmem:[#allocation2 + $0xd8] sm:$0xff] 0.0
          %254 = vst [vmem:[#allocation2 + $0xe0] sm:$0xff] 0.0
          %255 = vst [vmem:[#allocation2 + $0xe8] sm:$0xff] 0.0
          %256 = vst [vmem:[#allocation2 + $0xf0] sm:$0xff] 0.0
          %257 = vst [vmem:[#allocation2 + $0xf8] sm:$0xff] 0.0
          %258 = vst [vmem:[#allocation2 + $0x100] sm:$0xff] 0.0
          %259 = vst [vmem:[#allocation2 + $0x108] sm:$0xff] 0.0
          %260 = vst [vmem:[#allocation2 + $0x110] sm:$0xff] 0.0
          %261 = vst [vmem:[#allocation2 + $0x118] sm:$0xff] 0.0
          %262 = vst [vmem:[#allocation2 + $0x120] sm:$0xff] 0.0
          %263 = vst [vmem:[#allocation2 + $0x128] sm:$0xff] 0.0
          %264 = vst [vmem:[#allocation2 + $0x130] sm:$0xff] 0.0
          %265 = vst [vmem:[#allocation2 + $0x138] sm:$0xff] 0.0
          %266 = vst [vmem:[#allocation2 + $0x140] sm:$0xff] 0.0
          %267 = vst [vmem:[#allocation2 + $0x148] sm:$0xff] 0.0
          %268 = vst [vmem:[#allocation2 + $0x150] sm:$0xff] 0.0
          %269 = vst [vmem:[#allocation2 + $0x158] sm:$0xff] 0.0
          %270 = vst [vmem:[#allocation2 + $0x160] sm:$0xff] 0.0
          %271 = vst [vmem:[#allocation2 + $0x168] sm:$0xff] 0.0
          %272 = vst [vmem:[#allocation2 + $0x170] sm:$0xff] 0.0
          %273 = vst [vmem:[#allocation2 + $0x178] sm:$0xff] 0.0
          %274 = vst [vmem:[#allocation2 + $0x180] sm:$0xff] 0.0
          %275 = vst [vmem:[#allocation2 + $0x188] sm:$0xff] 0.0
          %276 = vst [vmem:[#allocation2 + $0x190] sm:$0xff] 0.0
          %277 = vst [vmem:[#allocation2 + $0x198] sm:$0xff] 0.0
          %278 = vst [vmem:[#allocation2 + $0x1a0] sm:$0xff] 0.0
          %279 = vst [vmem:[#allocation2 + $0x1a8] sm:$0xff] 0.0
          %280 = vst [vmem:[#allocation2 + $0x1b0] sm:$0xff] 0.0
          %281 = vst [vmem:[#allocation2 + $0x1b8] sm:$0xff] 0.0
          %282 = vst [vmem:[#allocation2 + $0x1c0] sm:$0xff] 0.0
          %283 = vst [vmem:[#allocation2 + $0x1c8] sm:$0xff] 0.0
          %284 = vst [vmem:[#allocation2 + $0x1d0] sm:$0xff] 0.0
          %285 = vst [vmem:[#allocation2 + $0x1d8] sm:$0xff] 0.0
          %286 = vst [vmem:[#allocation2 + $0x1e0] sm:$0xff] 0.0
          %287 = vst [vmem:[#allocation2 + $0x1e8] sm:$0xff] 0.0
          %288 = vst [vmem:[#allocation2 + $0x1f0] sm:$0xff] 0.0
          %289 = vst [vmem:[#allocation2 + $0x1f8] sm:$0xff] 0.0
          %290 = vst [vmem:[#allocation2 + $0x200] sm:$0xff] 0.0
          %291 = vst [vmem:[#allocation2 + $0x208] sm:$0xff] 0.0
          %292 = vst [vmem:[#allocation2 + $0x210] sm:$0xff] 0.0
          %293 = vst [vmem:[#allocation2 + $0x218] sm:$0xff] 0.0
          %294 = vst [vmem:[#allocation2 + $0x220] sm:$0xff] 0.0
          %295 = vst [vmem:[#allocation2 + $0x228] sm:$0xff] 0.0
          %296 = vst [vmem:[#allocation2 + $0x230] sm:$0xff] 0.0
          %297 = vst [vmem:[#allocation2 + $0x238] sm:$0xff] 0.0
          %298 = vst [vmem:[#allocation2 + $0x240] sm:$0xff] 0.0
          %299 = vst [vmem:[#allocation2 + $0x248] sm:$0xff] 0.0
          %300 = vst [vmem:[#allocation2 + $0x250] sm:$0xff] 0.0
          %301 = vst [vmem:[#allocation2 + $0x258] sm:$0xff] 0.0
          %302 = vst [vmem:[#allocation2 + $0x260] sm:$0xff] 0.0
          %303 = vst [vmem:[#allocation2 + $0x268] sm:$0xff] 0.0
          %304 = vst [vmem:[#allocation2 + $0x270] sm:$0xff] 0.0
          %305 = vst [vmem:[#allocation2 + $0x278] sm:$0xff] 0.0
          %306 = vst [vmem:[#allocation2 + $0x280] sm:$0xff] 0.0
          %307 = vst [vmem:[#allocation2 + $0x288] sm:$0xff] 0.0
          %308 = vst [vmem:[#allocation2 + $0x290] sm:$0xff] 0.0
          %309 = vst [vmem:[#allocation2 + $0x298] sm:$0xff] 0.0
          %310 = vst [vmem:[#allocation2 + $0x2a0] sm:$0xff] 0.0
          %311 = vst [vmem:[#allocation2 + $0x2a8] sm:$0xff] 0.0
          %312 = vst [vmem:[#allocation2 + $0x2b0] sm:$0xff] 0.0
          %313 = vst [vmem:[#allocation2 + $0x2b8] sm:$0xff] 0.0
          %314 = vst [vmem:[#allocation2 + $0x2c0] sm:$0xff] 0.0
          %315 = vst [vmem:[#allocation2 + $0x2c8] sm:$0xff] 0.0
          %316 = vst [vmem:[#allocation2 + $0x2d0] sm:$0xff] 0.0
          %317 = vst [vmem:[#allocation2 + $0x2d8] sm:$0xff] 0.0
          %318 = vst [vmem:[#allocation2 + $0x2e0] sm:$0xff] 0.0
          %319 = vst [vmem:[#allocation2 + $0x2e8] sm:$0xff] 0.0
          %320 = vst [vmem:[#allocation2 + $0x2f0] sm:$0xff] 0.0
          %321 = vst [vmem:[#allocation2 + $0x2f8] sm:$0xff] 0.0
          %322 = vst [vmem:[#allocation2 + $0x300] sm:$0xff] 0.0
          %323 = vst [vmem:[#allocation2 + $0x308] sm:$0xff] 0.0
          %324 = vst [vmem:[#allocation2 + $0x310] sm:$0xff] 0.0
          %325 = vst [vmem:[#allocation2 + $0x318] sm:$0xff] 0.0
          %326 = vst [vmem:[#allocation2 + $0x320] sm:$0xff] 0.0
          %327 = vst [vmem:[#allocation2 + $0x328] sm:$0xff] 0.0
          %328 = vst [vmem:[#allocation2 + $0x330] sm:$0xff] 0.0
          %329 = vst [vmem:[#allocation2 + $0x338] sm:$0xff] 0.0
          %330 = vst [vmem:[#allocation2 + $0x340] sm:$0xff] 0.0
          %331 = vst [vmem:[#allocation2 + $0x348] sm:$0xff] 0.0
          %332 = vst [vmem:[#allocation2 + $0x350] sm:$0xff] 0.0
          %333 = vst [vmem:[#allocation2 + $0x358] sm:$0xff] 0.0
          %334 = vst [vmem:[#allocation2 + $0x360] sm:$0xff] 0.0
          %335 = vst [vmem:[#allocation2 + $0x368] sm:$0xff] 0.0
          %336 = vst [vmem:[#allocation2 + $0x370] sm:$0xff] 0.0
          %337 = vst [vmem:[#allocation2 + $0x378] sm:$0xff] 0.0
          %338 = vst [vmem:[#allocation2 + $0x380] sm:$0xff] 0.0
          %339 = vst [vmem:[#allocation2 + $0x388] sm:$0xff] 0.0
          %340 = vst [vmem:[#allocation2 + $0x390] sm:$0xff] 0.0
          %341 = vst [vmem:[#allocation2 + $0x398] sm:$0xff] 0.0
          %342 = vst [vmem:[#allocation2 + $0x3a0] sm:$0xff] 0.0
          %343 = vst [vmem:[#allocation2 + $0x3a8] sm:$0xff] 0.0
          %344 = vst [vmem:[#allocation2 + $0x3b0] sm:$0xff] 0.0
          %345 = vst [vmem:[#allocation2 + $0x3b8] sm:$0xff] 0.0
          %346 = vst [vmem:[#allocation2 + $0x3c0] sm:$0xff] 0.0
          %347 = vst [vmem:[#allocation2 + $0x3c8] sm:$0xff] 0.0
          %348 = vst [vmem:[#allocation2 + $0x3d0] sm:$0xff] 0.0
          %349 = vst [vmem:[#allocation2 + $0x3d8] sm:$0xff] 0.0
          %350 = vst [vmem:[#allocation2 + $0x3e0] sm:$0xff] 0.0
          %351 = vst [vmem:[#allocation2 + $0x3e8] sm:$0xff] 0.0
          %352 = vst [vmem:[#allocation2 + $0x3f0] sm:$0xff] 0.0
          %353 = vst [vmem:[#allocation2 + $0x3f8] sm:$0xff] 0.0
          %354 = vst [vmem:[#allocation2 + $0x400] sm:$0xff] 0.0
          %355 = vst [vmem:[#allocation2 + $0x408] sm:$0xff] 0.0
          %356 = vst [vmem:[#allocation2 + $0x410] sm:$0xff] 0.0
          %357 = vst [vmem:[#allocation2 + $0x418] sm:$0xff] 0.0
          %358 = vst [vmem:[#allocation2 + $0x420] sm:$0xff] 0.0
          %359 = vst [vmem:[#allocation2 + $0x428] sm:$0xff] 0.0
          %360 = vst [vmem:[#allocation2 + $0x430] sm:$0xff] 0.0
          %361 = vst [vmem:[#allocation2 + $0x438] sm:$0xff] 0.0
          %362 = vst [vmem:[#allocation2 + $0x440] sm:$0xff] 0.0
          %363 = vst [vmem:[#allocation2 + $0x448] sm:$0xff] 0.0
          %364 = vst [vmem:[#allocation2 + $0x450] sm:$0xff] 0.0
          %365 = vst [vmem:[#allocation2 + $0x458] sm:$0xff] 0.0
          %366 = vst [vmem:[#allocation2 + $0x460] sm:$0xff] 0.0
          %367 = vst [vmem:[#allocation2 + $0x468] sm:$0xff] 0.0
          %368 = vst [vmem:[#allocation2 + $0x470] sm:$0xff] 0.0
          %369 = vst [vmem:[#allocation2 + $0x478] sm:$0xff] 0.0
          %370 = vst [vmem:[#allocation2 + $0x480] sm:$0xff] 0.0
          %371 = vst [vmem:[#allocation2 + $0x488] sm:$0xff] 0.0
          %372 = vst [vmem:[#allocation2 + $0x490] sm:$0xff] 0.0
          %373 = vst [vmem:[#allocation2 + $0x498] sm:$0xff] 0.0
          %374 = vst [vmem:[#allocation2 + $0x4a0] sm:$0xff] 0.0
          %375 = vst [vmem:[#allocation2 + $0x4a8] sm:$0xff] 0.0
          %376 = vst [vmem:[#allocation2 + $0x4b0] sm:$0xff] 0.0
          %377 = vst [vmem:[#allocation2 + $0x4b8] sm:$0xff] 0.0
          %378 = vst [vmem:[#allocation2 + $0x4c0] sm:$0xff] 0.0
          %379 = vst [vmem:[#allocation2 + $0x4c8] sm:$0xff] 0.0
          %380 = vst [vmem:[#allocation2 + $0x4d0] sm:$0xff] 0.0
          %381 = vst [vmem:[#allocation2 + $0x4d8] sm:$0xff] 0.0
          %382 = vst [vmem:[#allocation2 + $0x4e0] sm:$0xff] 0.0
          %383 = vst [vmem:[#allocation2 + $0x4e8] sm:$0xff] 0.0
          %384 = vst [vmem:[#allocation2 + $0x4f0] sm:$0xff] 0.0
          %385 = vst [vmem:[#allocation2 + $0x4f8] sm:$0xff] 0.0
          %386 = vst [vmem:[#allocation2 + $0x500] sm:$0xff] 0.0
          %387 = vst [vmem:[#allocation2 + $0x508] sm:$0xff] 0.0
          %388 = vst [vmem:[#allocation2 + $0x510] sm:$0xff] 0.0
          %389 = vst [vmem:[#allocation2 + $0x518] sm:$0xff] 0.0
          %390 = vst [vmem:[#allocation2 + $0x520] sm:$0xff] 0.0
          %391 = vst [vmem:[#allocation2 + $0x528] sm:$0xff] 0.0
          %392 = vst [vmem:[#allocation2 + $0x530] sm:$0xff] 0.0
          %393 = vst [vmem:[#allocation2 + $0x538] sm:$0xff] 0.0
          %394 = vst [vmem:[#allocation2 + $0x540] sm:$0xff] 0.0
          %395 = vst [vmem:[#allocation2 + $0x548] sm:$0xff] 0.0
          %396 = vst [vmem:[#allocation2 + $0x550] sm:$0xff] 0.0
          %397 = vst [vmem:[#allocation2 + $0x558] sm:$0xff] 0.0
          %398 = vst [vmem:[#allocation2 + $0x560] sm:$0xff] 0.0
          %399 = vst [vmem:[#allocation2 + $0x568] sm:$0xff] 0.0
          %400 = vst [vmem:[#allocation2 + $0x570] sm:$0xff] 0.0
          %401 = vst [vmem:[#allocation2 + $0x578] sm:$0xff] 0.0
          %402 = vst [vmem:[#allocation2 + $0x580] sm:$0xff] 0.0
          %403 = vst [vmem:[#allocation2 + $0x588] sm:$0xff] 0.0
          %404 = vst [vmem:[#allocation2 + $0x590] sm:$0xff] 0.0
          %405 = vst [vmem:[#allocation2 + $0x598] sm:$0xff] 0.0
          %406 = vst [vmem:[#allocation2 + $0x5a0] sm:$0xff] 0.0
          %407 = vst [vmem:[#allocation2 + $0x5a8] sm:$0xff] 0.0
          %408 = vst [vmem:[#allocation2 + $0x5b0] sm:$0xff] 0.0
          %409 = vst [vmem:[#allocation2 + $0x5b8] sm:$0xff] 0.0
          %410 = vst [vmem:[#allocation2 + $0x5c0] sm:$0xff] 0.0
          %411 = vst [vmem:[#allocation2 + $0x5c8] sm:$0xff] 0.0
          %412 = vst [vmem:[#allocation2 + $0x5d0] sm:$0xff] 0.0
          %413 = vst [vmem:[#allocation2 + $0x5d8] sm:$0xff] 0.0
          %414 = vst [vmem:[#allocation2 + $0x5e0] sm:$0xff] 0.0
          %415 = vst [vmem:[#allocation2 + $0x5e8] sm:$0xff] 0.0
          %416 = vst [vmem:[#allocation2 + $0x5f0] sm:$0xff] 0.0
          %417 = vst [vmem:[#allocation2 + $0x5f8] sm:$0xff] 0.0
          %418 = vst [vmem:[#allocation2 + $0x600] sm:$0xff] 0.0
          %419 = vst [vmem:[#allocation2 + $0x608] sm:$0xff] 0.0
          %420 = vst [vmem:[#allocation2 + $0x610] sm:$0xff] 0.0
          %421 = vst [vmem:[#allocation2 + $0x618] sm:$0xff] 0.0
          %422 = vst [vmem:[#allocation2 + $0x620] sm:$0xff] 0.0
          %423 = vst [vmem:[#allocation2 + $0x628] sm:$0xff] 0.0
          %424 = vst [vmem:[#allocation2 + $0x630] sm:$0xff] 0.0
          %425 = vst [vmem:[#allocation2 + $0x638] sm:$0xff] 0.0
          %426 = vst [vmem:[#allocation2 + $0x640] sm:$0xff] 0.0
          %427 = vst [vmem:[#allocation2 + $0x648] sm:$0xff] 0.0
          %428 = vst [vmem:[#allocation2 + $0x650] sm:$0xff] 0.0
          %429 = vst [vmem:[#allocation2 + $0x658] sm:$0xff] 0.0
          %430 = vst [vmem:[#allocation2 + $0x660] sm:$0xff] 0.0
          %431 = vst [vmem:[#allocation2 + $0x668] sm:$0xff] 0.0
          %432 = vst [vmem:[#allocation2 + $0x670] sm:$0xff] 0.0
          %433 = vst [vmem:[#allocation2 + $0x678] sm:$0xff] 0.0
          %434 = vst [vmem:[#allocation2 + $0x680] sm:$0xff] 0.0
          %435 = vst [vmem:[#allocation2 + $0x688] sm:$0xff] 0.0
          %436 = vst [vmem:[#allocation2 + $0x690] sm:$0xff] 0.0
          %437 = vst [vmem:[#allocation2 + $0x698] sm:$0xff] 0.0
          %438 = vst [vmem:[#allocation2 + $0x6a0] sm:$0xff] 0.0
          %439 = vst [vmem:[#allocation2 + $0x6a8] sm:$0xff] 0.0
          %440 = vst [vmem:[#allocation2 + $0x6b0] sm:$0xff] 0.0
          %441 = vst [vmem:[#allocation2 + $0x6b8] sm:$0xff] 0.0
          %442 = vst [vmem:[#allocation2 + $0x6c0] sm:$0xff] 0.0
          %443 = vst [vmem:[#allocation2 + $0x6c8] sm:$0xff] 0.0
          %444 = vst [vmem:[#allocation2 + $0x6d0] sm:$0xff] 0.0
          %445 = vst [vmem:[#allocation2 + $0x6d8] sm:$0xff] 0.0
          %446 = vst [vmem:[#allocation2 + $0x6e0] sm:$0xff] 0.0
          %447 = vst [vmem:[#allocation2 + $0x6e8] sm:$0xff] 0.0
          %448 = vst [vmem:[#allocation2 + $0x6f0] sm:$0xff] 0.0
          %449 = vst [vmem:[#allocation2 + $0x6f8] sm:$0xff] 0.0
          %450 = vst [vmem:[#allocation2 + $0x700] sm:$0xff] 0.0
          %451 = vst [vmem:[#allocation2 + $0x708] sm:$0xff] 0.0
          %452 = vst [vmem:[#allocation2 + $0x710] sm:$0xff] 0.0
          %453 = vst [vmem:[#allocation2 + $0x718] sm:$0xff] 0.0
          %454 = vst [vmem:[#allocation2 + $0x720] sm:$0xff] 0.0
          %455 = vst [vmem:[#allocation2 + $0x728] sm:$0xff] 0.0
          %456 = vst [vmem:[#allocation2 + $0x730] sm:$0xff] 0.0
          %457 = vst [vmem:[#allocation2 + $0x738] sm:$0xff] 0.0
          %458 = vst [vmem:[#allocation2 + $0x740] sm:$0xff] 0.0
          %459 = vst [vmem:[#allocation2 + $0x748] sm:$0xff] 0.0
          %460 = vst [vmem:[#allocation2 + $0x750] sm:$0xff] 0.0
          %461 = vst [vmem:[#allocation2 + $0x758] sm:$0xff] 0.0
          %462 = vst [vmem:[#allocation2 + $0x760] sm:$0xff] 0.0
          %463 = vst [vmem:[#allocation2 + $0x768] sm:$0xff] 0.0
          %464 = vst [vmem:[#allocation2 + $0x770] sm:$0xff] 0.0
          %465 = vst [vmem:[#allocation2 + $0x778] sm:$0xff] 0.0
          %466 = vst [vmem:[#allocation2 + $0x780] sm:$0xff] 0.0
          %467 = vst [vmem:[#allocation2 + $0x788] sm:$0xff] 0.0
          %468 = vst [vmem:[#allocation2 + $0x790] sm:$0xff] 0.0
          %469 = vst [vmem:[#allocation2 + $0x798] sm:$0xff] 0.0
          %470 = vst [vmem:[#allocation2 + $0x7a0] sm:$0xff] 0.0
          %471 = vst [vmem:[#allocation2 + $0x7a8] sm:$0xff] 0.0
          %472 = vst [vmem:[#allocation2 + $0x7b0] sm:$0xff] 0.0
          %473 = vst [vmem:[#allocation2 + $0x7b8] sm:$0xff] 0.0
          %474 = vst [vmem:[#allocation2 + $0x7c0] sm:$0xff] 0.0
          %475 = vst [vmem:[#allocation2 + $0x7c8] sm:$0xff] 0.0
          %476 = vst [vmem:[#allocation2 + $0x7d0] sm:$0xff] 0.0
          %477 = vst [vmem:[#allocation2 + $0x7d8] sm:$0xff] 0.0
          %478 = vst [vmem:[#allocation2 + $0x7e0] sm:$0xff] 0.0
          %479 = vst [vmem:[#allocation2 + $0x7e8] sm:$0xff] 0.0
          %480 = vst [vmem:[#allocation2 + $0x7f0] sm:$0xff] 0.0
          %481 = vst [vmem:[#allocation2 + $0x7f8] sm:$0xff] 0.0
        $region40: #{tpu_custom_call.1} parent=27 // pred_fallthru
          _
        %v482 = vld [vmem:[#allocation2] sm:$0xff]
        %v483 = vld [vmem:[#allocation2 + $0x8] sm:$0xff]
        %v484 = vld [vmem:[#allocation2 + $0x10] sm:$0xff]
        %v485 = vld [vmem:[#allocation2 + $0x18] sm:$0xff]
        %v486 = vld [vmem:[#allocation2 + $0x20] sm:$0xff]
        %v487 = vld [vmem:[#allocation2 + $0x28] sm:$0xff]
        %v488 = vld [vmem:[#allocation2 + $0x30] sm:$0xff]
        %v489 = vld [vmem:[#allocation2 + $0x38] sm:$0xff]
        %v490 = vld [vmem:[#allocation2 + $0x40] sm:$0xff]
        %v491 = vld [vmem:[#allocation2 + $0x48] sm:$0xff]
        %v492 = vld [vmem:[#allocation2 + $0x50] sm:$0xff]
        %v493 = vld [vmem:[#allocation2 + $0x58] sm:$0xff]
        %v494 = vld [vmem:[#allocation2 + $0x60] sm:$0xff]
        %v495 = vld [vmem:[#allocation2 + $0x68] sm:$0xff]
        %v496 = vld [vmem:[#allocation2 + $0x70] sm:$0xff]
        %v497 = vld [vmem:[#allocation2 + $0x78] sm:$0xff]
        %v498 = vld [vmem:[#allocation2 + $0x80] sm:$0xff]
        %v499 = vld [vmem:[#allocation2 + $0x88] sm:$0xff]
        %v500 = vld [vmem:[#allocation2 + $0x90] sm:$0xff]
        %v501 = vld [vmem:[#allocation2 + $0x98] sm:$0xff]
        %v502 = vld [vmem:[#allocation2 + $0xa0] sm:$0xff]
        %v503 = vld [vmem:[#allocation2 + $0xa8] sm:$0xff]
        %v504 = vld [vmem:[#allocation2 + $0xb0] sm:$0xff]
        %v505 = vld [vmem:[#allocation2 + $0xb8] sm:$0xff]
        %v506 = vld [vmem:[#allocation2 + $0xc0] sm:$0xff]
        %v507 = vld [vmem:[#allocation2 + $0xc8] sm:$0xff]
        %v508 = vld [vmem:[#allocation2 + $0xd0] sm:$0xff]
        %v509 = vld [vmem:[#allocation2 + $0xd8] sm:$0xff]
        %v510 = vld [vmem:[#allocation2 + $0xe0] sm:$0xff]
        %v511 = vld [vmem:[#allocation2 + $0xe8] sm:$0xff]
        %v512 = vld [vmem:[#allocation2 + $0xf0] sm:$0xff]
        %v513 = vld [vmem:[#allocation2 + $0xf8] sm:$0xff]
        %v514 = vld [vmem:[#allocation2 + $0x100] sm:$0xff]
        %v515 = vld [vmem:[#allocation2 + $0x108] sm:$0xff]
        %v516 = vld [vmem:[#allocation2 + $0x110] sm:$0xff]
        %v517 = vld [vmem:[#allocation2 + $0x118] sm:$0xff]
        %v518 = vld [vmem:[#allocation2 + $0x120] sm:$0xff]
        %v519 = vld [vmem:[#allocation2 + $0x128] sm:$0xff]
        %v520 = vld [vmem:[#allocation2 + $0x130] sm:$0xff]
        %v521 = vld [vmem:[#allocation2 + $0x138] sm:$0xff]
        %v522 = vld [vmem:[#allocation2 + $0x140] sm:$0xff]
        %v523 = vld [vmem:[#allocation2 + $0x148] sm:$0xff]
        %v524 = vld [vmem:[#allocation2 + $0x150] sm:$0xff]
        %v525 = vld [vmem:[#allocation2 + $0x158] sm:$0xff]
        %v526 = vld [vmem:[#allocation2 + $0x160] sm:$0xff]
        %v527 = vld [vmem:[#allocation2 + $0x168] sm:$0xff]
        %v528 = vld [vmem:[#allocation2 + $0x170] sm:$0xff]
        %v529 = vld [vmem:[#allocation2 + $0x178] sm:$0xff]
        %v530 = vld [vmem:[#allocation2 + $0x180] sm:$0xff]
        %v531 = vld [vmem:[#allocation2 + $0x188] sm:$0xff]
        %v532 = vld [vmem:[#allocation2 + $0x190] sm:$0xff]
        %v533 = vld [vmem:[#allocation2 + $0x198] sm:$0xff]
        %v534 = vld [vmem:[#allocation2 + $0x1a0] sm:$0xff]
        %v535 = vld [vmem:[#allocation2 + $0x1a8] sm:$0xff]
        %v536 = vld [vmem:[#allocation2 + $0x1b0] sm:$0xff]
        %v537 = vld [vmem:[#allocation2 + $0x1b8] sm:$0xff]
        %v538 = vld [vmem:[#allocation2 + $0x1c0] sm:$0xff]
        %v539 = vld [vmem:[#allocation2 + $0x1c8] sm:$0xff]
        %v540 = vld [vmem:[#allocation2 + $0x1d0] sm:$0xff]
        %v541 = vld [vmem:[#allocation2 + $0x1d8] sm:$0xff]
        %v542 = vld [vmem:[#allocation2 + $0x1e0] sm:$0xff]
        %v543 = vld [vmem:[#allocation2 + $0x1e8] sm:$0xff]
        %v544 = vld [vmem:[#allocation2 + $0x1f0] sm:$0xff]
        %v545 = vld [vmem:[#allocation2 + $0x1f8] sm:$0xff]
        %v546 = vld [vmem:[#allocation2 + $0x200] sm:$0xff]
        %v547 = vld [vmem:[#allocation2 + $0x208] sm:$0xff]
        %v548 = vld [vmem:[#allocation2 + $0x210] sm:$0xff]
        %v549 = vld [vmem:[#allocation2 + $0x218] sm:$0xff]
        %v550 = vld [vmem:[#allocation2 + $0x220] sm:$0xff]
        %v551 = vld [vmem:[#allocation2 + $0x228] sm:$0xff]
        %v552 = vld [vmem:[#allocation2 + $0x230] sm:$0xff]
        %v553 = vld [vmem:[#allocation2 + $0x238] sm:$0xff]
        %v554 = vld [vmem:[#allocation2 + $0x240] sm:$0xff]
        %v555 = vld [vmem:[#allocation2 + $0x248] sm:$0xff]
        %v556 = vld [vmem:[#allocation2 + $0x250] sm:$0xff]
        %v557 = vld [vmem:[#allocation2 + $0x258] sm:$0xff]
        %v558 = vld [vmem:[#allocation2 + $0x260] sm:$0xff]
        %v559 = vld [vmem:[#allocation2 + $0x268] sm:$0xff]
        %v560 = vld [vmem:[#allocation2 + $0x270] sm:$0xff]
        %v561 = vld [vmem:[#allocation2 + $0x278] sm:$0xff]
        %v562 = vld [vmem:[#allocation2 + $0x280] sm:$0xff]
        %v563 = vld [vmem:[#allocation2 + $0x288] sm:$0xff]
        %v564 = vld [vmem:[#allocation2 + $0x290] sm:$0xff]
        %v565 = vld [vmem:[#allocation2 + $0x298] sm:$0xff]
        %v566 = vld [vmem:[#allocation2 + $0x2a0] sm:$0xff]
        %v567 = vld [vmem:[#allocation2 + $0x2a8] sm:$0xff]
        %v568 = vld [vmem:[#allocation2 + $0x2b0] sm:$0xff]
        %v569 = vld [vmem:[#allocation2 + $0x2b8] sm:$0xff]
        %v570 = vld [vmem:[#allocation2 + $0x2c0] sm:$0xff]
        %v571 = vld [vmem:[#allocation2 + $0x2c8] sm:$0xff]
        %v572 = vld [vmem:[#allocation2 + $0x2d0] sm:$0xff]
        %v573 = vld [vmem:[#allocation2 + $0x2d8] sm:$0xff]
        %v574 = vld [vmem:[#allocation2 + $0x2e0] sm:$0xff]
        %v575 = vld [vmem:[#allocation2 + $0x2e8] sm:$0xff]
        %v576 = vld [vmem:[#allocation2 + $0x2f0] sm:$0xff]
        %v577 = vld [vmem:[#allocation2 + $0x2f8] sm:$0xff]
        %v578 = vld [vmem:[#allocation2 + $0x300] sm:$0xff]
        %v579 = vld [vmem:[#allocation2 + $0x308] sm:$0xff]
        %v580 = vld [vmem:[#allocation2 + $0x310] sm:$0xff]
        %v581 = vld [vmem:[#allocation2 + $0x318] sm:$0xff]
        %v582 = vld [vmem:[#allocation2 + $0x320] sm:$0xff]
        %v583 = vld [vmem:[#allocation2 + $0x328] sm:$0xff]
        %v584 = vld [vmem:[#allocation2 + $0x330] sm:$0xff]
        %v585 = vld [vmem:[#allocation2 + $0x338] sm:$0xff]
        %v586 = vld [vmem:[#allocation2 + $0x340] sm:$0xff]
        %v587 = vld [vmem:[#allocation2 + $0x348] sm:$0xff]
        %v588 = vld [vmem:[#allocation2 + $0x350] sm:$0xff]
        %v589 = vld [vmem:[#allocation2 + $0x358] sm:$0xff]
        %v590 = vld [vmem:[#allocation2 + $0x360] sm:$0xff]
        %v591 = vld [vmem:[#allocation2 + $0x368] sm:$0xff]
        %v592 = vld [vmem:[#allocation2 + $0x370] sm:$0xff]
        %v593 = vld [vmem:[#allocation2 + $0x378] sm:$0xff]
        %v594 = vld [vmem:[#allocation2 + $0x380] sm:$0xff]
        %v595 = vld [vmem:[#allocation2 + $0x388] sm:$0xff]
        %v596 = vld [vmem:[#allocation2 + $0x390] sm:$0xff]
        %v597 = vld [vmem:[#allocation2 + $0x398] sm:$0xff]
        %v598 = vld [vmem:[#allocation2 + $0x3a0] sm:$0xff]
        %v599 = vld [vmem:[#allocation2 + $0x3a8] sm:$0xff]
        %v600 = vld [vmem:[#allocation2 + $0x3b0] sm:$0xff]
        %v601 = vld [vmem:[#allocation2 + $0x3b8] sm:$0xff]
        %v602 = vld [vmem:[#allocation2 + $0x3c0] sm:$0xff]
        %v603 = vld [vmem:[#allocation2 + $0x3c8] sm:$0xff]
        %v604 = vld [vmem:[#allocation2 + $0x3d0] sm:$0xff]
        %v605 = vld [vmem:[#allocation2 + $0x3d8] sm:$0xff]
        %v606 = vld [vmem:[#allocation2 + $0x3e0] sm:$0xff]
        %v607 = vld [vmem:[#allocation2 + $0x3e8] sm:$0xff]
        %v608 = vld [vmem:[#allocation2 + $0x3f0] sm:$0xff]
        %v609 = vld [vmem:[#allocation2 + $0x3f8] sm:$0xff]
        %v610 = vld [vmem:[#allocation2 + $0x400] sm:$0xff]
        %v611 = vld [vmem:[#allocation2 + $0x408] sm:$0xff]
        %v612 = vld [vmem:[#allocation2 + $0x410] sm:$0xff]
        %v613 = vld [vmem:[#allocation2 + $0x418] sm:$0xff]
        %v614 = vld [vmem:[#allocation2 + $0x420] sm:$0xff]
        %v615 = vld [vmem:[#allocation2 + $0x428] sm:$0xff]
        %v616 = vld [vmem:[#allocation2 + $0x430] sm:$0xff]
        %v617 = vld [vmem:[#allocation2 + $0x438] sm:$0xff]
        %v618 = vld [vmem:[#allocation2 + $0x440] sm:$0xff]
        %v619 = vld [vmem:[#allocation2 + $0x448] sm:$0xff]
        %v620 = vld [vmem:[#allocation2 + $0x450] sm:$0xff]
        %v621 = vld [vmem:[#allocation2 + $0x458] sm:$0xff]
        %v622 = vld [vmem:[#allocation2 + $0x460] sm:$0xff]
        %v623 = vld [vmem:[#allocation2 + $0x468] sm:$0xff]
        %v624 = vld [vmem:[#allocation2 + $0x470] sm:$0xff]
        %v625 = vld [vmem:[#allocation2 + $0x478] sm:$0xff]
        %v626 = vld [vmem:[#allocation2 + $0x480] sm:$0xff]
        %v627 = vld [vmem:[#allocation2 + $0x488] sm:$0xff]
        %v628 = vld [vmem:[#allocation2 + $0x490] sm:$0xff]
        %v629 = vld [vmem:[#allocation2 + $0x498] sm:$0xff]
        %v630 = vld [vmem:[#allocation2 + $0x4a0] sm:$0xff]
        %v631 = vld [vmem:[#allocation2 + $0x4a8] sm:$0xff]
        %v632 = vld [vmem:[#allocation2 + $0x4b0] sm:$0xff]
        %v633 = vld [vmem:[#allocation2 + $0x4b8] sm:$0xff]
        %v634 = vld [vmem:[#allocation2 + $0x4c0] sm:$0xff]
        %v635 = vld [vmem:[#allocation2 + $0x4c8] sm:$0xff]
        %v636 = vld [vmem:[#allocation2 + $0x4d0] sm:$0xff]
        %v637 = vld [vmem:[#allocation2 + $0x4d8] sm:$0xff]
        %v638 = vld [vmem:[#allocation2 + $0x4e0] sm:$0xff]
        %v639 = vld [vmem:[#allocation2 + $0x4e8] sm:$0xff]
        %v640 = vld [vmem:[#allocation2 + $0x4f0] sm:$0xff]
        %v641 = vld [vmem:[#allocation2 + $0x4f8] sm:$0xff]
        %v642 = vld [vmem:[#allocation2 + $0x500] sm:$0xff]
        %v643 = vld [vmem:[#allocation2 + $0x508] sm:$0xff]
        %v644 = vld [vmem:[#allocation2 + $0x510] sm:$0xff]
        %v645 = vld [vmem:[#allocation2 + $0x518] sm:$0xff]
        %v646 = vld [vmem:[#allocation2 + $0x520] sm:$0xff]
        %v647 = vld [vmem:[#allocation2 + $0x528] sm:$0xff]
        %v648 = vld [vmem:[#allocation2 + $0x530] sm:$0xff]
        %v649 = vld [vmem:[#allocation2 + $0x538] sm:$0xff]
        %v650 = vld [vmem:[#allocation2 + $0x540] sm:$0xff]
        %v651 = vld [vmem:[#allocation2 + $0x548] sm:$0xff]
        %v652 = vld [vmem:[#allocation2 + $0x550] sm:$0xff]
        %v653 = vld [vmem:[#allocation2 + $0x558] sm:$0xff]
        %v654 = vld [vmem:[#allocation2 + $0x560] sm:$0xff]
        %v655 = vld [vmem:[#allocation2 + $0x568] sm:$0xff]
        %v656 = vld [vmem:[#allocation2 + $0x570] sm:$0xff]
        %v657 = vld [vmem:[#allocation2 + $0x578] sm:$0xff]
        %v658 = vld [vmem:[#allocation2 + $0x580] sm:$0xff]
        %v659 = vld [vmem:[#allocation2 + $0x588] sm:$0xff]
        %v660 = vld [vmem:[#allocation2 + $0x590] sm:$0xff]
        %v661 = vld [vmem:[#allocation2 + $0x598] sm:$0xff]
        %v662 = vld [vmem:[#allocation2 + $0x5a0] sm:$0xff]
        %v663 = vld [vmem:[#allocation2 + $0x5a8] sm:$0xff]
        %v664 = vld [vmem:[#allocation2 + $0x5b0] sm:$0xff]
        %v665 = vld [vmem:[#allocation2 + $0x5b8] sm:$0xff]
        %v666 = vld [vmem:[#allocation2 + $0x5c0] sm:$0xff]
        %v667 = vld [vmem:[#allocation2 + $0x5c8] sm:$0xff]
        %v668 = vld [vmem:[#allocation2 + $0x5d0] sm:$0xff]
        %v669 = vld [vmem:[#allocation2 + $0x5d8] sm:$0xff]
        %v670 = vld [vmem:[#allocation2 + $0x5e0] sm:$0xff]
        %v671 = vld [vmem:[#allocation2 + $0x5e8] sm:$0xff]
        %v672 = vld [vmem:[#allocation2 + $0x5f0] sm:$0xff]
        %v673 = vld [vmem:[#allocation2 + $0x5f8] sm:$0xff]
        %v674 = vld [vmem:[#allocation2 + $0x600] sm:$0xff]
        %v675 = vld [vmem:[#allocation2 + $0x608] sm:$0xff]
        %v676 = vld [vmem:[#allocation2 + $0x610] sm:$0xff]
        %v677 = vld [vmem:[#allocation2 + $0x618] sm:$0xff]
        %v678 = vld [vmem:[#allocation2 + $0x620] sm:$0xff]
        %v679 = vld [vmem:[#allocation2 + $0x628] sm:$0xff]
        %v680 = vld [vmem:[#allocation2 + $0x630] sm:$0xff]
        %v681 = vld [vmem:[#allocation2 + $0x638] sm:$0xff]
        %v682 = vld [vmem:[#allocation2 + $0x640] sm:$0xff]
        %v683 = vld [vmem:[#allocation2 + $0x648] sm:$0xff]
        %v684 = vld [vmem:[#allocation2 + $0x650] sm:$0xff]
        %v685 = vld [vmem:[#allocation2 + $0x658] sm:$0xff]
        %v686 = vld [vmem:[#allocation2 + $0x660] sm:$0xff]
        %v687 = vld [vmem:[#allocation2 + $0x668] sm:$0xff]
        %v688 = vld [vmem:[#allocation2 + $0x670] sm:$0xff]
        %v689 = vld [vmem:[#allocation2 + $0x678] sm:$0xff]
        %v690 = vld [vmem:[#allocation2 + $0x680] sm:$0xff]
        %v691 = vld [vmem:[#allocation2 + $0x688] sm:$0xff]
        %v692 = vld [vmem:[#allocation2 + $0x690] sm:$0xff]
        %v693 = vld [vmem:[#allocation2 + $0x698] sm:$0xff]
        %v694 = vld [vmem:[#allocation2 + $0x6a0] sm:$0xff]
        %v695 = vld [vmem:[#allocation2 + $0x6a8] sm:$0xff]
        %v696 = vld [vmem:[#allocation2 + $0x6b0] sm:$0xff]
        %v697 = vld [vmem:[#allocation2 + $0x6b8] sm:$0xff]
        %v698 = vld [vmem:[#allocation2 + $0x6c0] sm:$0xff]
        %v699 = vld [vmem:[#allocation2 + $0x6c8] sm:$0xff]
        %v700 = vld [vmem:[#allocation2 + $0x6d0] sm:$0xff]
        %v701 = vld [vmem:[#allocation2 + $0x6d8] sm:$0xff]
        %v702 = vld [vmem:[#allocation2 + $0x6e0] sm:$0xff]
        %v703 = vld [vmem:[#allocation2 + $0x6e8] sm:$0xff]
        %v704 = vld [vmem:[#allocation2 + $0x6f0] sm:$0xff]
        %v705 = vld [vmem:[#allocation2 + $0x6f8] sm:$0xff]
        %v706 = vld [vmem:[#allocation2 + $0x700] sm:$0xff]
        %v707 = vld [vmem:[#allocation2 + $0x708] sm:$0xff]
        %v708 = vld [vmem:[#allocation2 + $0x710] sm:$0xff]
        %v709 = vld [vmem:[#allocation2 + $0x718] sm:$0xff]
        %v710 = vld [vmem:[#allocation2 + $0x720] sm:$0xff]
        %v711 = vld [vmem:[#allocation2 + $0x728] sm:$0xff]
        %v712 = vld [vmem:[#allocation2 + $0x730] sm:$0xff]
        %v713 = vld [vmem:[#allocation2 + $0x738] sm:$0xff]
        %v714 = vld [vmem:[#allocation2 + $0x740] sm:$0xff]
        %v715 = vld [vmem:[#allocation2 + $0x748] sm:$0xff]
        %v716 = vld [vmem:[#allocation2 + $0x750] sm:$0xff]
        %v717 = vld [vmem:[#allocation2 + $0x758] sm:$0xff]
        %v718 = vld [vmem:[#allocation2 + $0x760] sm:$0xff]
        %v719 = vld [vmem:[#allocation2 + $0x768] sm:$0xff]
        %v720 = vld [vmem:[#allocation2 + $0x770] sm:$0xff]
        %v721 = vld [vmem:[#allocation2 + $0x778] sm:$0xff]
        %v722 = vld [vmem:[#allocation2 + $0x780] sm:$0xff]
        %v723 = vld [vmem:[#allocation2 + $0x788] sm:$0xff]
        %v724 = vld [vmem:[#allocation2 + $0x790] sm:$0xff]
        %v725 = vld [vmem:[#allocation2 + $0x798] sm:$0xff]
        %v726 = vld [vmem:[#allocation2 + $0x7a0] sm:$0xff]
        %v727 = vld [vmem:[#allocation2 + $0x7a8] sm:$0xff]
        %v728 = vld [vmem:[#allocation2 + $0x7b0] sm:$0xff]
        %v729 = vld [vmem:[#allocation2 + $0x7b8] sm:$0xff]
        %v730 = vld [vmem:[#allocation2 + $0x7c0] sm:$0xff]
        %v731 = vld [vmem:[#allocation2 + $0x7c8] sm:$0xff]
        %v732 = vld [vmem:[#allocation2 + $0x7d0] sm:$0xff]
        %v733 = vld [vmem:[#allocation2 + $0x7d8] sm:$0xff]
        %v734 = vld [vmem:[#allocation2 + $0x7e0] sm:$0xff]
        %v735 = vld [vmem:[#allocation2 + $0x7e8] sm:$0xff]
        %v736 = vld [vmem:[#allocation2 + $0x7f0] sm:$0xff]
        %v737 = vld [vmem:[#allocation2 + $0x7f8] sm:$0xff]
        %v738 = vld [vmem:[#allocation3] sm:$0xff]
        %v739 = vld [vmem:[#allocation3 + $0x8] sm:$0xff]
        %v740 = vld [vmem:[#allocation3 + $0x10] sm:$0xff]
        %v741 = vld [vmem:[#allocation3 + $0x18] sm:$0xff]
        %v742 = vld [vmem:[#allocation3 + $0x20] sm:$0xff]
        %v743 = vld [vmem:[#allocation3 + $0x28] sm:$0xff]
        %v744 = vld [vmem:[#allocation3 + $0x30] sm:$0xff]
        %v745 = vld [vmem:[#allocation3 + $0x38] sm:$0xff]
        %v746 = vld [vmem:[#allocation3 + $0x40] sm:$0xff]
        %v747 = vld [vmem:[#allocation3 + $0x48] sm:$0xff]
        %v748 = vld [vmem:[#allocation3 + $0x50] sm:$0xff]
        %v749 = vld [vmem:[#allocation3 + $0x58] sm:$0xff]
        %v750 = vld [vmem:[#allocation3 + $0x60] sm:$0xff]
        %v751 = vld [vmem:[#allocation3 + $0x68] sm:$0xff]
        %v752 = vld [vmem:[#allocation3 + $0x70] sm:$0xff]
        %v753 = vld [vmem:[#allocation3 + $0x78] sm:$0xff]
        %v754 = vld [vmem:[#allocation3 + $0x80] sm:$0xff]
        %v755 = vld [vmem:[#allocation3 + $0x88] sm:$0xff]
        %v756 = vld [vmem:[#allocation3 + $0x90] sm:$0xff]
        %v757 = vld [vmem:[#allocation3 + $0x98] sm:$0xff]
        %v758 = vld [vmem:[#allocation3 + $0xa0] sm:$0xff]
        %v759 = vld [vmem:[#allocation3 + $0xa8] sm:$0xff]
        %v760 = vld [vmem:[#allocation3 + $0xb0] sm:$0xff]
        %v761 = vld [vmem:[#allocation3 + $0xb8] sm:$0xff]
        %v762 = vld [vmem:[#allocation3 + $0xc0] sm:$0xff]
        %v763 = vld [vmem:[#allocation3 + $0xc8] sm:$0xff]
        %v764 = vld [vmem:[#allocation3 + $0xd0] sm:$0xff]
        %v765 = vld [vmem:[#allocation3 + $0xd8] sm:$0xff]
        %v766 = vld [vmem:[#allocation3 + $0xe0] sm:$0xff]
        %v767 = vld [vmem:[#allocation3 + $0xe8] sm:$0xff]
        %v768 = vld [vmem:[#allocation3 + $0xf0] sm:$0xff]
        %v769 = vld [vmem:[#allocation3 + $0xf8] sm:$0xff]
        %v770 = vld [vmem:[#allocation3 + $0x100] sm:$0xff]
        %v771 = vld [vmem:[#allocation3 + $0x108] sm:$0xff]
        %v772 = vld [vmem:[#allocation3 + $0x110] sm:$0xff]
        %v773 = vld [vmem:[#allocation3 + $0x118] sm:$0xff]
        %v774 = vld [vmem:[#allocation3 + $0x120] sm:$0xff]
        %v775 = vld [vmem:[#allocation3 + $0x128] sm:$0xff]
        %v776 = vld [vmem:[#allocation3 + $0x130] sm:$0xff]
        %v777 = vld [vmem:[#allocation3 + $0x138] sm:$0xff]
        %v778 = vld [vmem:[#allocation3 + $0x140] sm:$0xff]
        %v779 = vld [vmem:[#allocation3 + $0x148] sm:$0xff]
        %v780 = vld [vmem:[#allocation3 + $0x150] sm:$0xff]
        %v781 = vld [vmem:[#allocation3 + $0x158] sm:$0xff]
        %v782 = vld [vmem:[#allocation3 + $0x160] sm:$0xff]
        %v783 = vld [vmem:[#allocation3 + $0x168] sm:$0xff]
        %v784 = vld [vmem:[#allocation3 + $0x170] sm:$0xff]
        %v785 = vld [vmem:[#allocation3 + $0x178] sm:$0xff]
        %v786 = vld [vmem:[#allocation3 + $0x180] sm:$0xff]
        %v787 = vld [vmem:[#allocation3 + $0x188] sm:$0xff]
        %v788 = vld [vmem:[#allocation3 + $0x190] sm:$0xff]
        %v789 = vld [vmem:[#allocation3 + $0x198] sm:$0xff]
        %v790 = vld [vmem:[#allocation3 + $0x1a0] sm:$0xff]
        %v791 = vld [vmem:[#allocation3 + $0x1a8] sm:$0xff]
        %v792 = vld [vmem:[#allocation3 + $0x1b0] sm:$0xff]
        %v793 = vld [vmem:[#allocation3 + $0x1b8] sm:$0xff]
        %v794 = vld [vmem:[#allocation3 + $0x1c0] sm:$0xff]
        %v795 = vld [vmem:[#allocation3 + $0x1c8] sm:$0xff]
        %v796 = vld [vmem:[#allocation3 + $0x1d0] sm:$0xff]
        %v797 = vld [vmem:[#allocation3 + $0x1d8] sm:$0xff]
        %v798 = vld [vmem:[#allocation3 + $0x1e0] sm:$0xff]
        %v799 = vld [vmem:[#allocation3 + $0x1e8] sm:$0xff]
        %v800 = vld [vmem:[#allocation3 + $0x1f0] sm:$0xff]
        %v801 = vld [vmem:[#allocation3 + $0x1f8] sm:$0xff]
        %v802 = vld [vmem:[#allocation3 + $0x200] sm:$0xff]
        %v803 = vld [vmem:[#allocation3 + $0x208] sm:$0xff]
        %v804 = vld [vmem:[#allocation3 + $0x210] sm:$0xff]
        %v805 = vld [vmem:[#allocation3 + $0x218] sm:$0xff]
        %v806 = vld [vmem:[#allocation3 + $0x220] sm:$0xff]
        %v807 = vld [vmem:[#allocation3 + $0x228] sm:$0xff]
        %v808 = vld [vmem:[#allocation3 + $0x230] sm:$0xff]
        %v809 = vld [vmem:[#allocation3 + $0x238] sm:$0xff]
        %v810 = vld [vmem:[#allocation3 + $0x240] sm:$0xff]
        %v811 = vld [vmem:[#allocation3 + $0x248] sm:$0xff]
        %v812 = vld [vmem:[#allocation3 + $0x250] sm:$0xff]
        %v813 = vld [vmem:[#allocation3 + $0x258] sm:$0xff]
        %v814 = vld [vmem:[#allocation3 + $0x260] sm:$0xff]
        %v815 = vld [vmem:[#allocation3 + $0x268] sm:$0xff]
        %v816 = vld [vmem:[#allocation3 + $0x270] sm:$0xff]
        %v817 = vld [vmem:[#allocation3 + $0x278] sm:$0xff]
        %v818 = vld [vmem:[#allocation3 + $0x280] sm:$0xff]
        %v819 = vld [vmem:[#allocation3 + $0x288] sm:$0xff]
        %v820 = vld [vmem:[#allocation3 + $0x290] sm:$0xff]
        %v821 = vld [vmem:[#allocation3 + $0x298] sm:$0xff]
        %v822 = vld [vmem:[#allocation3 + $0x2a0] sm:$0xff]
        %v823 = vld [vmem:[#allocation3 + $0x2a8] sm:$0xff]
        %v824 = vld [vmem:[#allocation3 + $0x2b0] sm:$0xff]
        %v825 = vld [vmem:[#allocation3 + $0x2b8] sm:$0xff]
        %v826 = vld [vmem:[#allocation3 + $0x2c0] sm:$0xff]
        %v827 = vld [vmem:[#allocation3 + $0x2c8] sm:$0xff]
        %v828 = vld [vmem:[#allocation3 + $0x2d0] sm:$0xff]
        %v829 = vld [vmem:[#allocation3 + $0x2d8] sm:$0xff]
        %v830 = vld [vmem:[#allocation3 + $0x2e0] sm:$0xff]
        %v831 = vld [vmem:[#allocation3 + $0x2e8] sm:$0xff]
        %v832 = vld [vmem:[#allocation3 + $0x2f0] sm:$0xff]
        %v833 = vld [vmem:[#allocation3 + $0x2f8] sm:$0xff]
        %v834 = vld [vmem:[#allocation3 + $0x300] sm:$0xff]
        %v835 = vld [vmem:[#allocation3 + $0x308] sm:$0xff]
        %v836 = vld [vmem:[#allocation3 + $0x310] sm:$0xff]
        %v837 = vld [vmem:[#allocation3 + $0x318] sm:$0xff]
        %v838 = vld [vmem:[#allocation3 + $0x320] sm:$0xff]
        %v839 = vld [vmem:[#allocation3 + $0x328] sm:$0xff]
        %v840 = vld [vmem:[#allocation3 + $0x330] sm:$0xff]
        %v841 = vld [vmem:[#allocation3 + $0x338] sm:$0xff]
        %v842 = vld [vmem:[#allocation3 + $0x340] sm:$0xff]
        %v843 = vld [vmem:[#allocation3 + $0x348] sm:$0xff]
        %v844 = vld [vmem:[#allocation3 + $0x350] sm:$0xff]
        %v845 = vld [vmem:[#allocation3 + $0x358] sm:$0xff]
        %v846 = vld [vmem:[#allocation3 + $0x360] sm:$0xff]
        %v847 = vld [vmem:[#allocation3 + $0x368] sm:$0xff]
        %v848 = vld [vmem:[#allocation3 + $0x370] sm:$0xff]
        %v849 = vld [vmem:[#allocation3 + $0x378] sm:$0xff]
        %v850 = vld [vmem:[#allocation3 + $0x380] sm:$0xff]
        %v851 = vld [vmem:[#allocation3 + $0x388] sm:$0xff]
        %v852 = vld [vmem:[#allocation3 + $0x390] sm:$0xff]
        %v853 = vld [vmem:[#allocation3 + $0x398] sm:$0xff]
        %v854 = vld [vmem:[#allocation3 + $0x3a0] sm:$0xff]
        %v855 = vld [vmem:[#allocation3 + $0x3a8] sm:$0xff]
        %v856 = vld [vmem:[#allocation3 + $0x3b0] sm:$0xff]
        %v857 = vld [vmem:[#allocation3 + $0x3b8] sm:$0xff]
        %v858 = vld [vmem:[#allocation3 + $0x3c0] sm:$0xff]
        %v859 = vld [vmem:[#allocation3 + $0x3c8] sm:$0xff]
        %v860 = vld [vmem:[#allocation3 + $0x3d0] sm:$0xff]
        %v861 = vld [vmem:[#allocation3 + $0x3d8] sm:$0xff]
        %v862 = vld [vmem:[#allocation3 + $0x3e0] sm:$0xff]
        %v863 = vld [vmem:[#allocation3 + $0x3e8] sm:$0xff]
        %v864 = vld [vmem:[#allocation3 + $0x3f0] sm:$0xff]
        %v865 = vld [vmem:[#allocation3 + $0x3f8] sm:$0xff]
        %v866 = vld [vmem:[#allocation3 + $0x400] sm:$0xff]
        %v867 = vld [vmem:[#allocation3 + $0x408] sm:$0xff]
        %v868 = vld [vmem:[#allocation3 + $0x410] sm:$0xff]
        %v869 = vld [vmem:[#allocation3 + $0x418] sm:$0xff]
        %v870 = vld [vmem:[#allocation3 + $0x420] sm:$0xff]
        %v871 = vld [vmem:[#allocation3 + $0x428] sm:$0xff]
        %v872 = vld [vmem:[#allocation3 + $0x430] sm:$0xff]
        %v873 = vld [vmem:[#allocation3 + $0x438] sm:$0xff]
        %v874 = vld [vmem:[#allocation3 + $0x440] sm:$0xff]
        %v875 = vld [vmem:[#allocation3 + $0x448] sm:$0xff]
        %v876 = vld [vmem:[#allocation3 + $0x450] sm:$0xff]
        %v877 = vld [vmem:[#allocation3 + $0x458] sm:$0xff]
        %v878 = vld [vmem:[#allocation3 + $0x460] sm:$0xff]
        %v879 = vld [vmem:[#allocation3 + $0x468] sm:$0xff]
        %v880 = vld [vmem:[#allocation3 + $0x470] sm:$0xff]
        %v881 = vld [vmem:[#allocation3 + $0x478] sm:$0xff]
        %v882 = vld [vmem:[#allocation3 + $0x480] sm:$0xff]
        %v883 = vld [vmem:[#allocation3 + $0x488] sm:$0xff]
        %v884 = vld [vmem:[#allocation3 + $0x490] sm:$0xff]
        %v885 = vld [vmem:[#allocation3 + $0x498] sm:$0xff]
        %v886 = vld [vmem:[#allocation3 + $0x4a0] sm:$0xff]
        %v887 = vld [vmem:[#allocation3 + $0x4a8] sm:$0xff]
        %v888 = vld [vmem:[#allocation3 + $0x4b0] sm:$0xff]
        %v889 = vld [vmem:[#allocation3 + $0x4b8] sm:$0xff]
        %v890 = vld [vmem:[#allocation3 + $0x4c0] sm:$0xff]
        %v891 = vld [vmem:[#allocation3 + $0x4c8] sm:$0xff]
        %v892 = vld [vmem:[#allocation3 + $0x4d0] sm:$0xff]
        %v893 = vld [vmem:[#allocation3 + $0x4d8] sm:$0xff]
        %v894 = vld [vmem:[#allocation3 + $0x4e0] sm:$0xff]
        %v895 = vld [vmem:[#allocation3 + $0x4e8] sm:$0xff]
        %v896 = vld [vmem:[#allocation3 + $0x4f0] sm:$0xff]
        %v897 = vld [vmem:[#allocation3 + $0x4f8] sm:$0xff]
        %v898 = vld [vmem:[#allocation3 + $0x500] sm:$0xff]
        %v899 = vld [vmem:[#allocation3 + $0x508] sm:$0xff]
        %v900 = vld [vmem:[#allocation3 + $0x510] sm:$0xff]
        %v901 = vld [vmem:[#allocation3 + $0x518] sm:$0xff]
        %v902 = vld [vmem:[#allocation3 + $0x520] sm:$0xff]
        %v903 = vld [vmem:[#allocation3 + $0x528] sm:$0xff]
        %v904 = vld [vmem:[#allocation3 + $0x530] sm:$0xff]
        %v905 = vld [vmem:[#allocation3 + $0x538] sm:$0xff]
        %v906 = vld [vmem:[#allocation3 + $0x540] sm:$0xff]
        %v907 = vld [vmem:[#allocation3 + $0x548] sm:$0xff]
        %v908 = vld [vmem:[#allocation3 + $0x550] sm:$0xff]
        %v909 = vld [vmem:[#allocation3 + $0x558] sm:$0xff]
        %v910 = vld [vmem:[#allocation3 + $0x560] sm:$0xff]
        %v911 = vld [vmem:[#allocation3 + $0x568] sm:$0xff]
        %v912 = vld [vmem:[#allocation3 + $0x570] sm:$0xff]
        %v913 = vld [vmem:[#allocation3 + $0x578] sm:$0xff]
        %v914 = vld [vmem:[#allocation3 + $0x580] sm:$0xff]
        %v915 = vld [vmem:[#allocation3 + $0x588] sm:$0xff]
        %v916 = vld [vmem:[#allocation3 + $0x590] sm:$0xff]
        %v917 = vld [vmem:[#allocation3 + $0x598] sm:$0xff]
        %v918 = vld [vmem:[#allocation3 + $0x5a0] sm:$0xff]
        %v919 = vld [vmem:[#allocation3 + $0x5a8] sm:$0xff]
        %v920 = vld [vmem:[#allocation3 + $0x5b0] sm:$0xff]
        %v921 = vld [vmem:[#allocation3 + $0x5b8] sm:$0xff]
        %v922 = vld [vmem:[#allocation3 + $0x5c0] sm:$0xff]
        %v923 = vld [vmem:[#allocation3 + $0x5c8] sm:$0xff]
        %v924 = vld [vmem:[#allocation3 + $0x5d0] sm:$0xff]
        %v925 = vld [vmem:[#allocation3 + $0x5d8] sm:$0xff]
        %v926 = vld [vmem:[#allocation3 + $0x5e0] sm:$0xff]
        %v927 = vld [vmem:[#allocation3 + $0x5e8] sm:$0xff]
        %v928 = vld [vmem:[#allocation3 + $0x5f0] sm:$0xff]
        %v929 = vld [vmem:[#allocation3 + $0x5f8] sm:$0xff]
        %v930 = vld [vmem:[#allocation3 + $0x600] sm:$0xff]
        %v931 = vld [vmem:[#allocation3 + $0x608] sm:$0xff]
        %v932 = vld [vmem:[#allocation3 + $0x610] sm:$0xff]
        %v933 = vld [vmem:[#allocation3 + $0x618] sm:$0xff]
        %v934 = vld [vmem:[#allocation3 + $0x620] sm:$0xff]
        %v935 = vld [vmem:[#allocation3 + $0x628] sm:$0xff]
        %v936 = vld [vmem:[#allocation3 + $0x630] sm:$0xff]
        %v937 = vld [vmem:[#allocation3 + $0x638] sm:$0xff]
        %v938 = vld [vmem:[#allocation3 + $0x640] sm:$0xff]
        %v939 = vld [vmem:[#allocation3 + $0x648] sm:$0xff]
        %v940 = vld [vmem:[#allocation3 + $0x650] sm:$0xff]
        %v941 = vld [vmem:[#allocation3 + $0x658] sm:$0xff]
        %v942 = vld [vmem:[#allocation3 + $0x660] sm:$0xff]
        %v943 = vld [vmem:[#allocation3 + $0x668] sm:$0xff]
        %v944 = vld [vmem:[#allocation3 + $0x670] sm:$0xff]
        %v945 = vld [vmem:[#allocation3 + $0x678] sm:$0xff]
        %v946 = vld [vmem:[#allocation3 + $0x680] sm:$0xff]
        %v947 = vld [vmem:[#allocation3 + $0x688] sm:$0xff]
        %v948 = vld [vmem:[#allocation3 + $0x690] sm:$0xff]
        %v949 = vld [vmem:[#allocation3 + $0x698] sm:$0xff]
        %v950 = vld [vmem:[#allocation3 + $0x6a0] sm:$0xff]
        %v951 = vld [vmem:[#allocation3 + $0x6a8] sm:$0xff]
        %v952 = vld [vmem:[#allocation3 + $0x6b0] sm:$0xff]
        %v953 = vld [vmem:[#allocation3 + $0x6b8] sm:$0xff]
        %v954 = vld [vmem:[#allocation3 + $0x6c0] sm:$0xff]
        %v955 = vld [vmem:[#allocation3 + $0x6c8] sm:$0xff]
        %v956 = vld [vmem:[#allocation3 + $0x6d0] sm:$0xff]
        %v957 = vld [vmem:[#allocation3 + $0x6d8] sm:$0xff]
        %v958 = vld [vmem:[#allocation3 + $0x6e0] sm:$0xff]
        %v959 = vld [vmem:[#allocation3 + $0x6e8] sm:$0xff]
        %v960 = vld [vmem:[#allocation3 + $0x6f0] sm:$0xff]
        %v961 = vld [vmem:[#allocation3 + $0x6f8] sm:$0xff]
        %v962 = vld [vmem:[#allocation3 + $0x700] sm:$0xff]
        %v963 = vld [vmem:[#allocation3 + $0x708] sm:$0xff]
        %v964 = vld [vmem:[#allocation3 + $0x710] sm:$0xff]
        %v965 = vld [vmem:[#allocation3 + $0x718] sm:$0xff]
        %v966 = vld [vmem:[#allocation3 + $0x720] sm:$0xff]
        %v967 = vld [vmem:[#allocation3 + $0x728] sm:$0xff]
        %v968 = vld [vmem:[#allocation3 + $0x730] sm:$0xff]
        %v969 = vld [vmem:[#allocation3 + $0x738] sm:$0xff]
        %v970 = vld [vmem:[#allocation3 + $0x740] sm:$0xff]
        %v971 = vld [vmem:[#allocation3 + $0x748] sm:$0xff]
        %v972 = vld [vmem:[#allocation3 + $0x750] sm:$0xff]
        %v973 = vld [vmem:[#allocation3 + $0x758] sm:$0xff]
        %v974 = vld [vmem:[#allocation3 + $0x760] sm:$0xff]
        %v975 = vld [vmem:[#allocation3 + $0x768] sm:$0xff]
        %v976 = vld [vmem:[#allocation3 + $0x770] sm:$0xff]
        %v977 = vld [vmem:[#allocation3 + $0x778] sm:$0xff]
        %v978 = vld [vmem:[#allocation3 + $0x780] sm:$0xff]
        %v979 = vld [vmem:[#allocation3 + $0x788] sm:$0xff]
        %v980 = vld [vmem:[#allocation3 + $0x790] sm:$0xff]
        %v981 = vld [vmem:[#allocation3 + $0x798] sm:$0xff]
        %v982 = vld [vmem:[#allocation3 + $0x7a0] sm:$0xff]
        %v983 = vld [vmem:[#allocation3 + $0x7a8] sm:$0xff]
        %v984 = vld [vmem:[#allocation3 + $0x7b0] sm:$0xff]
        %v985 = vld [vmem:[#allocation3 + $0x7b8] sm:$0xff]
        %v986 = vld [vmem:[#allocation3 + $0x7c0] sm:$0xff]
        %v987 = vld [vmem:[#allocation3 + $0x7c8] sm:$0xff]
        %v988 = vld [vmem:[#allocation3 + $0x7d0] sm:$0xff]
        %v989 = vld [vmem:[#allocation3 + $0x7d8] sm:$0xff]
        %v990 = vld [vmem:[#allocation3 + $0x7e0] sm:$0xff]
        %v991 = vld [vmem:[#allocation3 + $0x7e8] sm:$0xff]
        %v992 = vld [vmem:[#allocation3 + $0x7f0] sm:$0xff]
        %v993 = vld [vmem:[#allocation3 + $0x7f8] sm:$0xff]
        %v994 = vld [vmem:[%s195] sm:$0xff]
        %v995 = vld [vmem:[%s195 + $0x8] sm:$0xff]
        %v996 = vld [vmem:[%s195 + $0x10] sm:$0xff]
        %v997 = vld [vmem:[%s195 + $0x18] sm:$0xff]
        %v998 = vld [vmem:[%s195 + $0x20] sm:$0xff]
        %v999 = vld [vmem:[%s195 + $0x28] sm:$0xff]
        %v1000 = vld [vmem:[%s195 + $0x30] sm:$0xff]
        %v1001 = vld [vmem:[%s195 + $0x38] sm:$0xff]
        %v1002 = vld [vmem:[%s195 + $0x40] sm:$0xff]
        %v1003 = vld [vmem:[%s195 + $0x48] sm:$0xff]
        %v1004 = vld [vmem:[%s195 + $0x50] sm:$0xff]
        %v1005 = vld [vmem:[%s195 + $0x58] sm:$0xff]
        %v1006 = vld [vmem:[%s195 + $0x60] sm:$0xff]
        %v1007 = vld [vmem:[%s195 + $0x68] sm:$0xff]
        %v1008 = vld [vmem:[%s195 + $0x70] sm:$0xff]
        %v1009 = vld [vmem:[%s195 + $0x78] sm:$0xff]
        %v1010 = vld [vmem:[%s195 + $0x80] sm:$0xff]
        %v1011 = vld [vmem:[%s195 + $0x88] sm:$0xff]
        %v1012 = vld [vmem:[%s195 + $0x90] sm:$0xff]
        %v1013 = vld [vmem:[%s195 + $0x98] sm:$0xff]
        %v1014 = vld [vmem:[%s195 + $0xa0] sm:$0xff]
        %v1015 = vld [vmem:[%s195 + $0xa8] sm:$0xff]
        %v1016 = vld [vmem:[%s195 + $0xb0] sm:$0xff]
        %v1017 = vld [vmem:[%s195 + $0xb8] sm:$0xff]
        %v1018 = vld [vmem:[%s195 + $0xc0] sm:$0xff]
        %v1019 = vld [vmem:[%s195 + $0xc8] sm:$0xff]
        %v1020 = vld [vmem:[%s195 + $0xd0] sm:$0xff]
        %v1021 = vld [vmem:[%s195 + $0xd8] sm:$0xff]
        %v1022 = vld [vmem:[%s195 + $0xe0] sm:$0xff]
        %v1023 = vld [vmem:[%s195 + $0xe8] sm:$0xff]
        %v1024 = vld [vmem:[%s195 + $0xf0] sm:$0xff]
        %v1025 = vld [vmem:[%s195 + $0xf8] sm:$0xff]
        %v1026 = vld [vmem:[%s195 + $0x100] sm:$0xff]
        %v1027 = vld [vmem:[%s195 + $0x108] sm:$0xff]
        %v1028 = vld [vmem:[%s195 + $0x110] sm:$0xff]
        %v1029 = vld [vmem:[%s195 + $0x118] sm:$0xff]
        %v1030 = vld [vmem:[%s195 + $0x120] sm:$0xff]
        %v1031 = vld [vmem:[%s195 + $0x128] sm:$0xff]
        %v1032 = vld [vmem:[%s195 + $0x130] sm:$0xff]
        %v1033 = vld [vmem:[%s195 + $0x138] sm:$0xff]
        %v1034 = vld [vmem:[%s195 + $0x140] sm:$0xff]
        %v1035 = vld [vmem:[%s195 + $0x148] sm:$0xff]
        %v1036 = vld [vmem:[%s195 + $0x150] sm:$0xff]
        %v1037 = vld [vmem:[%s195 + $0x158] sm:$0xff]
        %v1038 = vld [vmem:[%s195 + $0x160] sm:$0xff]
        %v1039 = vld [vmem:[%s195 + $0x168] sm:$0xff]
        %v1040 = vld [vmem:[%s195 + $0x170] sm:$0xff]
        %v1041 = vld [vmem:[%s195 + $0x178] sm:$0xff]
        %v1042 = vld [vmem:[%s195 + $0x180] sm:$0xff]
        %v1043 = vld [vmem:[%s195 + $0x188] sm:$0xff]
        %v1044 = vld [vmem:[%s195 + $0x190] sm:$0xff]
        %v1045 = vld [vmem:[%s195 + $0x198] sm:$0xff]
        %v1046 = vld [vmem:[%s195 + $0x1a0] sm:$0xff]
        %v1047 = vld [vmem:[%s195 + $0x1a8] sm:$0xff]
        %v1048 = vld [vmem:[%s195 + $0x1b0] sm:$0xff]
        %v1049 = vld [vmem:[%s195 + $0x1b8] sm:$0xff]
        %v1050 = vld [vmem:[%s195 + $0x1c0] sm:$0xff]
        %v1051 = vld [vmem:[%s195 + $0x1c8] sm:$0xff]
        %v1052 = vld [vmem:[%s195 + $0x1d0] sm:$0xff]
        %v1053 = vld [vmem:[%s195 + $0x1d8] sm:$0xff]
        %v1054 = vld [vmem:[%s195 + $0x1e0] sm:$0xff]
        %v1055 = vld [vmem:[%s195 + $0x1e8] sm:$0xff]
        %v1056 = vld [vmem:[%s195 + $0x1f0] sm:$0xff]
        %v1057 = vld [vmem:[%s195 + $0x1f8] sm:$0xff]
        %v1058 = vld [vmem:[%s195 + $0x200] sm:$0xff]
        %v1059 = vld [vmem:[%s195 + $0x208] sm:$0xff]
        %v1060 = vld [vmem:[%s195 + $0x210] sm:$0xff]
        %v1061 = vld [vmem:[%s195 + $0x218] sm:$0xff]
        %v1062 = vld [vmem:[%s195 + $0x220] sm:$0xff]
        %v1063 = vld [vmem:[%s195 + $0x228] sm:$0xff]
        %v1064 = vld [vmem:[%s195 + $0x230] sm:$0xff]
        %v1065 = vld [vmem:[%s195 + $0x238] sm:$0xff]
        %v1066 = vld [vmem:[%s195 + $0x240] sm:$0xff]
        %v1067 = vld [vmem:[%s195 + $0x248] sm:$0xff]
        %v1068 = vld [vmem:[%s195 + $0x250] sm:$0xff]
        %v1069 = vld [vmem:[%s195 + $0x258] sm:$0xff]
        %v1070 = vld [vmem:[%s195 + $0x260] sm:$0xff]
        %v1071 = vld [vmem:[%s195 + $0x268] sm:$0xff]
        %v1072 = vld [vmem:[%s195 + $0x270] sm:$0xff]
        %v1073 = vld [vmem:[%s195 + $0x278] sm:$0xff]
        %v1074 = vld [vmem:[%s195 + $0x280] sm:$0xff]
        %v1075 = vld [vmem:[%s195 + $0x288] sm:$0xff]
        %v1076 = vld [vmem:[%s195 + $0x290] sm:$0xff]
        %v1077 = vld [vmem:[%s195 + $0x298] sm:$0xff]
        %v1078 = vld [vmem:[%s195 + $0x2a0] sm:$0xff]
        %v1079 = vld [vmem:[%s195 + $0x2a8] sm:$0xff]
        %v1080 = vld [vmem:[%s195 + $0x2b0] sm:$0xff]
        %v1081 = vld [vmem:[%s195 + $0x2b8] sm:$0xff]
        %v1082 = vld [vmem:[%s195 + $0x2c0] sm:$0xff]
        %v1083 = vld [vmem:[%s195 + $0x2c8] sm:$0xff]
        %v1084 = vld [vmem:[%s195 + $0x2d0] sm:$0xff]
        %v1085 = vld [vmem:[%s195 + $0x2d8] sm:$0xff]
        %v1086 = vld [vmem:[%s195 + $0x2e0] sm:$0xff]
        %v1087 = vld [vmem:[%s195 + $0x2e8] sm:$0xff]
        %v1088 = vld [vmem:[%s195 + $0x2f0] sm:$0xff]
        %v1089 = vld [vmem:[%s195 + $0x2f8] sm:$0xff]
        %v1090 = vld [vmem:[%s195 + $0x300] sm:$0xff]
        %v1091 = vld [vmem:[%s195 + $0x308] sm:$0xff]
        %v1092 = vld [vmem:[%s195 + $0x310] sm:$0xff]
        %v1093 = vld [vmem:[%s195 + $0x318] sm:$0xff]
        %v1094 = vld [vmem:[%s195 + $0x320] sm:$0xff]
        %v1095 = vld [vmem:[%s195 + $0x328] sm:$0xff]
        %v1096 = vld [vmem:[%s195 + $0x330] sm:$0xff]
        %v1097 = vld [vmem:[%s195 + $0x338] sm:$0xff]
        %v1098 = vld [vmem:[%s195 + $0x340] sm:$0xff]
        %v1099 = vld [vmem:[%s195 + $0x348] sm:$0xff]
        %v1100 = vld [vmem:[%s195 + $0x350] sm:$0xff]
        %v1101 = vld [vmem:[%s195 + $0x358] sm:$0xff]
        %v1102 = vld [vmem:[%s195 + $0x360] sm:$0xff]
        %v1103 = vld [vmem:[%s195 + $0x368] sm:$0xff]
        %v1104 = vld [vmem:[%s195 + $0x370] sm:$0xff]
        %v1105 = vld [vmem:[%s195 + $0x378] sm:$0xff]
        %v1106 = vld [vmem:[%s195 + $0x380] sm:$0xff]
        %v1107 = vld [vmem:[%s195 + $0x388] sm:$0xff]
        %v1108 = vld [vmem:[%s195 + $0x390] sm:$0xff]
        %v1109 = vld [vmem:[%s195 + $0x398] sm:$0xff]
        %v1110 = vld [vmem:[%s195 + $0x3a0] sm:$0xff]
        %v1111 = vld [vmem:[%s195 + $0x3a8] sm:$0xff]
        %v1112 = vld [vmem:[%s195 + $0x3b0] sm:$0xff]
        %v1113 = vld [vmem:[%s195 + $0x3b8] sm:$0xff]
        %v1114 = vld [vmem:[%s195 + $0x3c0] sm:$0xff]
        %v1115 = vld [vmem:[%s195 + $0x3c8] sm:$0xff]
        %v1116 = vld [vmem:[%s195 + $0x3d0] sm:$0xff]
        %v1117 = vld [vmem:[%s195 + $0x3d8] sm:$0xff]
        %v1118 = vld [vmem:[%s195 + $0x3e0] sm:$0xff]
        %v1119 = vld [vmem:[%s195 + $0x3e8] sm:$0xff]
        %v1120 = vld [vmem:[%s195 + $0x3f0] sm:$0xff]
        %v1121 = vld [vmem:[%s195 + $0x3f8] sm:$0xff]
        %v1122 = vld [vmem:[%s195 + $0x400] sm:$0xff]
        %v1123 = vld [vmem:[%s195 + $0x408] sm:$0xff]
        %v1124 = vld [vmem:[%s195 + $0x410] sm:$0xff]
        %v1125 = vld [vmem:[%s195 + $0x418] sm:$0xff]
        %v1126 = vld [vmem:[%s195 + $0x420] sm:$0xff]
        %v1127 = vld [vmem:[%s195 + $0x428] sm:$0xff]
        %v1128 = vld [vmem:[%s195 + $0x430] sm:$0xff]
        %v1129 = vld [vmem:[%s195 + $0x438] sm:$0xff]
        %v1130 = vld [vmem:[%s195 + $0x440] sm:$0xff]
        %v1131 = vld [vmem:[%s195 + $0x448] sm:$0xff]
        %v1132 = vld [vmem:[%s195 + $0x450] sm:$0xff]
        %v1133 = vld [vmem:[%s195 + $0x458] sm:$0xff]
        %v1134 = vld [vmem:[%s195 + $0x460] sm:$0xff]
        %v1135 = vld [vmem:[%s195 + $0x468] sm:$0xff]
        %v1136 = vld [vmem:[%s195 + $0x470] sm:$0xff]
        %v1137 = vld [vmem:[%s195 + $0x478] sm:$0xff]
        %v1138 = vld [vmem:[%s195 + $0x480] sm:$0xff]
        %v1139 = vld [vmem:[%s195 + $0x488] sm:$0xff]
        %v1140 = vld [vmem:[%s195 + $0x490] sm:$0xff]
        %v1141 = vld [vmem:[%s195 + $0x498] sm:$0xff]
        %v1142 = vld [vmem:[%s195 + $0x4a0] sm:$0xff]
        %v1143 = vld [vmem:[%s195 + $0x4a8] sm:$0xff]
        %v1144 = vld [vmem:[%s195 + $0x4b0] sm:$0xff]
        %v1145 = vld [vmem:[%s195 + $0x4b8] sm:$0xff]
        %v1146 = vld [vmem:[%s195 + $0x4c0] sm:$0xff]
        %v1147 = vld [vmem:[%s195 + $0x4c8] sm:$0xff]
        %v1148 = vld [vmem:[%s195 + $0x4d0] sm:$0xff]
        %v1149 = vld [vmem:[%s195 + $0x4d8] sm:$0xff]
        %v1150 = vld [vmem:[%s195 + $0x4e0] sm:$0xff]
        %v1151 = vld [vmem:[%s195 + $0x4e8] sm:$0xff]
        %v1152 = vld [vmem:[%s195 + $0x4f0] sm:$0xff]
        %v1153 = vld [vmem:[%s195 + $0x4f8] sm:$0xff]
        %v1154 = vld [vmem:[%s195 + $0x500] sm:$0xff]
        %v1155 = vld [vmem:[%s195 + $0x508] sm:$0xff]
        %v1156 = vld [vmem:[%s195 + $0x510] sm:$0xff]
        %v1157 = vld [vmem:[%s195 + $0x518] sm:$0xff]
        %v1158 = vld [vmem:[%s195 + $0x520] sm:$0xff]
        %v1159 = vld [vmem:[%s195 + $0x528] sm:$0xff]
        %v1160 = vld [vmem:[%s195 + $0x530] sm:$0xff]
        %v1161 = vld [vmem:[%s195 + $0x538] sm:$0xff]
        %v1162 = vld [vmem:[%s195 + $0x540] sm:$0xff]
        %v1163 = vld [vmem:[%s195 + $0x548] sm:$0xff]
        %v1164 = vld [vmem:[%s195 + $0x550] sm:$0xff]
        %v1165 = vld [vmem:[%s195 + $0x558] sm:$0xff]
        %v1166 = vld [vmem:[%s195 + $0x560] sm:$0xff]
        %v1167 = vld [vmem:[%s195 + $0x568] sm:$0xff]
        %v1168 = vld [vmem:[%s195 + $0x570] sm:$0xff]
        %v1169 = vld [vmem:[%s195 + $0x578] sm:$0xff]
        %v1170 = vld [vmem:[%s195 + $0x580] sm:$0xff]
        %v1171 = vld [vmem:[%s195 + $0x588] sm:$0xff]
        %v1172 = vld [vmem:[%s195 + $0x590] sm:$0xff]
        %v1173 = vld [vmem:[%s195 + $0x598] sm:$0xff]
        %v1174 = vld [vmem:[%s195 + $0x5a0] sm:$0xff]
        %v1175 = vld [vmem:[%s195 + $0x5a8] sm:$0xff]
        %v1176 = vld [vmem:[%s195 + $0x5b0] sm:$0xff]
        %v1177 = vld [vmem:[%s195 + $0x5b8] sm:$0xff]
        %v1178 = vld [vmem:[%s195 + $0x5c0] sm:$0xff]
        %v1179 = vld [vmem:[%s195 + $0x5c8] sm:$0xff]
        %v1180 = vld [vmem:[%s195 + $0x5d0] sm:$0xff]
        %v1181 = vld [vmem:[%s195 + $0x5d8] sm:$0xff]
        %v1182 = vld [vmem:[%s195 + $0x5e0] sm:$0xff]
        %v1183 = vld [vmem:[%s195 + $0x5e8] sm:$0xff]
        %v1184 = vld [vmem:[%s195 + $0x5f0] sm:$0xff]
        %v1185 = vld [vmem:[%s195 + $0x5f8] sm:$0xff]
        %v1186 = vld [vmem:[%s195 + $0x600] sm:$0xff]
        %v1187 = vld [vmem:[%s195 + $0x608] sm:$0xff]
        %v1188 = vld [vmem:[%s195 + $0x610] sm:$0xff]
        %v1189 = vld [vmem:[%s195 + $0x618] sm:$0xff]
        %v1190 = vld [vmem:[%s195 + $0x620] sm:$0xff]
        %v1191 = vld [vmem:[%s195 + $0x628] sm:$0xff]
        %v1192 = vld [vmem:[%s195 + $0x630] sm:$0xff]
        %v1193 = vld [vmem:[%s195 + $0x638] sm:$0xff]
        %v1194 = vld [vmem:[%s195 + $0x640] sm:$0xff]
        %v1195 = vld [vmem:[%s195 + $0x648] sm:$0xff]
        %v1196 = vld [vmem:[%s195 + $0x650] sm:$0xff]
        %v1197 = vld [vmem:[%s195 + $0x658] sm:$0xff]
        %v1198 = vld [vmem:[%s195 + $0x660] sm:$0xff]
        %v1199 = vld [vmem:[%s195 + $0x668] sm:$0xff]
        %v1200 = vld [vmem:[%s195 + $0x670] sm:$0xff]
        %v1201 = vld [vmem:[%s195 + $0x678] sm:$0xff]
        %v1202 = vld [vmem:[%s195 + $0x680] sm:$0xff]
        %v1203 = vld [vmem:[%s195 + $0x688] sm:$0xff]
        %v1204 = vld [vmem:[%s195 + $0x690] sm:$0xff]
        %v1205 = vld [vmem:[%s195 + $0x698] sm:$0xff]
        %v1206 = vld [vmem:[%s195 + $0x6a0] sm:$0xff]
        %v1207 = vld [vmem:[%s195 + $0x6a8] sm:$0xff]
        %v1208 = vld [vmem:[%s195 + $0x6b0] sm:$0xff]
        %v1209 = vld [vmem:[%s195 + $0x6b8] sm:$0xff]
        %v1210 = vld [vmem:[%s195 + $0x6c0] sm:$0xff]
        %v1211 = vld [vmem:[%s195 + $0x6c8] sm:$0xff]
        %v1212 = vld [vmem:[%s195 + $0x6d0] sm:$0xff]
        %v1213 = vld [vmem:[%s195 + $0x6d8] sm:$0xff]
        %v1214 = vld [vmem:[%s195 + $0x6e0] sm:$0xff]
        %v1215 = vld [vmem:[%s195 + $0x6e8] sm:$0xff]
        %v1216 = vld [vmem:[%s195 + $0x6f0] sm:$0xff]
        %v1217 = vld [vmem:[%s195 + $0x6f8] sm:$0xff]
        %v1218 = vld [vmem:[%s195 + $0x700] sm:$0xff]
        %v1219 = vld [vmem:[%s195 + $0x708] sm:$0xff]
        %v1220 = vld [vmem:[%s195 + $0x710] sm:$0xff]
        %v1221 = vld [vmem:[%s195 + $0x718] sm:$0xff]
        %v1222 = vld [vmem:[%s195 + $0x720] sm:$0xff]
        %v1223 = vld [vmem:[%s195 + $0x728] sm:$0xff]
        %v1224 = vld [vmem:[%s195 + $0x730] sm:$0xff]
        %v1225 = vld [vmem:[%s195 + $0x738] sm:$0xff]
        %v1226 = vld [vmem:[%s195 + $0x740] sm:$0xff]
        %v1227 = vld [vmem:[%s195 + $0x748] sm:$0xff]
        %v1228 = vld [vmem:[%s195 + $0x750] sm:$0xff]
        %v1229 = vld [vmem:[%s195 + $0x758] sm:$0xff]
        %v1230 = vld [vmem:[%s195 + $0x760] sm:$0xff]
        %v1231 = vld [vmem:[%s195 + $0x768] sm:$0xff]
        %v1232 = vld [vmem:[%s195 + $0x770] sm:$0xff]
        %v1233 = vld [vmem:[%s195 + $0x778] sm:$0xff]
        %v1234 = vld [vmem:[%s195 + $0x780] sm:$0xff]
        %v1235 = vld [vmem:[%s195 + $0x788] sm:$0xff]
        %v1236 = vld [vmem:[%s195 + $0x790] sm:$0xff]
        %v1237 = vld [vmem:[%s195 + $0x798] sm:$0xff]
        %v1238 = vld [vmem:[%s195 + $0x7a0] sm:$0xff]
        %v1239 = vld [vmem:[%s195 + $0x7a8] sm:$0xff]
        %v1240 = vld [vmem:[%s195 + $0x7b0] sm:$0xff]
        %v1241 = vld [vmem:[%s195 + $0x7b8] sm:$0xff]
        %v1242 = vld [vmem:[%s195 + $0x7c0] sm:$0xff]
        %v1243 = vld [vmem:[%s195 + $0x7c8] sm:$0xff]
        %v1244 = vld [vmem:[%s195 + $0x7d0] sm:$0xff]
        %v1245 = vld [vmem:[%s195 + $0x7d8] sm:$0xff]
        %v1246 = vld [vmem:[%s195 + $0x7e0] sm:$0xff]
        %v1247 = vld [vmem:[%s195 + $0x7e8] sm:$0xff]
        %v1248 = vld [vmem:[%s195 + $0x7f0] sm:$0xff]
        %v1249 = vld [vmem:[%s195 + $0x7f8] sm:$0xff]
        %1250 = vmatprep.subr.mxu0 %v995
        %1251 = vmatpush1.msra.mxu0 %v994
        %1252 = vmatprep.subr.mxu0 %v999
        %1253 = vmatpush1.msra.mxu0 %v998
        %1254 = vmatprep.subr.mxu0 %v1003
        %1255 = vmatpush1.msra.mxu0 %v1002
        %1256 = vmatprep.subr.mxu0 %v1007
        %1257 = vmatpush1.msra.mxu0 %v1006
        %1258 = vmatprep.subr.mxu0 %v1011
        %1259 = vmatpush1.msra.mxu0 %v1010
        %1260 = vmatprep.subr.mxu0 %v1015
        %1261 = vmatpush1.msra.mxu0 %v1014
        %1262 = vmatprep.subr.mxu0 %v1019
        %1263 = vmatpush1.msra.mxu0 %v1018
        %1264 = vmatprep.subr.mxu0 %v1023
        %1265 = vmatpush1.msra.mxu0 %v1022
        %1266 = vmatprep.subr.mxu0 %v1027
        %1267 = vmatpush1.msra.mxu0 %v1026
        %1268 = vmatprep.subr.mxu0 %v1031
        %1269 = vmatpush1.msra.mxu0 %v1030
        %1270 = vmatprep.subr.mxu0 %v1035
        %1271 = vmatpush1.msra.mxu0 %v1034
        %1272 = vmatprep.subr.mxu0 %v1039
        %1273 = vmatpush1.msra.mxu0 %v1038
        %1274 = vmatprep.subr.mxu0 %v1043
        %1275 = vmatpush1.msra.mxu0 %v1042
        %1276 = vmatprep.subr.mxu0 %v1047
        %1277 = vmatpush1.msra.mxu0 %v1046
        %1278 = vmatprep.subr.mxu0 %v1051
        %1279 = vmatpush1.msra.mxu0 %v1050
        %1280 = vmatprep.subr.mxu0 %v1055
        %1281 = vmatpush1.msra.mxu0 %v1054
        %1282 = vmatprep.subr.mxu0 %v1059
        %1283 = vmatpush1.msra.mxu0 %v1058
        %1284 = vmatprep.subr.mxu0 %v1063
        %1285 = vmatpush1.msra.mxu0 %v1062
        %1286 = vmatprep.subr.mxu0 %v1067
        %1287 = vmatpush1.msra.mxu0 %v1066
        %1288 = vmatprep.subr.mxu0 %v1071
        %1289 = vmatpush1.msra.mxu0 %v1070
        %1290 = vmatprep.subr.mxu0 %v1075
        %1291 = vmatpush1.msra.mxu0 %v1074
        %1292 = vmatprep.subr.mxu0 %v1079
        %1293 = vmatpush1.msra.mxu0 %v1078
        %1294 = vmatprep.subr.mxu0 %v1083
        %1295 = vmatpush1.msra.mxu0 %v1082
        %1296 = vmatprep.subr.mxu0 %v1087
        %1297 = vmatpush1.msra.mxu0 %v1086
        %1298 = vmatprep.subr.mxu0 %v1091
        %1299 = vmatpush1.msra.mxu0 %v1090
        %1300 = vmatprep.subr.mxu0 %v1095
        %1301 = vmatpush1.msra.mxu0 %v1094
        %1302 = vmatprep.subr.mxu0 %v1099
        %1303 = vmatpush1.msra.mxu0 %v1098
        %1304 = vmatprep.subr.mxu0 %v1103
        %1305 = vmatpush1.msra.mxu0 %v1102
        %1306 = vmatprep.subr.mxu0 %v1107
        %1307 = vmatpush1.msra.mxu0 %v1106
        %1308 = vmatprep.subr.mxu0 %v1111
        %1309 = vmatpush1.msra.mxu0 %v1110
        %1310 = vmatprep.subr.mxu0 %v1115
        %1311 = vmatpush1.msra.mxu0 %v1114
        %1312 = vmatprep.subr.mxu0 %v1119
        %1313 = vmatpush1.msra.mxu0 %v1118
        %1314 = vmatprep.mubr.f32.mxu0 %v739
        %1315 = vmatmul.mubr.f32.gmra.mrb[0].mxu0 %v738
        %v1316 = vpop.f32.mrb[0].mxu0
        %v1317 = vadd.f32 0.0, %v1316
        %v1318 = vpop.f32.mrb[0].mxu0
        %v1319 = vadd.f32 0.0, %v1318
        %1320 = vmatprep.mubr.f32.mxu0 %v743
        %1321 = vmatmul.mubr.f32.gmra.mrb[0].mxu0 %v742
        %v1322 = vpop.f32.mrb[0].mxu0
        %v1323 = vadd.f32 0.0, %v1322
        %v1324 = vpop.f32.mrb[0].mxu0
        %v1325 = vadd.f32 0.0, %v1324
        %1326 = vmatprep.mubr.f32.mxu0 %v747
        %1327 = vmatmul.mubr.f32.gmra.mrb[0].mxu0 %v746
        %v1328 = vpop.f32.mrb[0].mxu0
        %v1329 = vadd.f32 0.0, %v1328
        %v1330 = vpop.f32.mrb[0].mxu0
        %v1331 = vadd.f32 0.0, %v1330
        %1332 = vmatprep.mubr.f32.mxu0 %v751
        %1333 = vmatmul.mubr.f32.gmra.mrb[0].mxu0 %v750
        %v1334 = vpop.f32.mrb[0].mxu0
        %v1335 = vadd.f32 0.0, %v1334
        %v1336 = vpop.f32.mrb[0].mxu0
        %v1337 = vadd.f32 0.0, %v1336
        %1338 = vmatprep.mubr.f32.mxu0 %v755
        %1339 = vmatmul.mubr.f32.gmra.mrb[0].mxu0 %v754
        %v1340 = vpop.f32.mrb[0].mxu0
        %v1341 = vadd.f32 0.0, %v1340
        %v1342 = vpop.f32.mrb[0].mxu0
        %v1343 = vadd.f32 0.0, %v1342
        %1344 = vmatprep.mubr.f32.mxu0 %v759
        %1345 = vmatmul.mubr.f32.gmra.mrb[0].mxu0 %v758
        %v1346 = vpop.f32.mrb[0].mxu0
        %v1347 = vadd.f32 0.0, %v1346
        %v1348 = vpop.f32.mrb[0].mxu0
        %v1349 = vadd.f32 0.0, %v1348
        %1350 = vmatprep.mubr.f32.mxu0 %v763
        %1351 = vmatmul.mubr.f32.gmra.mrb[0].mxu0 %v762
        %v1352 = vpop.f32.mrb[0].mxu0
        %v1353 = vadd.f32 0.0, %v1352
        %v1354 = vpop.f32.mrb[0].mxu0
        %v1355 = vadd.f32 0.0, %v1354
        %1356 = vmatprep.mubr.f32.mxu0 %v767
        %1357 = vmatmul.mubr.f32.gmra.mrb[0].mxu0 %v766
        %v1358 = vpop.f32.mrb[0].mxu0
        %v1359 = vadd.f32 0.0, %v1358
        %v1360 = vpop.f32.mrb[0].mxu0
        %v1361 = vadd.f32 0.0, %v1360
        %1362 = vmatprep.mubr.f32.mxu0 %v771
        %1363 = vmatmul.mubr.f32.gmra.mrb[0].mxu0 %v770
        %v1364 = vpop.f32.mrb[0].mxu0
        %v1365 = vadd.f32 0.0, %v1364
        %v1366 = vpop.f32.mrb[0].mxu0
        %v1367 = vadd.f32 0.0, %v1366
        %1368 = vmatprep.mubr.f32.mxu0 %v775
        %1369 = vmatmul.mubr.f32.gmra.mrb[0].mxu0 %v774
        %v1370 = vpop.f32.mrb[0].mxu0
        %v1371 = vadd.f32 0.0, %v1370
        %v1372 = vpop.f32.mrb[0].mxu0
        %v1373 = vadd.f32 0.0, %v1372
        %1374 = vmatprep.mubr.f32.mxu0 %v779
        %1375 = vmatmul.mubr.f32.gmra.mrb[0].mxu0 %v778
        %v1376 = vpop.f32.mrb[0].mxu0
        %v1377 = vadd.f32 0.0, %v1376
        %v1378 = vpop.f32.mrb[0].mxu0
        %v1379 = vadd.f32 0.0, %v1378
        %1380 = vmatprep.mubr.f32.mxu0 %v783
        %1381 = vmatmul.mubr.f32.gmra.mrb[0].mxu0 %v782
        %v1382 = vpop.f32.mrb[0].mxu0
        %v1383 = vadd.f32 0.0, %v1382
        %v1384 = vpop.f32.mrb[0].mxu0
        %v1385 = vadd.f32 0.0, %v1384
        %1386 = vmatprep.mubr.f32.mxu0 %v787
        %1387 = vmatmul.mubr.f32.gmra.mrb[0].mxu0 %v786
        %v1388 = vpop.f32.mrb[0].mxu0
        %v1389 = vadd.f32 0.0, %v1388
        %v1390 = vpop.f32.mrb[0].mxu0
        %v1391 = vadd.f32 0.0, %v1390
        %1392 = vmatprep.mubr.f32.mxu0 %v791
        %1393 = vmatmul.mubr.f32.gmra.mrb[0].mxu0 %v790
        %v1394 = vpop.f32.mrb[0].mxu0
        %v1395 = vadd.f32 0.0, %v1394
        %v1396 = vpop.f32.mrb[0].mxu0
        %v1397 = vadd.f32 0.0, %v1396
        %1398 = vmatprep.mubr.f32.mxu0 %v795
        %1399 = vmatmul.mubr.f32.gmra.mrb[0].mxu0 %v794
        %v1400 = vpop.f32.mrb[0].mxu0
        %v1401 = vadd.f32 0.0, %v1400
        %v1402 = vpop.f32.mrb[0].mxu0
        %v1403 = vadd.f32 0.0, %v1402
        %1404 = vmatprep.mubr.f32.mxu0 %v799
        %1405 = vmatmul.mubr.f32.gmra.mrb[0].mxu0 %v798
        %v1406 = vpop.f32.mrb[0].mxu0
        %v1407 = vadd.f32 0.0, %v1406
        %v1408 = vpop.f32.mrb[0].mxu0
        %v1409 = vadd.f32 0.0, %v1408
        %1410 = vmatprep.mubr.f32.mxu0 %v803
        %1411 = vmatmul.mubr.f32.gmra.mrb[0].mxu0 %v802
        %v1412 = vpop.f32.mrb[0].mxu0
        %v1413 = vadd.f32 0.0, %v1412
        %v1414 = vpop.f32.mrb[0].mxu0
        %v1415 = vadd.f32 0.0, %v1414
        %1416 = vmatprep.mubr.f32.mxu0 %v807
        %1417 = vmatmul.mubr.f32.gmra.mrb[0].mxu0 %v806
        %v1418 = vpop.f32.mrb[0].mxu0
        %v1419 = vadd.f32 0.0, %v1418
        %v1420 = vpop.f32.mrb[0].mxu0
        %v1421 = vadd.f32 0.0, %v1420
        %1422 = vmatprep.mubr.f32.mxu0 %v811
        %1423 = vmatmul.mubr.f32.gmra.mrb[0].mxu0 %v810
        %v1424 = vpop.f32.mrb[0].mxu0
        %v1425 = vadd.f32 0.0, %v1424
        %v1426 = vpop.f32.mrb[0].mxu0
        %v1427 = vadd.f32 0.0, %v1426
        %1428 = vmatprep.mubr.f32.mxu0 %v815
        %1429 = vmatmul.mubr.f32.gmra.mrb[0].mxu0 %v814
        %v1430 = vpop.f32.mrb[0].mxu0
        %v1431 = vadd.f32 0.0, %v1430
        %v1432 = vpop.f32.mrb[0].mxu0
        %v1433 = vadd.f32 0.0, %v1432
        %1434 = vmatprep.mubr.f32.mxu0 %v819
        %1435 = vmatmul.mubr.f32.gmra.mrb[0].mxu0 %v818
        %v1436 = vpop.f32.mrb[0].mxu0
        %v1437 = vadd.f32 0.0, %v1436
        %v1438 = vpop.f32.mrb[0].mxu0
        %v1439 = vadd.f32 0.0, %v1438
        %1440 = vmatprep.mubr.f32.mxu0 %v823
        %1441 = vmatmul.mubr.f32.gmra.mrb[0].mxu0 %v822
        %v1442 = vpop.f32.mrb[0].mxu0
        %v1443 = vadd.f32 0.0, %v1442
        %v1444 = vpop.f32.mrb[0].mxu0
        %v1445 = vadd.f32 0.0, %v1444
        %1446 = vmatprep.mubr.f32.mxu0 %v827
        %1447 = vmatmul.mubr.f32.gmra.mrb[0].mxu0 %v826
        %v1448 = vpop.f32.mrb[0].mxu0
        %v1449 = vadd.f32 0.0, %v1448
        %v1450 = vpop.f32.mrb[0].mxu0
        %v1451 = vadd.f32 0.0, %v1450
        %1452 = vmatprep.mubr.f32.mxu0 %v831
        %1453 = vmatmul.mubr.f32.gmra.mrb[0].mxu0 %v830
        %v1454 = vpop.f32.mrb[0].mxu0
        %v1455 = vadd.f32 0.0, %v1454
        %v1456 = vpop.f32.mrb[0].mxu0
        %v1457 = vadd.f32 0.0, %v1456
        %1458 = vmatprep.mubr.f32.mxu0 %v835
        %1459 = vmatmul.mubr.f32.gmra.mrb[0].mxu0 %v834
        %v1460 = vpop.f32.mrb[0].mxu0
        %v1461 = vadd.f32 0.0, %v1460
        %v1462 = vpop.f32.mrb[0].mxu0
        %v1463 = vadd.f32 0.0, %v1462
        %1464 = vmatprep.mubr.f32.mxu0 %v839
        %1465 = vmatmul.mubr.f32.gmra.mrb[0].mxu0 %v838
        %v1466 = vpop.f32.mrb[0].mxu0
        %v1467 = vadd.f32 0.0, %v1466
        %v1468 = vpop.f32.mrb[0].mxu0
        %v1469 = vadd.f32 0.0, %v1468
        %1470 = vmatprep.mubr.f32.mxu0 %v843
        %1471 = vmatmul.mubr.f32.gmra.mrb[0].mxu0 %v842
        %v1472 = vpop.f32.mrb[0].mxu0
        %v1473 = vadd.f32 0.0, %v1472
        %v1474 = vpop.f32.mrb[0].mxu0
        %v1475 = vadd.f32 0.0, %v1474
        %1476 = vmatprep.mubr.f32.mxu0 %v847
        %1477 = vmatmul.mubr.f32.gmra.mrb[0].mxu0 %v846
        %v1478 = vpop.f32.mrb[0].mxu0
        %v1479 = vadd.f32 0.0, %v1478
        %v1480 = vpop.f32.mrb[0].mxu0
        %v1481 = vadd.f32 0.0, %v1480
        %1482 = vmatprep.mubr.f32.mxu0 %v851
        %1483 = vmatmul.mubr.f32.gmra.mrb[0].mxu0 %v850
        %v1484 = vpop.f32.mrb[0].mxu0
        %v1485 = vadd.f32 0.0, %v1484
        %v1486 = vpop.f32.mrb[0].mxu0
        %v1487 = vadd.f32 0.0, %v1486
        %1488 = vmatprep.mubr.f32.mxu0 %v855
        %1489 = vmatmul.mubr.f32.gmra.mrb[0].mxu0 %v854
        %v1490 = vpop.f32.mrb[0].mxu0
        %v1491 = vadd.f32 0.0, %v1490
        %v1492 = vpop.f32.mrb[0].mxu0
        %v1493 = vadd.f32 0.0, %v1492
        %1494 = vmatprep.mubr.f32.mxu0 %v859
        %1495 = vmatmul.mubr.f32.gmra.mrb[0].mxu0 %v858
        %v1496 = vpop.f32.mrb[0].mxu0
        %v1497 = vadd.f32 0.0, %v1496
        %v1498 = vpop.f32.mrb[0].mxu0
        %v1499 = vadd.f32 0.0, %v1498
        %1500 = vmatprep.mubr.f32.mxu0 %v863
        %1501 = vmatmul.mubr.f32.gmra.mrb[0].mxu0 %v862
        %v1502 = vpop.f32.mrb[0].mxu0
        %v1503 = vadd.f32 0.0, %v1502
        %v1504 = vpop.f32.mrb[0].mxu0
        %v1505 = vadd.f32 0.0, %v1504
        %1506 = vmatprep.mubr.f32.mxu0 %v867
        %1507 = vmatmul.mubr.f32.gmra.mrb[0].mxu0 %v866
        %v1508 = vpop.f32.mrb[0].mxu0
        %v1509 = vadd.f32 0.0, %v1508
        %v1510 = vpop.f32.mrb[0].mxu0
        %v1511 = vadd.f32 0.0, %v1510
        %1512 = vmatprep.mubr.f32.mxu0 %v871
        %1513 = vmatmul.mubr.f32.gmra.mrb[0].mxu0 %v870
        %v1514 = vpop.f32.mrb[0].mxu0
        %v1515 = vadd.f32 0.0, %v1514
        %v1516 = vpop.f32.mrb[0].mxu0
        %v1517 = vadd.f32 0.0, %v1516
        %1518 = vmatprep.mubr.f32.mxu0 %v875
        %1519 = vmatmul.mubr.f32.gmra.mrb[0].mxu0 %v874
        %v1520 = vpop.f32.mrb[0].mxu0
        %v1521 = vadd.f32 0.0, %v1520
        %v1522 = vpop.f32.mrb[0].mxu0
        %v1523 = vadd.f32 0.0, %v1522
        %1524 = vmatprep.mubr.f32.mxu0 %v879
        %1525 = vmatmul.mubr.f32.gmra.mrb[0].mxu0 %v878
        %v1526 = vpop.f32.mrb[0].mxu0
        %v1527 = vadd.f32 0.0, %v1526
        %v1528 = vpop.f32.mrb[0].mxu0
        %v1529 = vadd.f32 0.0, %v1528
        %1530 = vmatprep.mubr.f32.mxu0 %v883
        %1531 = vmatmul.mubr.f32.gmra.mrb[0].mxu0 %v882
        %v1532 = vpop.f32.mrb[0].mxu0
        %v1533 = vadd.f32 0.0, %v1532
        %v1534 = vpop.f32.mrb[0].mxu0
        %v1535 = vadd.f32 0.0, %v1534
        %1536 = vmatprep.mubr.f32.mxu0 %v887
        %1537 = vmatmul.mubr.f32.gmra.mrb[0].mxu0 %v886
        %v1538 = vpop.f32.mrb[0].mxu0
        %v1539 = vadd.f32 0.0, %v1538
        %v1540 = vpop.f32.mrb[0].mxu0
        %v1541 = vadd.f32 0.0, %v1540
        %1542 = vmatprep.mubr.f32.mxu0 %v891
        %1543 = vmatmul.mubr.f32.gmra.mrb[0].mxu0 %v890
        %v1544 = vpop.f32.mrb[0].mxu0
        %v1545 = vadd.f32 0.0, %v1544
        %v1546 = vpop.f32.mrb[0].mxu0
        %v1547 = vadd.f32 0.0, %v1546
        %1548 = vmatprep.mubr.f32.mxu0 %v895
        %1549 = vmatmul.mubr.f32.gmra.mrb[0].mxu0 %v894
        %v1550 = vpop.f32.mrb[0].mxu0
        %v1551 = vadd.f32 0.0, %v1550
        %v1552 = vpop.f32.mrb[0].mxu0
        %v1553 = vadd.f32 0.0, %v1552
        %1554 = vmatprep.mubr.f32.mxu0 %v899
        %1555 = vmatmul.mubr.f32.gmra.mrb[0].mxu0 %v898
        %v1556 = vpop.f32.mrb[0].mxu0
        %v1557 = vadd.f32 0.0, %v1556
        %v1558 = vpop.f32.mrb[0].mxu0
        %v1559 = vadd.f32 0.0, %v1558
        %1560 = vmatprep.mubr.f32.mxu0 %v903
        %1561 = vmatmul.mubr.f32.gmra.mrb[0].mxu0 %v902
        %v1562 = vpop.f32.mrb[0].mxu0
        %v1563 = vadd.f32 0.0, %v1562
        %v1564 = vpop.f32.mrb[0].mxu0
        %v1565 = vadd.f32 0.0, %v1564
        %1566 = vmatprep.mubr.f32.mxu0 %v907
        %1567 = vmatmul.mubr.f32.gmra.mrb[0].mxu0 %v906
        %v1568 = vpop.f32.mrb[0].mxu0
        %v1569 = vadd.f32 0.0, %v1568
        %v1570 = vpop.f32.mrb[0].mxu0
        %v1571 = vadd.f32 0.0, %v1570
        %1572 = vmatprep.mubr.f32.mxu0 %v911
        %1573 = vmatmul.mubr.f32.gmra.mrb[0].mxu0 %v910
        %v1574 = vpop.f32.mrb[0].mxu0
        %v1575 = vadd.f32 0.0, %v1574
        %v1576 = vpop.f32.mrb[0].mxu0
        %v1577 = vadd.f32 0.0, %v1576
        %1578 = vmatprep.mubr.f32.mxu0 %v915
        %1579 = vmatmul.mubr.f32.gmra.mrb[0].mxu0 %v914
        %v1580 = vpop.f32.mrb[0].mxu0
        %v1581 = vadd.f32 0.0, %v1580
        %v1582 = vpop.f32.mrb[0].mxu0
        %v1583 = vadd.f32 0.0, %v1582
        %1584 = vmatprep.mubr.f32.mxu0 %v919
        %1585 = vmatmul.mubr.f32.gmra.mrb[0].mxu0 %v918
        %v1586 = vpop.f32.mrb[0].mxu0
        %v1587 = vadd.f32 0.0, %v1586
        %v1588 = vpop.f32.mrb[0].mxu0
        %v1589 = vadd.f32 0.0, %v1588
        %1590 = vmatprep.mubr.f32.mxu0 %v923
        %1591 = vmatmul.mubr.f32.gmra.mrb[0].mxu0 %v922
        %v1592 = vpop.f32.mrb[0].mxu0
        %v1593 = vadd.f32 0.0, %v1592
        %v1594 = vpop.f32.mrb[0].mxu0
        %v1595 = vadd.f32 0.0, %v1594
        %1596 = vmatprep.mubr.f32.mxu0 %v927
        %1597 = vmatmul.mubr.f32.gmra.mrb[0].mxu0 %v926
        %v1598 = vpop.f32.mrb[0].mxu0
        %v1599 = vadd.f32 0.0, %v1598
        %v1600 = vpop.f32.mrb[0].mxu0
        %v1601 = vadd.f32 0.0, %v1600
        %1602 = vmatprep.mubr.f32.mxu0 %v931
        %1603 = vmatmul.mubr.f32.gmra.mrb[0].mxu0 %v930
        %v1604 = vpop.f32.mrb[0].mxu0
        %v1605 = vadd.f32 0.0, %v1604
        %v1606 = vpop.f32.mrb[0].mxu0
        %v1607 = vadd.f32 0.0, %v1606
        %1608 = vmatprep.mubr.f32.mxu0 %v935
        %1609 = vmatmul.mubr.f32.gmra.mrb[0].mxu0 %v934
        %v1610 = vpop.f32.mrb[0].mxu0
        %v1611 = vadd.f32 0.0, %v1610
        %v1612 = vpop.f32.mrb[0].mxu0
        %v1613 = vadd.f32 0.0, %v1612
        %1614 = vmatprep.mubr.f32.mxu0 %v939
        %1615 = vmatmul.mubr.f32.gmra.mrb[0].mxu0 %v938
        %v1616 = vpop.f32.mrb[0].mxu0
        %v1617 = vadd.f32 0.0, %v1616
        %v1618 = vpop.f32.mrb[0].mxu0
        %v1619 = vadd.f32 0.0, %v1618
        %1620 = vmatprep.mubr.f32.mxu0 %v943
        %1621 = vmatmul.mubr.f32.gmra.mrb[0].mxu0 %v942
        %v1622 = vpop.f32.mrb[0].mxu0
        %v1623 = vadd.f32 0.0, %v1622
        %v1624 = vpop.f32.mrb[0].mxu0
        %v1625 = vadd.f32 0.0, %v1624
        %1626 = vmatprep.mubr.f32.mxu0 %v947
        %1627 = vmatmul.mubr.f32.gmra.mrb[0].mxu0 %v946
        %v1628 = vpop.f32.mrb[0].mxu0
        %v1629 = vadd.f32 0.0, %v1628
        %v1630 = vpop.f32.mrb[0].mxu0
        %v1631 = vadd.f32 0.0, %v1630
        %1632 = vmatprep.mubr.f32.mxu0 %v951
        %1633 = vmatmul.mubr.f32.gmra.mrb[0].mxu0 %v950
        %v1634 = vpop.f32.mrb[0].mxu0
        %v1635 = vadd.f32 0.0, %v1634
        %v1636 = vpop.f32.mrb[0].mxu0
        %v1637 = vadd.f32 0.0, %v1636
        %1638 = vmatprep.mubr.f32.mxu0 %v955
        %1639 = vmatmul.mubr.f32.gmra.mrb[0].mxu0 %v954
        %v1640 = vpop.f32.mrb[0].mxu0
        %v1641 = vadd.f32 0.0, %v1640
        %v1642 = vpop.f32.mrb[0].mxu0
        %v1643 = vadd.f32 0.0, %v1642
        %1644 = vmatprep.mubr.f32.mxu0 %v959
        %1645 = vmatmul.mubr.f32.gmra.mrb[0].mxu0 %v958
        %v1646 = vpop.f32.mrb[0].mxu0
        %v1647 = vadd.f32 0.0, %v1646
        %v1648 = vpop.f32.mrb[0].mxu0
        %v1649 = vadd.f32 0.0, %v1648
        %1650 = vmatprep.mubr.f32.mxu0 %v963
        %1651 = vmatmul.mubr.f32.gmra.mrb[0].mxu0 %v962
        %v1652 = vpop.f32.mrb[0].mxu0
        %v1653 = vadd.f32 0.0, %v1652
        %v1654 = vpop.f32.mrb[0].mxu0
        %v1655 = vadd.f32 0.0, %v1654
        %1656 = vmatprep.mubr.f32.mxu0 %v967
        %1657 = vmatmul.mubr.f32.gmra.mrb[0].mxu0 %v966
        %v1658 = vpop.f32.mrb[0].mxu0
        %v1659 = vadd.f32 0.0, %v1658
        %v1660 = vpop.f32.mrb[0].mxu0
        %v1661 = vadd.f32 0.0, %v1660
        %1662 = vmatprep.mubr.f32.mxu0 %v971
        %1663 = vmatmul.mubr.f32.gmra.mrb[0].mxu0 %v970
        %v1664 = vpop.f32.mrb[0].mxu0
        %v1665 = vadd.f32 0.0, %v1664
        %v1666 = vpop.f32.mrb[0].mxu0
        %v1667 = vadd.f32 0.0, %v1666
        %1668 = vmatprep.mubr.f32.mxu0 %v975
        %1669 = vmatmul.mubr.f32.gmra.mrb[0].mxu0 %v974
        %v1670 = vpop.f32.mrb[0].mxu0
        %v1671 = vadd.f32 0.0, %v1670
        %v1672 = vpop.f32.mrb[0].mxu0
        %v1673 = vadd.f32 0.0, %v1672
        %1674 = vmatprep.mubr.f32.mxu0 %v979
        %1675 = vmatmul.mubr.f32.gmra.mrb[0].mxu0 %v978
        %v1676 = vpop.f32.mrb[0].mxu0
        %v1677 = vadd.f32 0.0, %v1676
        %v1678 = vpop.f32.mrb[0].mxu0
        %v1679 = vadd.f32 0.0, %v1678
        %1680 = vmatprep.mubr.f32.mxu0 %v983
        %1681 = vmatmul.mubr.f32.gmra.mrb[0].mxu0 %v982
        %v1682 = vpop.f32.mrb[0].mxu0
        %v1683 = vadd.f32 0.0, %v1682
        %v1684 = vpop.f32.mrb[0].mxu0
        %v1685 = vadd.f32 0.0, %v1684
        %1686 = vmatprep.mubr.f32.mxu0 %v987
        %1687 = vmatmul.mubr.f32.gmra.mrb[0].mxu0 %v986
        %v1688 = vpop.f32.mrb[0].mxu0
        %v1689 = vadd.f32 0.0, %v1688
        %v1690 = vpop.f32.mrb[0].mxu0
        %v1691 = vadd.f32 0.0, %v1690
        %1692 = vmatprep.mubr.f32.mxu0 %v991
        %1693 = vmatmul.mubr.f32.gmra.mrb[0].mxu0 %v990
        %v1694 = vpop.f32.mrb[0].mxu0
        %v1695 = vadd.f32 0.0, %v1694
        %v1696 = vpop.f32.mrb[0].mxu0
        %v1697 = vadd.f32 0.0, %v1696
        %1698 = vdwg.mxu0
        %1699 = vmatprep.subr.mxu0 %v1123
        %1700 = vmatpush1.msra.mxu0 %v1122
        %1701 = vmatprep.subr.mxu0 %v1127
        %1702 = vmatpush1.msra.mxu0 %v1126
        %1703 = vmatprep.subr.mxu0 %v1131
        %1704 = vmatpush1.msra.mxu0 %v1130
        %1705 = vmatprep.subr.mxu0 %v1135
        %1706 = vmatpush1.msra.mxu0 %v1134
        %1707 = vmatprep.subr.mxu0 %v1139
        %1708 = vmatpush1.msra.mxu0 %v1138
        %1709 = vmatprep.subr.mxu0 %v1143
        %1710 = vmatpush1.msra.mxu0 %v1142
        %1711 = vmatprep.subr.mxu0 %v1147
        %1712 = vmatpush1.msra.mxu0 %v1146
        %1713 = vmatprep.subr.mxu0 %v1151
        %1714 = vmatpush1.msra.mxu0 %v1150
        %1715 = vmatprep.subr.mxu0 %v1155
        %1716 = vmatpush1.msra.mxu0 %v1154
        %1717 = vmatprep.subr.mxu0 %v1159
        %1718 = vmatpush1.msra.mxu0 %v1158
        %1719 = vmatprep.subr.mxu0 %v1163
        %1720 = vmatpush1.msra.mxu0 %v1162
        %1721 = vmatprep.subr.mxu0 %v1167
        %1722 = vmatpush1.msra.mxu0 %v1166
        %1723 = vmatprep.subr.mxu0 %v1171
        %1724 = vmatpush1.msra.mxu0 %v1170
        %1725 = vmatprep.subr.mxu0 %v1175
        %1726 = vmatpush1.msra.mxu0 %v1174
        %1727 = vmatprep.subr.mxu0 %v1179
        %1728 = vmatpush1.msra.mxu0 %v1178
        %1729 = vmatprep.subr.mxu0 %v1183
        %1730 = vmatpush1.msra.mxu0 %v1182
        %1731 = vmatprep.subr.mxu0 %v1187
        %1732 = vmatpush1.msra.mxu0 %v1186
        %1733 = vmatprep.subr.mxu0 %v1191
        %1734 = vmatpush1.msra.mxu0 %v1190
        %1735 = vmatprep.subr.mxu0 %v1195
        %1736 = vmatpush1.msra.mxu0 %v1194
        %1737 = vmatprep.subr.mxu0 %v1199
        %1738 = vmatpush1.msra.mxu0 %v1198
        %1739 = vmatprep.subr.mxu0 %v1203
        %1740 = vmatpush1.msra.mxu0 %v1202
        %1741 = vmatprep.subr.mxu0 %v1207
        %1742 = vmatpush1.msra.mxu0 %v1206
        %1743 = vmatprep.subr.mxu0 %v1211
        %1744 = vmatpush1.msra.mxu0 %v1210
        %1745 = vmatprep.subr.mxu0 %v1215
        %1746 = vmatpush1.msra.mxu0 %v1214
        %1747 = vmatprep.subr.mxu0 %v1219
        %1748 = vmatpush1.msra.mxu0 %v1218
        %1749 = vmatprep.subr.mxu0 %v1223
        %1750 = vmatpush1.msra.mxu0 %v1222
        %1751 = vmatprep.subr.mxu0 %v1227
        %1752 = vmatpush1.msra.mxu0 %v1226
        %1753 = vmatprep.subr.mxu0 %v1231
        %1754 = vmatpush1.msra.mxu0 %v1230
        %1755 = vmatprep.subr.mxu0 %v1235
        %1756 = vmatpush1.msra.mxu0 %v1234
        %1757 = vmatprep.subr.mxu0 %v1239
        %1758 = vmatpush1.msra.mxu0 %v1238
        %1759 = vmatprep.subr.mxu0 %v1243
        %1760 = vmatpush1.msra.mxu0 %v1242
        %1761 = vmatprep.subr.mxu0 %v1247
        %1762 = vmatpush1.msra.mxu0 %v1246
        %1763 = vmatprep.mubr.f32.mxu0 %v741
        %1764 = vmatmul.mubr.f32.gmra.mrb[0].mxu0 %v740
        %v1765 = vpop.f32.mrb[0].mxu0
        %v1766 = vadd.f32 %v1317, %v1765
        %v1767 = vpop.f32.mrb[0].mxu0
        %v1768 = vadd.f32 %v1319, %v1767
        %1769 = vmatprep.mubr.f32.mxu0 %v745
        %1770 = vmatmul.mubr.f32.gmra.mrb[0].mxu0 %v744
        %v1771 = vpop.f32.mrb[0].mxu0
        %v1772 = vadd.f32 %v1323, %v1771
        %v1773 = vpop.f32.mrb[0].mxu0
        %v1774 = vadd.f32 %v1325, %v1773
        %1775 = vmatprep.mubr.f32.mxu0 %v749
        %1776 = vmatmul.mubr.f32.gmra.mrb[0].mxu0 %v748
        %v1777 = vpop.f32.mrb[0].mxu0
        %v1778 = vadd.f32 %v1329, %v1777
        %v1779 = vpop.f32.mrb[0].mxu0
        %v1780 = vadd.f32 %v1331, %v1779
        %1781 = vmatprep.mubr.f32.mxu0 %v753
        %1782 = vmatmul.mubr.f32.gmra.mrb[0].mxu0 %v752
        %v1783 = vpop.f32.mrb[0].mxu0
        %v1784 = vadd.f32 %v1335, %v1783
        %v1785 = vpop.f32.mrb[0].mxu0
        %v1786 = vadd.f32 %v1337, %v1785
        %1787 = vmatprep.mubr.f32.mxu0 %v757
        %1788 = vmatmul.mubr.f32.gmra.mrb[0].mxu0 %v756
        %v1789 = vpop.f32.mrb[0].mxu0
        %v1790 = vadd.f32 %v1341, %v1789
        %v1791 = vpop.f32.mrb[0].mxu0
        %v1792 = vadd.f32 %v1343, %v1791
        %1793 = vmatprep.mubr.f32.mxu0 %v761
        %1794 = vmatmul.mubr.f32.gmra.mrb[0].mxu0 %v760
        %v1795 = vpop.f32.mrb[0].mxu0
        %v1796 = vadd.f32 %v1347, %v1795
        %v1797 = vpop.f32.mrb[0].mxu0
        %v1798 = vadd.f32 %v1349, %v1797
        %1799 = vmatprep.mubr.f32.mxu0 %v765
        %1800 = vmatmul.mubr.f32.gmra.mrb[0].mxu0 %v764
        %v1801 = vpop.f32.mrb[0].mxu0
        %v1802 = vadd.f32 %v1353, %v1801
        %v1803 = vpop.f32.mrb[0].mxu0
        %v1804 = vadd.f32 %v1355, %v1803
        %1805 = vmatprep.mubr.f32.mxu0 %v769
        %1806 = vmatmul.mubr.f32.gmra.mrb[0].mxu0 %v768
        %v1807 = vpop.f32.mrb[0].mxu0
        %v1808 = vadd.f32 %v1359, %v1807
        %v1809 = vpop.f32.mrb[0].mxu0
        %v1810 = vadd.f32 %v1361, %v1809
        %1811 = vmatprep.mubr.f32.mxu0 %v773
        %1812 = vmatmul.mubr.f32.gmra.mrb[0].mxu0 %v772
        %v1813 = vpop.f32.mrb[0].mxu0
        %v1814 = vadd.f32 %v1365, %v1813
        %v1815 = vpop.f32.mrb[0].mxu0
        %v1816 = vadd.f32 %v1367, %v1815
        %1817 = vmatprep.mubr.f32.mxu0 %v777
        %1818 = vmatmul.mubr.f32.gmra.mrb[0].mxu0 %v776
        %v1819 = vpop.f32.mrb[0].mxu0
        %v1820 = vadd.f32 %v1371, %v1819
        %v1821 = vpop.f32.mrb[0].mxu0
        %v1822 = vadd.f32 %v1373, %v1821
        %1823 = vmatprep.mubr.f32.mxu0 %v781
        %1824 = vmatmul.mubr.f32.gmra.mrb[0].mxu0 %v780
        %v1825 = vpop.f32.mrb[0].mxu0
        %v1826 = vadd.f32 %v1377, %v1825
        %v1827 = vpop.f32.mrb[0].mxu0
        %v1828 = vadd.f32 %v1379, %v1827
        %1829 = vmatprep.mubr.f32.mxu0 %v785
        %1830 = vmatmul.mubr.f32.gmra.mrb[0].mxu0 %v784
        %v1831 = vpop.f32.mrb[0].mxu0
        %v1832 = vadd.f32 %v1383, %v1831
        %v1833 = vpop.f32.mrb[0].mxu0
        %v1834 = vadd.f32 %v1385, %v1833
        %1835 = vmatprep.mubr.f32.mxu0 %v789
        %1836 = vmatmul.mubr.f32.gmra.mrb[0].mxu0 %v788
        %v1837 = vpop.f32.mrb[0].mxu0
        %v1838 = vadd.f32 %v1389, %v1837
        %v1839 = vpop.f32.mrb[0].mxu0
        %v1840 = vadd.f32 %v1391, %v1839
        %1841 = vmatprep.mubr.f32.mxu0 %v793
        %1842 = vmatmul.mubr.f32.gmra.mrb[0].mxu0 %v792
        %v1843 = vpop.f32.mrb[0].mxu0
        %v1844 = vadd.f32 %v1395, %v1843
        %v1845 = vpop.f32.mrb[0].mxu0
        %v1846 = vadd.f32 %v1397, %v1845
        %1847 = vmatprep.mubr.f32.mxu0 %v797
        %1848 = vmatmul.mubr.f32.gmra.mrb[0].mxu0 %v796
        %v1849 = vpop.f32.mrb[0].mxu0
        %v1850 = vadd.f32 %v1401, %v1849
        %v1851 = vpop.f32.mrb[0].mxu0
        %v1852 = vadd.f32 %v1403, %v1851
        %1853 = vmatprep.mubr.f32.mxu0 %v801
        %1854 = vmatmul.mubr.f32.gmra.mrb[0].mxu0 %v800
        %v1855 = vpop.f32.mrb[0].mxu0
        %v1856 = vadd.f32 %v1407, %v1855
        %v1857 = vpop.f32.mrb[0].mxu0
        %v1858 = vadd.f32 %v1409, %v1857
        %1859 = vmatprep.mubr.f32.mxu0 %v805
        %1860 = vmatmul.mubr.f32.gmra.mrb[0].mxu0 %v804
        %v1861 = vpop.f32.mrb[0].mxu0
        %v1862 = vadd.f32 %v1413, %v1861
        %v1863 = vpop.f32.mrb[0].mxu0
        %v1864 = vadd.f32 %v1415, %v1863
        %1865 = vmatprep.mubr.f32.mxu0 %v809
        %1866 = vmatmul.mubr.f32.gmra.mrb[0].mxu0 %v808
        %v1867 = vpop.f32.mrb[0].mxu0
        %v1868 = vadd.f32 %v1419, %v1867
        %v1869 = vpop.f32.mrb[0].mxu0
        %v1870 = vadd.f32 %v1421, %v1869
        %1871 = vmatprep.mubr.f32.mxu0 %v813
        %1872 = vmatmul.mubr.f32.gmra.mrb[0].mxu0 %v812
        %v1873 = vpop.f32.mrb[0].mxu0
        %v1874 = vadd.f32 %v1425, %v1873
        %v1875 = vpop.f32.mrb[0].mxu0
        %v1876 = vadd.f32 %v1427, %v1875
        %1877 = vmatprep.mubr.f32.mxu0 %v817
        %1878 = vmatmul.mubr.f32.gmra.mrb[0].mxu0 %v816
        %v1879 = vpop.f32.mrb[0].mxu0
        %v1880 = vadd.f32 %v1431, %v1879
        %v1881 = vpop.f32.mrb[0].mxu0
        %v1882 = vadd.f32 %v1433, %v1881
        %1883 = vmatprep.mubr.f32.mxu0 %v821
        %1884 = vmatmul.mubr.f32.gmra.mrb[0].mxu0 %v820
        %v1885 = vpop.f32.mrb[0].mxu0
        %v1886 = vadd.f32 %v1437, %v1885
        %v1887 = vpop.f32.mrb[0].mxu0
        %v1888 = vadd.f32 %v1439, %v1887
        %1889 = vmatprep.mubr.f32.mxu0 %v825
        %1890 = vmatmul.mubr.f32.gmra.mrb[0].mxu0 %v824
        %v1891 = vpop.f32.mrb[0].mxu0
        %v1892 = vadd.f32 %v1443, %v1891
        %v1893 = vpop.f32.mrb[0].mxu0
        %v1894 = vadd.f32 %v1445, %v1893
        %1895 = vmatprep.mubr.f32.mxu0 %v829
        %1896 = vmatmul.mubr.f32.gmra.mrb[0].mxu0 %v828
        %v1897 = vpop.f32.mrb[0].mxu0
        %v1898 = vadd.f32 %v1449, %v1897
        %v1899 = vpop.f32.mrb[0].mxu0
        %v1900 = vadd.f32 %v1451, %v1899
        %1901 = vmatprep.mubr.f32.mxu0 %v833
        %1902 = vmatmul.mubr.f32.gmra.mrb[0].mxu0 %v832
        %v1903 = vpop.f32.mrb[0].mxu0
        %v1904 = vadd.f32 %v1455, %v1903
        %v1905 = vpop.f32.mrb[0].mxu0
        %v1906 = vadd.f32 %v1457, %v1905
        %1907 = vmatprep.mubr.f32.mxu0 %v837
        %1908 = vmatmul.mubr.f32.gmra.mrb[0].mxu0 %v836
        %v1909 = vpop.f32.mrb[0].mxu0
        %v1910 = vadd.f32 %v1461, %v1909
        %v1911 = vpop.f32.mrb[0].mxu0
        %v1912 = vadd.f32 %v1463, %v1911
        %1913 = vmatprep.mubr.f32.mxu0 %v841
        %1914 = vmatmul.mubr.f32.gmra.mrb[0].mxu0 %v840
        %v1915 = vpop.f32.mrb[0].mxu0
        %v1916 = vadd.f32 %v1467, %v1915
        %v1917 = vpop.f32.mrb[0].mxu0
        %v1918 = vadd.f32 %v1469, %v1917
        %1919 = vmatprep.mubr.f32.mxu0 %v845
        %1920 = vmatmul.mubr.f32.gmra.mrb[0].mxu0 %v844
        %v1921 = vpop.f32.mrb[0].mxu0
        %v1922 = vadd.f32 %v1473, %v1921
        %v1923 = vpop.f32.mrb[0].mxu0
        %v1924 = vadd.f32 %v1475, %v1923
        %1925 = vmatprep.mubr.f32.mxu0 %v849
        %1926 = vmatmul.mubr.f32.gmra.mrb[0].mxu0 %v848
        %v1927 = vpop.f32.mrb[0].mxu0
        %v1928 = vadd.f32 %v1479, %v1927
        %v1929 = vpop.f32.mrb[0].mxu0
        %v1930 = vadd.f32 %v1481, %v1929
        %1931 = vmatprep.mubr.f32.mxu0 %v853
        %1932 = vmatmul.mubr.f32.gmra.mrb[0].mxu0 %v852
        %v1933 = vpop.f32.mrb[0].mxu0
        %v1934 = vadd.f32 %v1485, %v1933
        %v1935 = vpop.f32.mrb[0].mxu0
        %v1936 = vadd.f32 %v1487, %v1935
        %1937 = vmatprep.mubr.f32.mxu0 %v857
        %1938 = vmatmul.mubr.f32.gmra.mrb[0].mxu0 %v856
        %v1939 = vpop.f32.mrb[0].mxu0
        %v1940 = vadd.f32 %v1491, %v1939
        %v1941 = vpop.f32.mrb[0].mxu0
        %v1942 = vadd.f32 %v1493, %v1941
        %1943 = vmatprep.mubr.f32.mxu0 %v861
        %1944 = vmatmul.mubr.f32.gmra.mrb[0].mxu0 %v860
        %v1945 = vpop.f32.mrb[0].mxu0
        %v1946 = vadd.f32 %v1497, %v1945
        %v1947 = vpop.f32.mrb[0].mxu0
        %v1948 = vadd.f32 %v1499, %v1947
        %1949 = vmatprep.mubr.f32.mxu0 %v865
        %1950 = vmatmul.mubr.f32.gmra.mrb[0].mxu0 %v864
        %v1951 = vpop.f32.mrb[0].mxu0
        %v1952 = vadd.f32 %v1503, %v1951
        %v1953 = vpop.f32.mrb[0].mxu0
        %v1954 = vadd.f32 %v1505, %v1953
        %1955 = vmatprep.mubr.f32.mxu0 %v869
        %1956 = vmatmul.mubr.f32.gmra.mrb[0].mxu0 %v868
        %v1957 = vpop.f32.mrb[0].mxu0
        %v1958 = vadd.f32 %v1509, %v1957
        %v1959 = vpop.f32.mrb[0].mxu0
        %v1960 = vadd.f32 %v1511, %v1959
        %1961 = vmatprep.mubr.f32.mxu0 %v873
        %1962 = vmatmul.mubr.f32.gmra.mrb[0].mxu0 %v872
        %v1963 = vpop.f32.mrb[0].mxu0
        %v1964 = vadd.f32 %v1515, %v1963
        %v1965 = vpop.f32.mrb[0].mxu0
        %v1966 = vadd.f32 %v1517, %v1965
        %1967 = vmatprep.mubr.f32.mxu0 %v877
        %1968 = vmatmul.mubr.f32.gmra.mrb[0].mxu0 %v876
        %v1969 = vpop.f32.mrb[0].mxu0
        %v1970 = vadd.f32 %v1521, %v1969
        %v1971 = vpop.f32.mrb[0].mxu0
        %v1972 = vadd.f32 %v1523, %v1971
        %1973 = vmatprep.mubr.f32.mxu0 %v881
        %1974 = vmatmul.mubr.f32.gmra.mrb[0].mxu0 %v880
        %v1975 = vpop.f32.mrb[0].mxu0
        %v1976 = vadd.f32 %v1527, %v1975
        %v1977 = vpop.f32.mrb[0].mxu0
        %v1978 = vadd.f32 %v1529, %v1977
        %1979 = vmatprep.mubr.f32.mxu0 %v885
        %1980 = vmatmul.mubr.f32.gmra.mrb[0].mxu0 %v884
        %v1981 = vpop.f32.mrb[0].mxu0
        %v1982 = vadd.f32 %v1533, %v1981
        %v1983 = vpop.f32.mrb[0].mxu0
        %v1984 = vadd.f32 %v1535, %v1983
        %1985 = vmatprep.mubr.f32.mxu0 %v889
        %1986 = vmatmul.mubr.f32.gmra.mrb[0].mxu0 %v888
        %v1987 = vpop.f32.mrb[0].mxu0
        %v1988 = vadd.f32 %v1539, %v1987
        %v1989 = vpop.f32.mrb[0].mxu0
        %v1990 = vadd.f32 %v1541, %v1989
        %1991 = vmatprep.mubr.f32.mxu0 %v893
        %1992 = vmatmul.mubr.f32.gmra.mrb[0].mxu0 %v892
        %v1993 = vpop.f32.mrb[0].mxu0
        %v1994 = vadd.f32 %v1545, %v1993
        %v1995 = vpop.f32.mrb[0].mxu0
        %v1996 = vadd.f32 %v1547, %v1995
        %1997 = vmatprep.mubr.f32.mxu0 %v897
        %1998 = vmatmul.mubr.f32.gmra.mrb[0].mxu0 %v896
        %v1999 = vpop.f32.mrb[0].mxu0
        %v2000 = vadd.f32 %v1551, %v1999
        %v2001 = vpop.f32.mrb[0].mxu0
        %v2002 = vadd.f32 %v1553, %v2001
        %2003 = vmatprep.mubr.f32.mxu0 %v901
        %2004 = vmatmul.mubr.f32.gmra.mrb[0].mxu0 %v900
        %v2005 = vpop.f32.mrb[0].mxu0
        %v2006 = vadd.f32 %v1557, %v2005
        %v2007 = vpop.f32.mrb[0].mxu0
        %v2008 = vadd.f32 %v1559, %v2007
        %2009 = vmatprep.mubr.f32.mxu0 %v905
        %2010 = vmatmul.mubr.f32.gmra.mrb[0].mxu0 %v904
        %v2011 = vpop.f32.mrb[0].mxu0
        %v2012 = vadd.f32 %v1563, %v2011
        %v2013 = vpop.f32.mrb[0].mxu0
        %v2014 = vadd.f32 %v1565, %v2013
        %2015 = vmatprep.mubr.f32.mxu0 %v909
        %2016 = vmatmul.mubr.f32.gmra.mrb[0].mxu0 %v908
        %v2017 = vpop.f32.mrb[0].mxu0
        %v2018 = vadd.f32 %v1569, %v2017
        %v2019 = vpop.f32.mrb[0].mxu0
        %v2020 = vadd.f32 %v1571, %v2019
        %2021 = vmatprep.mubr.f32.mxu0 %v913
        %2022 = vmatmul.mubr.f32.gmra.mrb[0].mxu0 %v912
        %v2023 = vpop.f32.mrb[0].mxu0
        %v2024 = vadd.f32 %v1575, %v2023
        %v2025 = vpop.f32.mrb[0].mxu0
        %v2026 = vadd.f32 %v1577, %v2025
        %2027 = vmatprep.mubr.f32.mxu0 %v917
        %2028 = vmatmul.mubr.f32.gmra.mrb[0].mxu0 %v916
        %v2029 = vpop.f32.mrb[0].mxu0
        %v2030 = vadd.f32 %v1581, %v2029
        %v2031 = vpop.f32.mrb[0].mxu0
        %v2032 = vadd.f32 %v1583, %v2031
        %2033 = vmatprep.mubr.f32.mxu0 %v921
        %2034 = vmatmul.mubr.f32.gmra.mrb[0].mxu0 %v920
        %v2035 = vpop.f32.mrb[0].mxu0
        %v2036 = vadd.f32 %v1587, %v2035
        %v2037 = vpop.f32.mrb[0].mxu0
        %v2038 = vadd.f32 %v1589, %v2037
        %2039 = vmatprep.mubr.f32.mxu0 %v925
        %2040 = vmatmul.mubr.f32.gmra.mrb[0].mxu0 %v924
        %v2041 = vpop.f32.mrb[0].mxu0
        %v2042 = vadd.f32 %v1593, %v2041
        %v2043 = vpop.f32.mrb[0].mxu0
        %v2044 = vadd.f32 %v1595, %v2043
        %2045 = vmatprep.mubr.f32.mxu0 %v929
        %2046 = vmatmul.mubr.f32.gmra.mrb[0].mxu0 %v928
        %v2047 = vpop.f32.mrb[0].mxu0
        %v2048 = vadd.f32 %v1599, %v2047
        %v2049 = vpop.f32.mrb[0].mxu0
        %v2050 = vadd.f32 %v1601, %v2049
        %2051 = vmatprep.mubr.f32.mxu0 %v933
        %2052 = vmatmul.mubr.f32.gmra.mrb[0].mxu0 %v932
        %v2053 = vpop.f32.mrb[0].mxu0
        %v2054 = vadd.f32 %v1605, %v2053
        %v2055 = vpop.f32.mrb[0].mxu0
        %v2056 = vadd.f32 %v1607, %v2055
        %2057 = vmatprep.mubr.f32.mxu0 %v937
        %2058 = vmatmul.mubr.f32.gmra.mrb[0].mxu0 %v936
        %v2059 = vpop.f32.mrb[0].mxu0
        %v2060 = vadd.f32 %v1611, %v2059
        %v2061 = vpop.f32.mrb[0].mxu0
        %v2062 = vadd.f32 %v1613, %v2061
        %2063 = vmatprep.mubr.f32.mxu0 %v941
        %2064 = vmatmul.mubr.f32.gmra.mrb[0].mxu0 %v940
        %v2065 = vpop.f32.mrb[0].mxu0
        %v2066 = vadd.f32 %v1617, %v2065
        %v2067 = vpop.f32.mrb[0].mxu0
        %v2068 = vadd.f32 %v1619, %v2067
        %2069 = vmatprep.mubr.f32.mxu0 %v945
        %2070 = vmatmul.mubr.f32.gmra.mrb[0].mxu0 %v944
        %v2071 = vpop.f32.mrb[0].mxu0
        %v2072 = vadd.f32 %v1623, %v2071
        %v2073 = vpop.f32.mrb[0].mxu0
        %v2074 = vadd.f32 %v1625, %v2073
        %2075 = vmatprep.mubr.f32.mxu0 %v949
        %2076 = vmatmul.mubr.f32.gmra.mrb[0].mxu0 %v948
        %v2077 = vpop.f32.mrb[0].mxu0
        %v2078 = vadd.f32 %v1629, %v2077
        %v2079 = vpop.f32.mrb[0].mxu0
        %v2080 = vadd.f32 %v1631, %v2079
        %2081 = vmatprep.mubr.f32.mxu0 %v953
        %2082 = vmatmul.mubr.f32.gmra.mrb[0].mxu0 %v952
        %v2083 = vpop.f32.mrb[0].mxu0
        %v2084 = vadd.f32 %v1635, %v2083
        %v2085 = vpop.f32.mrb[0].mxu0
        %v2086 = vadd.f32 %v1637, %v2085
        %2087 = vmatprep.mubr.f32.mxu0 %v957
        %2088 = vmatmul.mubr.f32.gmra.mrb[0].mxu0 %v956
        %v2089 = vpop.f32.mrb[0].mxu0
        %v2090 = vadd.f32 %v1641, %v2089
        %v2091 = vpop.f32.mrb[0].mxu0
        %v2092 = vadd.f32 %v1643, %v2091
        %2093 = vmatprep.mubr.f32.mxu0 %v961
        %2094 = vmatmul.mubr.f32.gmra.mrb[0].mxu0 %v960
        %v2095 = vpop.f32.mrb[0].mxu0
        %v2096 = vadd.f32 %v1647, %v2095
        %v2097 = vpop.f32.mrb[0].mxu0
        %v2098 = vadd.f32 %v1649, %v2097
        %2099 = vmatprep.mubr.f32.mxu0 %v965
        %2100 = vmatmul.mubr.f32.gmra.mrb[0].mxu0 %v964
        %v2101 = vpop.f32.mrb[0].mxu0
        %v2102 = vadd.f32 %v1653, %v2101
        %v2103 = vpop.f32.mrb[0].mxu0
        %v2104 = vadd.f32 %v1655, %v2103
        %2105 = vmatprep.mubr.f32.mxu0 %v969
        %2106 = vmatmul.mubr.f32.gmra.mrb[0].mxu0 %v968
        %v2107 = vpop.f32.mrb[0].mxu0
        %v2108 = vadd.f32 %v1659, %v2107
        %v2109 = vpop.f32.mrb[0].mxu0
        %v2110 = vadd.f32 %v1661, %v2109
        %2111 = vmatprep.mubr.f32.mxu0 %v973
        %2112 = vmatmul.mubr.f32.gmra.mrb[0].mxu0 %v972
        %v2113 = vpop.f32.mrb[0].mxu0
        %v2114 = vadd.f32 %v1665, %v2113
        %v2115 = vpop.f32.mrb[0].mxu0
        %v2116 = vadd.f32 %v1667, %v2115
        %2117 = vmatprep.mubr.f32.mxu0 %v977
        %2118 = vmatmul.mubr.f32.gmra.mrb[0].mxu0 %v976
        %v2119 = vpop.f32.mrb[0].mxu0
        %v2120 = vadd.f32 %v1671, %v2119
        %v2121 = vpop.f32.mrb[0].mxu0
        %v2122 = vadd.f32 %v1673, %v2121
        %2123 = vmatprep.mubr.f32.mxu0 %v981
        %2124 = vmatmul.mubr.f32.gmra.mrb[0].mxu0 %v980
        %v2125 = vpop.f32.mrb[0].mxu0
        %v2126 = vadd.f32 %v1677, %v2125
        %v2127 = vpop.f32.mrb[0].mxu0
        %v2128 = vadd.f32 %v1679, %v2127
        %2129 = vmatprep.mubr.f32.mxu0 %v985
        %2130 = vmatmul.mubr.f32.gmra.mrb[0].mxu0 %v984
        %v2131 = vpop.f32.mrb[0].mxu0
        %v2132 = vadd.f32 %v1683, %v2131
        %v2133 = vpop.f32.mrb[0].mxu0
        %v2134 = vadd.f32 %v1685, %v2133
        %2135 = vmatprep.mubr.f32.mxu0 %v989
        %2136 = vmatmul.mubr.f32.gmra.mrb[0].mxu0 %v988
        %v2137 = vpop.f32.mrb[0].mxu0
        %v2138 = vadd.f32 %v1689, %v2137
        %v2139 = vpop.f32.mrb[0].mxu0
        %v2140 = vadd.f32 %v1691, %v2139
        %2141 = vmatprep.mubr.f32.mxu0 %v993
        %2142 = vmatmul.mubr.f32.gmra.mrb[0].mxu0 %v992
        %v2143 = vpop.f32.mrb[0].mxu0
        %v2144 = vadd.f32 %v1695, %v2143
        %v2145 = vpop.f32.mrb[0].mxu0
        %v2146 = vadd.f32 %v1697, %v2145
        %2147 = vdwg.mxu0
        %2148 = vmatprep.subr.mxu0 %v997
        %2149 = vmatpush1.msra.mxu0 %v996
        %2150 = vmatprep.subr.mxu0 %v1001
        %2151 = vmatpush1.msra.mxu0 %v1000
        %2152 = vmatprep.subr.mxu0 %v1005
        %2153 = vmatpush1.msra.mxu0 %v1004
        %2154 = vmatprep.subr.mxu0 %v1009
        %2155 = vmatpush1.msra.mxu0 %v1008
        %2156 = vmatprep.subr.mxu0 %v1013
        %2157 = vmatpush1.msra.mxu0 %v1012
        %2158 = vmatprep.subr.mxu0 %v1017
        %2159 = vmatpush1.msra.mxu0 %v1016
        %2160 = vmatprep.subr.mxu0 %v1021
        %2161 = vmatpush1.msra.mxu0 %v1020
        %2162 = vmatprep.subr.mxu0 %v1025
        %2163 = vmatpush1.msra.mxu0 %v1024
        %2164 = vmatprep.subr.mxu0 %v1029
        %2165 = vmatpush1.msra.mxu0 %v1028
        %2166 = vmatprep.subr.mxu0 %v1033
        %2167 = vmatpush1.msra.mxu0 %v1032
        %2168 = vmatprep.subr.mxu0 %v1037
        %2169 = vmatpush1.msra.mxu0 %v1036
        %2170 = vmatprep.subr.mxu0 %v1041
        %2171 = vmatpush1.msra.mxu0 %v1040
        %2172 = vmatprep.subr.mxu0 %v1045
        %2173 = vmatpush1.msra.mxu0 %v1044
        %2174 = vmatprep.subr.mxu0 %v1049
        %2175 = vmatpush1.msra.mxu0 %v1048
        %2176 = vmatprep.subr.mxu0 %v1053
        %2177 = vmatpush1.msra.mxu0 %v1052
        %2178 = vmatprep.subr.mxu0 %v1057
        %2179 = vmatpush1.msra.mxu0 %v1056
        %2180 = vmatprep.subr.mxu0 %v1061
        %2181 = vmatpush1.msra.mxu0 %v1060
        %2182 = vmatprep.subr.mxu0 %v1065
        %2183 = vmatpush1.msra.mxu0 %v1064
        %2184 = vmatprep.subr.mxu0 %v1069
        %2185 = vmatpush1.msra.mxu0 %v1068
        %2186 = vmatprep.subr.mxu0 %v1073
        %2187 = vmatpush1.msra.mxu0 %v1072
        %2188 = vmatprep.subr.mxu0 %v1077
        %2189 = vmatpush1.msra.mxu0 %v1076
        %2190 = vmatprep.subr.mxu0 %v1081
        %2191 = vmatpush1.msra.mxu0 %v1080
        %2192 = vmatprep.subr.mxu0 %v1085
        %2193 = vmatpush1.msra.mxu0 %v1084
        %2194 = vmatprep.subr.mxu0 %v1089
        %2195 = vmatpush1.msra.mxu0 %v1088
        %2196 = vmatprep.subr.mxu0 %v1093
        %2197 = vmatpush1.msra.mxu0 %v1092
        %2198 = vmatprep.subr.mxu0 %v1097
        %2199 = vmatpush1.msra.mxu0 %v1096
        %2200 = vmatprep.subr.mxu0 %v1101
        %2201 = vmatpush1.msra.mxu0 %v1100
        %2202 = vmatprep.subr.mxu0 %v1105
        %2203 = vmatpush1.msra.mxu0 %v1104
        %2204 = vmatprep.subr.mxu0 %v1109
        %2205 = vmatpush1.msra.mxu0 %v1108
        %2206 = vmatprep.subr.mxu0 %v1113
        %2207 = vmatpush1.msra.mxu0 %v1112
        %2208 = vmatprep.subr.mxu0 %v1117
        %2209 = vmatpush1.msra.mxu0 %v1116
        %2210 = vmatprep.subr.mxu0 %v1121
        %2211 = vmatpush1.msra.mxu0 %v1120
        %2212 = vmatprep.mubr.f32.mxu0 %v739
        %2213 = vmatmul.mubr.f32.gmra.mrb[0].mxu0 %v738
        %v2214 = vpop.f32.mrb[0].mxu0
        %v2215 = vadd.f32 0.0, %v2214
        %v2216 = vpop.f32.mrb[0].mxu0
        %v2217 = vadd.f32 0.0, %v2216
        %2218 = vmatprep.mubr.f32.mxu0 %v743
        %2219 = vmatmul.mubr.f32.gmra.mrb[0].mxu0 %v742
        %v2220 = vpop.f32.mrb[0].mxu0
        %v2221 = vadd.f32 0.0, %v2220
        %v2222 = vpop.f32.mrb[0].mxu0
        %v2223 = vadd.f32 0.0, %v2222
        %2224 = vmatprep.mubr.f32.mxu0 %v747
        %2225 = vmatmul.mubr.f32.gmra.mrb[0].mxu0 %v746
        %v2226 = vpop.f32.mrb[0].mxu0
        %v2227 = vadd.f32 0.0, %v2226
        %v2228 = vpop.f32.mrb[0].mxu0
        %v2229 = vadd.f32 0.0, %v2228
        %2230 = vmatprep.mubr.f32.mxu0 %v751
        %2231 = vmatmul.mubr.f32.gmra.mrb[0].mxu0 %v750
        %v2232 = vpop.f32.mrb[0].mxu0
        %v2233 = vadd.f32 0.0, %v2232
        %v2234 = vpop.f32.mrb[0].mxu0
        %v2235 = vadd.f32 0.0, %v2234
        %2236 = vmatprep.mubr.f32.mxu0 %v755
        %2237 = vmatmul.mubr.f32.gmra.mrb[0].mxu0 %v754
        %v2238 = vpop.f32.mrb[0].mxu0
        %v2239 = vadd.f32 0.0, %v2238
        %v2240 = vpop.f32.mrb[0].mxu0
        %v2241 = vadd.f32 0.0, %v2240
        %2242 = vmatprep.mubr.f32.mxu0 %v759
        %2243 = vmatmul.mubr.f32.gmra.mrb[0].mxu0 %v758
        %v2244 = vpop.f32.mrb[0].mxu0
        %v2245 = vadd.f32 0.0, %v2244
        %v2246 = vpop.f32.mrb[0].mxu0
        %v2247 = vadd.f32 0.0, %v2246
        %2248 = vmatprep.mubr.f32.mxu0 %v763
        %2249 = vmatmul.mubr.f32.gmra.mrb[0].mxu0 %v762
        %v2250 = vpop.f32.mrb[0].mxu0
        %v2251 = vadd.f32 0.0, %v2250
        %v2252 = vpop.f32.mrb[0].mxu0
        %v2253 = vadd.f32 0.0, %v2252
        %2254 = vmatprep.mubr.f32.mxu0 %v767
        %2255 = vmatmul.mubr.f32.gmra.mrb[0].mxu0 %v766
        %v2256 = vpop.f32.mrb[0].mxu0
        %v2257 = vadd.f32 0.0, %v2256
        %v2258 = vpop.f32.mrb[0].mxu0
        %v2259 = vadd.f32 0.0, %v2258
        %2260 = vmatprep.mubr.f32.mxu0 %v771
        %2261 = vmatmul.mubr.f32.gmra.mrb[0].mxu0 %v770
        %v2262 = vpop.f32.mrb[0].mxu0
        %v2263 = vadd.f32 0.0, %v2262
        %v2264 = vpop.f32.mrb[0].mxu0
        %v2265 = vadd.f32 0.0, %v2264
        %2266 = vmatprep.mubr.f32.mxu0 %v775
        %2267 = vmatmul.mubr.f32.gmra.mrb[0].mxu0 %v774
        %v2268 = vpop.f32.mrb[0].mxu0
        %v2269 = vadd.f32 0.0, %v2268
        %v2270 = vpop.f32.mrb[0].mxu0
        %v2271 = vadd.f32 0.0, %v2270
        %2272 = vmatprep.mubr.f32.mxu0 %v779
        %2273 = vmatmul.mubr.f32.gmra.mrb[0].mxu0 %v778
        %v2274 = vpop.f32.mrb[0].mxu0
        %v2275 = vadd.f32 0.0, %v2274
        %v2276 = vpop.f32.mrb[0].mxu0
        %v2277 = vadd.f32 0.0, %v2276
        %2278 = vmatprep.mubr.f32.mxu0 %v783
        %2279 = vmatmul.mubr.f32.gmra.mrb[0].mxu0 %v782
        %v2280 = vpop.f32.mrb[0].mxu0
        %v2281 = vadd.f32 0.0, %v2280
        %v2282 = vpop.f32.mrb[0].mxu0
        %v2283 = vadd.f32 0.0, %v2282
        %2284 = vmatprep.mubr.f32.mxu0 %v787
        %2285 = vmatmul.mubr.f32.gmra.mrb[0].mxu0 %v786
        %v2286 = vpop.f32.mrb[0].mxu0
        %v2287 = vadd.f32 0.0, %v2286
        %v2288 = vpop.f32.mrb[0].mxu0
        %v2289 = vadd.f32 0.0, %v2288
        %2290 = vmatprep.mubr.f32.mxu0 %v791
        %2291 = vmatmul.mubr.f32.gmra.mrb[0].mxu0 %v790
        %v2292 = vpop.f32.mrb[0].mxu0
        %v2293 = vadd.f32 0.0, %v2292
        %v2294 = vpop.f32.mrb[0].mxu0
        %v2295 = vadd.f32 0.0, %v2294
        %2296 = vmatprep.mubr.f32.mxu0 %v795
        %2297 = vmatmul.mubr.f32.gmra.mrb[0].mxu0 %v794
        %v2298 = vpop.f32.mrb[0].mxu0
        %v2299 = vadd.f32 0.0, %v2298
        %v2300 = vpop.f32.mrb[0].mxu0
        %v2301 = vadd.f32 0.0, %v2300
        %2302 = vmatprep.mubr.f32.mxu0 %v799
        %2303 = vmatmul.mubr.f32.gmra.mrb[0].mxu0 %v798
        %v2304 = vpop.f32.mrb[0].mxu0
        %v2305 = vadd.f32 0.0, %v2304
        %v2306 = vpop.f32.mrb[0].mxu0
        %v2307 = vadd.f32 0.0, %v2306
        %2308 = vmatprep.mubr.f32.mxu0 %v803
        %2309 = vmatmul.mubr.f32.gmra.mrb[0].mxu0 %v802
        %v2310 = vpop.f32.mrb[0].mxu0
        %v2311 = vadd.f32 0.0, %v2310
        %v2312 = vpop.f32.mrb[0].mxu0
        %v2313 = vadd.f32 0.0, %v2312
        %2314 = vmatprep.mubr.f32.mxu0 %v807
        %2315 = vmatmul.mubr.f32.gmra.mrb[0].mxu0 %v806
        %v2316 = vpop.f32.mrb[0].mxu0
        %v2317 = vadd.f32 0.0, %v2316
        %v2318 = vpop.f32.mrb[0].mxu0
        %v2319 = vadd.f32 0.0, %v2318
        %2320 = vmatprep.mubr.f32.mxu0 %v811
        %2321 = vmatmul.mubr.f32.gmra.mrb[0].mxu0 %v810
        %v2322 = vpop.f32.mrb[0].mxu0
        %v2323 = vadd.f32 0.0, %v2322
        %v2324 = vpop.f32.mrb[0].mxu0
        %v2325 = vadd.f32 0.0, %v2324
        %2326 = vmatprep.mubr.f32.mxu0 %v815
        %2327 = vmatmul.mubr.f32.gmra.mrb[0].mxu0 %v814
        %v2328 = vpop.f32.mrb[0].mxu0
        %v2329 = vadd.f32 0.0, %v2328
        %v2330 = vpop.f32.mrb[0].mxu0
        %v2331 = vadd.f32 0.0, %v2330
        %2332 = vmatprep.mubr.f32.mxu0 %v819
        %2333 = vmatmul.mubr.f32.gmra.mrb[0].mxu0 %v818
        %v2334 = vpop.f32.mrb[0].mxu0
        %v2335 = vadd.f32 0.0, %v2334
        %v2336 = vpop.f32.mrb[0].mxu0
        %v2337 = vadd.f32 0.0, %v2336
        %2338 = vmatprep.mubr.f32.mxu0 %v823
        %2339 = vmatmul.mubr.f32.gmra.mrb[0].mxu0 %v822
        %v2340 = vpop.f32.mrb[0].mxu0
        %v2341 = vadd.f32 0.0, %v2340
        %v2342 = vpop.f32.mrb[0].mxu0
        %v2343 = vadd.f32 0.0, %v2342
        %2344 = vmatprep.mubr.f32.mxu0 %v827
        %2345 = vmatmul.mubr.f32.gmra.mrb[0].mxu0 %v826
        %v2346 = vpop.f32.mrb[0].mxu0
        %v2347 = vadd.f32 0.0, %v2346
        %v2348 = vpop.f32.mrb[0].mxu0
        %v2349 = vadd.f32 0.0, %v2348
        %2350 = vmatprep.mubr.f32.mxu0 %v831
        %2351 = vmatmul.mubr.f32.gmra.mrb[0].mxu0 %v830
        %v2352 = vpop.f32.mrb[0].mxu0
        %v2353 = vadd.f32 0.0, %v2352
        %v2354 = vpop.f32.mrb[0].mxu0
        %v2355 = vadd.f32 0.0, %v2354
        %2356 = vmatprep.mubr.f32.mxu0 %v835
        %2357 = vmatmul.mubr.f32.gmra.mrb[0].mxu0 %v834
        %v2358 = vpop.f32.mrb[0].mxu0
        %v2359 = vadd.f32 0.0, %v2358
        %v2360 = vpop.f32.mrb[0].mxu0
        %v2361 = vadd.f32 0.0, %v2360
        %2362 = vmatprep.mubr.f32.mxu0 %v839
        %2363 = vmatmul.mubr.f32.gmra.mrb[0].mxu0 %v838
        %v2364 = vpop.f32.mrb[0].mxu0
        %v2365 = vadd.f32 0.0, %v2364
        %v2366 = vpop.f32.mrb[0].mxu0
        %v2367 = vadd.f32 0.0, %v2366
        %2368 = vmatprep.mubr.f32.mxu0 %v843
        %2369 = vmatmul.mubr.f32.gmra.mrb[0].mxu0 %v842
        %v2370 = vpop.f32.mrb[0].mxu0
        %v2371 = vadd.f32 0.0, %v2370
        %v2372 = vpop.f32.mrb[0].mxu0
        %v2373 = vadd.f32 0.0, %v2372
        %2374 = vmatprep.mubr.f32.mxu0 %v847
        %2375 = vmatmul.mubr.f32.gmra.mrb[0].mxu0 %v846
        %v2376 = vpop.f32.mrb[0].mxu0
        %v2377 = vadd.f32 0.0, %v2376
        %v2378 = vpop.f32.mrb[0].mxu0
        %v2379 = vadd.f32 0.0, %v2378
        %2380 = vmatprep.mubr.f32.mxu0 %v851
        %2381 = vmatmul.mubr.f32.gmra.mrb[0].mxu0 %v850
        %v2382 = vpop.f32.mrb[0].mxu0
        %v2383 = vadd.f32 0.0, %v2382
        %v2384 = vpop.f32.mrb[0].mxu0
        %v2385 = vadd.f32 0.0, %v2384
        %2386 = vmatprep.mubr.f32.mxu0 %v855
        %2387 = vmatmul.mubr.f32.gmra.mrb[0].mxu0 %v854
        %v2388 = vpop.f32.mrb[0].mxu0
        %v2389 = vadd.f32 0.0, %v2388
        %v2390 = vpop.f32.mrb[0].mxu0
        %v2391 = vadd.f32 0.0, %v2390
        %2392 = vmatprep.mubr.f32.mxu0 %v859
        %2393 = vmatmul.mubr.f32.gmra.mrb[0].mxu0 %v858
        %v2394 = vpop.f32.mrb[0].mxu0
        %v2395 = vadd.f32 0.0, %v2394
        %v2396 = vpop.f32.mrb[0].mxu0
        %v2397 = vadd.f32 0.0, %v2396
        %2398 = vmatprep.mubr.f32.mxu0 %v863
        %2399 = vmatmul.mubr.f32.gmra.mrb[0].mxu0 %v862
        %v2400 = vpop.f32.mrb[0].mxu0
        %v2401 = vadd.f32 0.0, %v2400
        %v2402 = vpop.f32.mrb[0].mxu0
        %v2403 = vadd.f32 0.0, %v2402
        %2404 = vmatprep.mubr.f32.mxu0 %v867
        %2405 = vmatmul.mubr.f32.gmra.mrb[0].mxu0 %v866
        %v2406 = vpop.f32.mrb[0].mxu0
        %v2407 = vadd.f32 0.0, %v2406
        %v2408 = vpop.f32.mrb[0].mxu0
        %v2409 = vadd.f32 0.0, %v2408
        %2410 = vmatprep.mubr.f32.mxu0 %v871
        %2411 = vmatmul.mubr.f32.gmra.mrb[0].mxu0 %v870
        %v2412 = vpop.f32.mrb[0].mxu0
        %v2413 = vadd.f32 0.0, %v2412
        %v2414 = vpop.f32.mrb[0].mxu0
        %v2415 = vadd.f32 0.0, %v2414
        %2416 = vmatprep.mubr.f32.mxu0 %v875
        %2417 = vmatmul.mubr.f32.gmra.mrb[0].mxu0 %v874
        %v2418 = vpop.f32.mrb[0].mxu0
        %v2419 = vadd.f32 0.0, %v2418
        %v2420 = vpop.f32.mrb[0].mxu0
        %v2421 = vadd.f32 0.0, %v2420
        %2422 = vmatprep.mubr.f32.mxu0 %v879
        %2423 = vmatmul.mubr.f32.gmra.mrb[0].mxu0 %v878
        %v2424 = vpop.f32.mrb[0].mxu0
        %v2425 = vadd.f32 0.0, %v2424
        %v2426 = vpop.f32.mrb[0].mxu0
        %v2427 = vadd.f32 0.0, %v2426
        %2428 = vmatprep.mubr.f32.mxu0 %v883
        %2429 = vmatmul.mubr.f32.gmra.mrb[0].mxu0 %v882
        %v2430 = vpop.f32.mrb[0].mxu0
        %v2431 = vadd.f32 0.0, %v2430
        %v2432 = vpop.f32.mrb[0].mxu0
        %v2433 = vadd.f32 0.0, %v2432
        %2434 = vmatprep.mubr.f32.mxu0 %v887
        %2435 = vmatmul.mubr.f32.gmra.mrb[0].mxu0 %v886
        %v2436 = vpop.f32.mrb[0].mxu0
        %v2437 = vadd.f32 0.0, %v2436
        %v2438 = vpop.f32.mrb[0].mxu0
        %v2439 = vadd.f32 0.0, %v2438
        %2440 = vmatprep.mubr.f32.mxu0 %v891
        %2441 = vmatmul.mubr.f32.gmra.mrb[0].mxu0 %v890
        %v2442 = vpop.f32.mrb[0].mxu0
        %v2443 = vadd.f32 0.0, %v2442
        %v2444 = vpop.f32.mrb[0].mxu0
        %v2445 = vadd.f32 0.0, %v2444
        %2446 = vmatprep.mubr.f32.mxu0 %v895
        %2447 = vmatmul.mubr.f32.gmra.mrb[0].mxu0 %v894
        %v2448 = vpop.f32.mrb[0].mxu0
        %v2449 = vadd.f32 0.0, %v2448
        %v2450 = vpop.f32.mrb[0].mxu0
        %v2451 = vadd.f32 0.0, %v2450
        %2452 = vmatprep.mubr.f32.mxu0 %v899
        %2453 = vmatmul.mubr.f32.gmra.mrb[0].mxu0 %v898
        %v2454 = vpop.f32.mrb[0].mxu0
        %v2455 = vadd.f32 0.0, %v2454
        %v2456 = vpop.f32.mrb[0].mxu0
        %v2457 = vadd.f32 0.0, %v2456
        %2458 = vmatprep.mubr.f32.mxu0 %v903
        %2459 = vmatmul.mubr.f32.gmra.mrb[0].mxu0 %v902
        %v2460 = vpop.f32.mrb[0].mxu0
        %v2461 = vadd.f32 0.0, %v2460
        %v2462 = vpop.f32.mrb[0].mxu0
        %v2463 = vadd.f32 0.0, %v2462
        %2464 = vmatprep.mubr.f32.mxu0 %v907
        %2465 = vmatmul.mubr.f32.gmra.mrb[0].mxu0 %v906
        %v2466 = vpop.f32.mrb[0].mxu0
        %v2467 = vadd.f32 0.0, %v2466
        %v2468 = vpop.f32.mrb[0].mxu0
        %v2469 = vadd.f32 0.0, %v2468
        %2470 = vmatprep.mubr.f32.mxu0 %v911
        %2471 = vmatmul.mubr.f32.gmra.mrb[0].mxu0 %v910
        %v2472 = vpop.f32.mrb[0].mxu0
        %v2473 = vadd.f32 0.0, %v2472
        %v2474 = vpop.f32.mrb[0].mxu0
        %v2475 = vadd.f32 0.0, %v2474
        %2476 = vmatprep.mubr.f32.mxu0 %v915
        %2477 = vmatmul.mubr.f32.gmra.mrb[0].mxu0 %v914
        %v2478 = vpop.f32.mrb[0].mxu0
        %v2479 = vadd.f32 0.0, %v2478
        %v2480 = vpop.f32.mrb[0].mxu0
        %v2481 = vadd.f32 0.0, %v2480
        %2482 = vmatprep.mubr.f32.mxu0 %v919
        %2483 = vmatmul.mubr.f32.gmra.mrb[0].mxu0 %v918
        %v2484 = vpop.f32.mrb[0].mxu0
        %v2485 = vadd.f32 0.0, %v2484
        %v2486 = vpop.f32.mrb[0].mxu0
        %v2487 = vadd.f32 0.0, %v2486
        %2488 = vmatprep.mubr.f32.mxu0 %v923
        %2489 = vmatmul.mubr.f32.gmra.mrb[0].mxu0 %v922
        %v2490 = vpop.f32.mrb[0].mxu0
        %v2491 = vadd.f32 0.0, %v2490
        %v2492 = vpop.f32.mrb[0].mxu0
        %v2493 = vadd.f32 0.0, %v2492
        %2494 = vmatprep.mubr.f32.mxu0 %v927
        %2495 = vmatmul.mubr.f32.gmra.mrb[0].mxu0 %v926
        %v2496 = vpop.f32.mrb[0].mxu0
        %v2497 = vadd.f32 0.0, %v2496
        %v2498 = vpop.f32.mrb[0].mxu0
        %v2499 = vadd.f32 0.0, %v2498
        %2500 = vmatprep.mubr.f32.mxu0 %v931
        %2501 = vmatmul.mubr.f32.gmra.mrb[0].mxu0 %v930
        %v2502 = vpop.f32.mrb[0].mxu0
        %v2503 = vadd.f32 0.0, %v2502
        %v2504 = vpop.f32.mrb[0].mxu0
        %v2505 = vadd.f32 0.0, %v2504
        %2506 = vmatprep.mubr.f32.mxu0 %v935
        %2507 = vmatmul.mubr.f32.gmra.mrb[0].mxu0 %v934
        %v2508 = vpop.f32.mrb[0].mxu0
        %v2509 = vadd.f32 0.0, %v2508
        %v2510 = vpop.f32.mrb[0].mxu0
        %v2511 = vadd.f32 0.0, %v2510
        %2512 = vmatprep.mubr.f32.mxu0 %v939
        %2513 = vmatmul.mubr.f32.gmra.mrb[0].mxu0 %v938
        %v2514 = vpop.f32.mrb[0].mxu0
        %v2515 = vadd.f32 0.0, %v2514
        %v2516 = vpop.f32.mrb[0].mxu0
        %v2517 = vadd.f32 0.0, %v2516
        %2518 = vmatprep.mubr.f32.mxu0 %v943
        %2519 = vmatmul.mubr.f32.gmra.mrb[0].mxu0 %v942
        %v2520 = vpop.f32.mrb[0].mxu0
        %v2521 = vadd.f32 0.0, %v2520
        %v2522 = vpop.f32.mrb[0].mxu0
        %v2523 = vadd.f32 0.0, %v2522
        %2524 = vmatprep.mubr.f32.mxu0 %v947
        %2525 = vmatmul.mubr.f32.gmra.mrb[0].mxu0 %v946
        %v2526 = vpop.f32.mrb[0].mxu0
        %v2527 = vadd.f32 0.0, %v2526
        %v2528 = vpop.f32.mrb[0].mxu0
        %v2529 = vadd.f32 0.0, %v2528
        %2530 = vmatprep.mubr.f32.mxu0 %v951
        %2531 = vmatmul.mubr.f32.gmra.mrb[0].mxu0 %v950
        %v2532 = vpop.f32.mrb[0].mxu0
        %v2533 = vadd.f32 0.0, %v2532
        %v2534 = vpop.f32.mrb[0].mxu0
        %v2535 = vadd.f32 0.0, %v2534
        %2536 = vmatprep.mubr.f32.mxu0 %v955
        %2537 = vmatmul.mubr.f32.gmra.mrb[0].mxu0 %v954
        %v2538 = vpop.f32.mrb[0].mxu0
        %v2539 = vadd.f32 0.0, %v2538
        %v2540 = vpop.f32.mrb[0].mxu0
        %v2541 = vadd.f32 0.0, %v2540
        %2542 = vmatprep.mubr.f32.mxu0 %v959
        %2543 = vmatmul.mubr.f32.gmra.mrb[0].mxu0 %v958
        %v2544 = vpop.f32.mrb[0].mxu0
        %v2545 = vadd.f32 0.0, %v2544
        %v2546 = vpop.f32.mrb[0].mxu0
        %v2547 = vadd.f32 0.0, %v2546
        %2548 = vmatprep.mubr.f32.mxu0 %v963
        %2549 = vmatmul.mubr.f32.gmra.mrb[0].mxu0 %v962
        %v2550 = vpop.f32.mrb[0].mxu0
        %v2551 = vadd.f32 0.0, %v2550
        %v2552 = vpop.f32.mrb[0].mxu0
        %v2553 = vadd.f32 0.0, %v2552
        %2554 = vmatprep.mubr.f32.mxu0 %v967
        %2555 = vmatmul.mubr.f32.gmra.mrb[0].mxu0 %v966
        %v2556 = vpop.f32.mrb[0].mxu0
        %v2557 = vadd.f32 0.0, %v2556
        %v2558 = vpop.f32.mrb[0].mxu0
        %v2559 = vadd.f32 0.0, %v2558
        %2560 = vmatprep.mubr.f32.mxu0 %v971
        %2561 = vmatmul.mubr.f32.gmra.mrb[0].mxu0 %v970
        %v2562 = vpop.f32.mrb[0].mxu0
        %v2563 = vadd.f32 0.0, %v2562
        %v2564 = vpop.f32.mrb[0].mxu0
        %v2565 = vadd.f32 0.0, %v2564
        %2566 = vmatprep.mubr.f32.mxu0 %v975
        %2567 = vmatmul.mubr.f32.gmra.mrb[0].mxu0 %v974
        %v2568 = vpop.f32.mrb[0].mxu0
        %v2569 = vadd.f32 0.0, %v2568
        %v2570 = vpop.f32.mrb[0].mxu0
        %v2571 = vadd.f32 0.0, %v2570
        %2572 = vmatprep.mubr.f32.mxu0 %v979
        %2573 = vmatmul.mubr.f32.gmra.mrb[0].mxu0 %v978
        %v2574 = vpop.f32.mrb[0].mxu0
        %v2575 = vadd.f32 0.0, %v2574
        %v2576 = vpop.f32.mrb[0].mxu0
        %v2577 = vadd.f32 0.0, %v2576
        %2578 = vmatprep.mubr.f32.mxu0 %v983
        %2579 = vmatmul.mubr.f32.gmra.mrb[0].mxu0 %v982
        %v2580 = vpop.f32.mrb[0].mxu0
        %v2581 = vadd.f32 0.0, %v2580
        %v2582 = vpop.f32.mrb[0].mxu0
        %v2583 = vadd.f32 0.0, %v2582
        %2584 = vmatprep.mubr.f32.mxu0 %v987
        %2585 = vmatmul.mubr.f32.gmra.mrb[0].mxu0 %v986
        %v2586 = vpop.f32.mrb[0].mxu0
        %v2587 = vadd.f32 0.0, %v2586
        %v2588 = vpop.f32.mrb[0].mxu0
        %v2589 = vadd.f32 0.0, %v2588
        %2590 = vmatprep.mubr.f32.mxu0 %v991
        %2591 = vmatmul.mubr.f32.gmra.mrb[0].mxu0 %v990
        %v2592 = vpop.f32.mrb[0].mxu0
        %v2593 = vadd.f32 0.0, %v2592
        %v2594 = vpop.f32.mrb[0].mxu0
        %v2595 = vadd.f32 0.0, %v2594
        %2596 = vdwg.mxu0
        %2597 = vmatprep.subr.mxu0 %v1125
        %2598 = vmatpush1.msra.mxu0 %v1124
        %2599 = vmatprep.subr.mxu0 %v1129
        %2600 = vmatpush1.msra.mxu0 %v1128
        %2601 = vmatprep.subr.mxu0 %v1133
        %2602 = vmatpush1.msra.mxu0 %v1132
        %2603 = vmatprep.subr.mxu0 %v1137
        %2604 = vmatpush1.msra.mxu0 %v1136
        %2605 = vmatprep.subr.mxu0 %v1141
        %2606 = vmatpush1.msra.mxu0 %v1140
        %2607 = vmatprep.subr.mxu0 %v1145
        %2608 = vmatpush1.msra.mxu0 %v1144
        %2609 = vmatprep.subr.mxu0 %v1149
        %2610 = vmatpush1.msra.mxu0 %v1148
        %2611 = vmatprep.subr.mxu0 %v1153
        %2612 = vmatpush1.msra.mxu0 %v1152
        %2613 = vmatprep.subr.mxu0 %v1157
        %2614 = vmatpush1.msra.mxu0 %v1156
        %2615 = vmatprep.subr.mxu0 %v1161
        %2616 = vmatpush1.msra.mxu0 %v1160
        %2617 = vmatprep.subr.mxu0 %v1165
        %2618 = vmatpush1.msra.mxu0 %v1164
        %2619 = vmatprep.subr.mxu0 %v1169
        %2620 = vmatpush1.msra.mxu0 %v1168
        %2621 = vmatprep.subr.mxu0 %v1173
        %2622 = vmatpush1.msra.mxu0 %v1172
        %2623 = vmatprep.subr.mxu0 %v1177
        %2624 = vmatpush1.msra.mxu0 %v1176
        %2625 = vmatprep.subr.mxu0 %v1181
        %2626 = vmatpush1.msra.mxu0 %v1180
        %2627 = vmatprep.subr.mxu0 %v1185
        %2628 = vmatpush1.msra.mxu0 %v1184
        %2629 = vmatprep.subr.mxu0 %v1189
        %2630 = vmatpush1.msra.mxu0 %v1188
        %2631 = vmatprep.subr.mxu0 %v1193
        %2632 = vmatpush1.msra.mxu0 %v1192
        %2633 = vmatprep.subr.mxu0 %v1197
        %2634 = vmatpush1.msra.mxu0 %v1196
        %2635 = vmatprep.subr.mxu0 %v1201
        %2636 = vmatpush1.msra.mxu0 %v1200
        %2637 = vmatprep.subr.mxu0 %v1205
        %2638 = vmatpush1.msra.mxu0 %v1204
        %2639 = vmatprep.subr.mxu0 %v1209
        %2640 = vmatpush1.msra.mxu0 %v1208
        %2641 = vmatprep.subr.mxu0 %v1213
        %2642 = vmatpush1.msra.mxu0 %v1212
        %2643 = vmatprep.subr.mxu0 %v1217
        %2644 = vmatpush1.msra.mxu0 %v1216
        %2645 = vmatprep.subr.mxu0 %v1221
        %2646 = vmatpush1.msra.mxu0 %v1220
        %2647 = vmatprep.subr.mxu0 %v1225
        %2648 = vmatpush1.msra.mxu0 %v1224
        %2649 = vmatprep.subr.mxu0 %v1229
        %2650 = vmatpush1.msra.mxu0 %v1228
        %2651 = vmatprep.subr.mxu0 %v1233
        %2652 = vmatpush1.msra.mxu0 %v1232
        %2653 = vmatprep.subr.mxu0 %v1237
        %2654 = vmatpush1.msra.mxu0 %v1236
        %2655 = vmatprep.subr.mxu0 %v1241
        %2656 = vmatpush1.msra.mxu0 %v1240
        %2657 = vmatprep.subr.mxu0 %v1245
        %2658 = vmatpush1.msra.mxu0 %v1244
        %2659 = vmatprep.subr.mxu0 %v1249
        %2660 = vmatpush1.msra.mxu0 %v1248
        %2661 = vmatprep.mubr.f32.mxu0 %v741
        %2662 = vmatmul.mubr.f32.gmra.mrb[0].mxu0 %v740
        %v2663 = vpop.f32.mrb[0].mxu0
        %v2664 = vadd.f32 %v2215, %v2663
        %v2665 = vpop.f32.mrb[0].mxu0
        %v2666 = vadd.f32 %v2217, %v2665
        %2667 = vmatprep.mubr.f32.mxu0 %v745
        %2668 = vmatmul.mubr.f32.gmra.mrb[0].mxu0 %v744
        %v2669 = vpop.f32.mrb[0].mxu0
        %v2670 = vadd.f32 %v2221, %v2669
        %v2671 = vpop.f32.mrb[0].mxu0
        %v2672 = vadd.f32 %v2223, %v2671
        %2673 = vmatprep.mubr.f32.mxu0 %v749
        %2674 = vmatmul.mubr.f32.gmra.mrb[0].mxu0 %v748
        %v2675 = vpop.f32.mrb[0].mxu0
        %v2676 = vadd.f32 %v2227, %v2675
        %v2677 = vpop.f32.mrb[0].mxu0
        %v2678 = vadd.f32 %v2229, %v2677
        %2679 = vmatprep.mubr.f32.mxu0 %v753
        %2680 = vmatmul.mubr.f32.gmra.mrb[0].mxu0 %v752
        %v2681 = vpop.f32.mrb[0].mxu0
        %v2682 = vadd.f32 %v2233, %v2681
        %v2683 = vpop.f32.mrb[0].mxu0
        %v2684 = vadd.f32 %v2235, %v2683
        %2685 = vmatprep.mubr.f32.mxu0 %v757
        %2686 = vmatmul.mubr.f32.gmra.mrb[0].mxu0 %v756
        %v2687 = vpop.f32.mrb[0].mxu0
        %v2688 = vadd.f32 %v2239, %v2687
        %v2689 = vpop.f32.mrb[0].mxu0
        %v2690 = vadd.f32 %v2241, %v2689
        %2691 = vmatprep.mubr.f32.mxu0 %v761
        %2692 = vmatmul.mubr.f32.gmra.mrb[0].mxu0 %v760
        %v2693 = vpop.f32.mrb[0].mxu0
        %v2694 = vadd.f32 %v2245, %v2693
        %v2695 = vpop.f32.mrb[0].mxu0
        %v2696 = vadd.f32 %v2247, %v2695
        %2697 = vmatprep.mubr.f32.mxu0 %v765
        %2698 = vmatmul.mubr.f32.gmra.mrb[0].mxu0 %v764
        %v2699 = vpop.f32.mrb[0].mxu0
        %v2700 = vadd.f32 %v2251, %v2699
        %v2701 = vpop.f32.mrb[0].mxu0
        %v2702 = vadd.f32 %v2253, %v2701
        %2703 = vmatprep.mubr.f32.mxu0 %v769
        %2704 = vmatmul.mubr.f32.gmra.mrb[0].mxu0 %v768
        %v2705 = vpop.f32.mrb[0].mxu0
        %v2706 = vadd.f32 %v2257, %v2705
        %v2707 = vpop.f32.mrb[0].mxu0
        %v2708 = vadd.f32 %v2259, %v2707
        %2709 = vmatprep.mubr.f32.mxu0 %v773
        %2710 = vmatmul.mubr.f32.gmra.mrb[0].mxu0 %v772
        %v2711 = vpop.f32.mrb[0].mxu0
        %v2712 = vadd.f32 %v2263, %v2711
        %v2713 = vpop.f32.mrb[0].mxu0
        %v2714 = vadd.f32 %v2265, %v2713
        %2715 = vmatprep.mubr.f32.mxu0 %v777
        %2716 = vmatmul.mubr.f32.gmra.mrb[0].mxu0 %v776
        %v2717 = vpop.f32.mrb[0].mxu0
        %v2718 = vadd.f32 %v2269, %v2717
        %v2719 = vpop.f32.mrb[0].mxu0
        %v2720 = vadd.f32 %v2271, %v2719
        %2721 = vmatprep.mubr.f32.mxu0 %v781
        %2722 = vmatmul.mubr.f32.gmra.mrb[0].mxu0 %v780
        %v2723 = vpop.f32.mrb[0].mxu0
        %v2724 = vadd.f32 %v2275, %v2723
        %v2725 = vpop.f32.mrb[0].mxu0
        %v2726 = vadd.f32 %v2277, %v2725
        %2727 = vmatprep.mubr.f32.mxu0 %v785
        %2728 = vmatmul.mubr.f32.gmra.mrb[0].mxu0 %v784
        %v2729 = vpop.f32.mrb[0].mxu0
        %v2730 = vadd.f32 %v2281, %v2729
        %v2731 = vpop.f32.mrb[0].mxu0
        %v2732 = vadd.f32 %v2283, %v2731
        %2733 = vmatprep.mubr.f32.mxu0 %v789
        %2734 = vmatmul.mubr.f32.gmra.mrb[0].mxu0 %v788
        %v2735 = vpop.f32.mrb[0].mxu0
        %v2736 = vadd.f32 %v2287, %v2735
        %v2737 = vpop.f32.mrb[0].mxu0
        %v2738 = vadd.f32 %v2289, %v2737
        %2739 = vmatprep.mubr.f32.mxu0 %v793
        %2740 = vmatmul.mubr.f32.gmra.mrb[0].mxu0 %v792
        %v2741 = vpop.f32.mrb[0].mxu0
        %v2742 = vadd.f32 %v2293, %v2741
        %v2743 = vpop.f32.mrb[0].mxu0
        %v2744 = vadd.f32 %v2295, %v2743
        %2745 = vmatprep.mubr.f32.mxu0 %v797
        %2746 = vmatmul.mubr.f32.gmra.mrb[0].mxu0 %v796
        %v2747 = vpop.f32.mrb[0].mxu0
        %v2748 = vadd.f32 %v2299, %v2747
        %v2749 = vpop.f32.mrb[0].mxu0
        %v2750 = vadd.f32 %v2301, %v2749
        %2751 = vmatprep.mubr.f32.mxu0 %v801
        %2752 = vmatmul.mubr.f32.gmra.mrb[0].mxu0 %v800
        %v2753 = vpop.f32.mrb[0].mxu0
        %v2754 = vadd.f32 %v2305, %v2753
        %v2755 = vpop.f32.mrb[0].mxu0
        %v2756 = vadd.f32 %v2307, %v2755
        %2757 = vmatprep.mubr.f32.mxu0 %v805
        %2758 = vmatmul.mubr.f32.gmra.mrb[0].mxu0 %v804
        %v2759 = vpop.f32.mrb[0].mxu0
        %v2760 = vadd.f32 %v2311, %v2759
        %v2761 = vpop.f32.mrb[0].mxu0
        %v2762 = vadd.f32 %v2313, %v2761
        %2763 = vmatprep.mubr.f32.mxu0 %v809
        %2764 = vmatmul.mubr.f32.gmra.mrb[0].mxu0 %v808
        %v2765 = vpop.f32.mrb[0].mxu0
        %v2766 = vadd.f32 %v2317, %v2765
        %v2767 = vpop.f32.mrb[0].mxu0
        %v2768 = vadd.f32 %v2319, %v2767
        %2769 = vmatprep.mubr.f32.mxu0 %v813
        %2770 = vmatmul.mubr.f32.gmra.mrb[0].mxu0 %v812
        %v2771 = vpop.f32.mrb[0].mxu0
        %v2772 = vadd.f32 %v2323, %v2771
        %v2773 = vpop.f32.mrb[0].mxu0
        %v2774 = vadd.f32 %v2325, %v2773
        %2775 = vmatprep.mubr.f32.mxu0 %v817
        %2776 = vmatmul.mubr.f32.gmra.mrb[0].mxu0 %v816
        %v2777 = vpop.f32.mrb[0].mxu0
        %v2778 = vadd.f32 %v2329, %v2777
        %v2779 = vpop.f32.mrb[0].mxu0
        %v2780 = vadd.f32 %v2331, %v2779
        %2781 = vmatprep.mubr.f32.mxu0 %v821
        %2782 = vmatmul.mubr.f32.gmra.mrb[0].mxu0 %v820
        %v2783 = vpop.f32.mrb[0].mxu0
        %v2784 = vadd.f32 %v2335, %v2783
        %v2785 = vpop.f32.mrb[0].mxu0
        %v2786 = vadd.f32 %v2337, %v2785
        %2787 = vmatprep.mubr.f32.mxu0 %v825
        %2788 = vmatmul.mubr.f32.gmra.mrb[0].mxu0 %v824
        %v2789 = vpop.f32.mrb[0].mxu0
        %v2790 = vadd.f32 %v2341, %v2789
        %v2791 = vpop.f32.mrb[0].mxu0
        %v2792 = vadd.f32 %v2343, %v2791
        %2793 = vmatprep.mubr.f32.mxu0 %v829
        %2794 = vmatmul.mubr.f32.gmra.mrb[0].mxu0 %v828
        %v2795 = vpop.f32.mrb[0].mxu0
        %v2796 = vadd.f32 %v2347, %v2795
        %v2797 = vpop.f32.mrb[0].mxu0
        %v2798 = vadd.f32 %v2349, %v2797
        %2799 = vmatprep.mubr.f32.mxu0 %v833
        %2800 = vmatmul.mubr.f32.gmra.mrb[0].mxu0 %v832
        %v2801 = vpop.f32.mrb[0].mxu0
        %v2802 = vadd.f32 %v2353, %v2801
        %v2803 = vpop.f32.mrb[0].mxu0
        %v2804 = vadd.f32 %v2355, %v2803
        %2805 = vmatprep.mubr.f32.mxu0 %v837
        %2806 = vmatmul.mubr.f32.gmra.mrb[0].mxu0 %v836
        %v2807 = vpop.f32.mrb[0].mxu0
        %v2808 = vadd.f32 %v2359, %v2807
        %v2809 = vpop.f32.mrb[0].mxu0
        %v2810 = vadd.f32 %v2361, %v2809
        %2811 = vmatprep.mubr.f32.mxu0 %v841
        %2812 = vmatmul.mubr.f32.gmra.mrb[0].mxu0 %v840
        %v2813 = vpop.f32.mrb[0].mxu0
        %v2814 = vadd.f32 %v2365, %v2813
        %v2815 = vpop.f32.mrb[0].mxu0
        %v2816 = vadd.f32 %v2367, %v2815
        %2817 = vmatprep.mubr.f32.mxu0 %v845
        %2818 = vmatmul.mubr.f32.gmra.mrb[0].mxu0 %v844
        %v2819 = vpop.f32.mrb[0].mxu0
        %v2820 = vadd.f32 %v2371, %v2819
        %v2821 = vpop.f32.mrb[0].mxu0
        %v2822 = vadd.f32 %v2373, %v2821
        %2823 = vmatprep.mubr.f32.mxu0 %v849
        %2824 = vmatmul.mubr.f32.gmra.mrb[0].mxu0 %v848
        %v2825 = vpop.f32.mrb[0].mxu0
        %v2826 = vadd.f32 %v2377, %v2825
        %v2827 = vpop.f32.mrb[0].mxu0
        %v2828 = vadd.f32 %v2379, %v2827
        %2829 = vmatprep.mubr.f32.mxu0 %v853
        %2830 = vmatmul.mubr.f32.gmra.mrb[0].mxu0 %v852
        %v2831 = vpop.f32.mrb[0].mxu0
        %v2832 = vadd.f32 %v2383, %v2831
        %v2833 = vpop.f32.mrb[0].mxu0
        %v2834 = vadd.f32 %v2385, %v2833
        %2835 = vmatprep.mubr.f32.mxu0 %v857
        %2836 = vmatmul.mubr.f32.gmra.mrb[0].mxu0 %v856
        %v2837 = vpop.f32.mrb[0].mxu0
        %v2838 = vadd.f32 %v2389, %v2837
        %v2839 = vpop.f32.mrb[0].mxu0
        %v2840 = vadd.f32 %v2391, %v2839
        %2841 = vmatprep.mubr.f32.mxu0 %v861
        %2842 = vmatmul.mubr.f32.gmra.mrb[0].mxu0 %v860
        %v2843 = vpop.f32.mrb[0].mxu0
        %v2844 = vadd.f32 %v2395, %v2843
        %v2845 = vpop.f32.mrb[0].mxu0
        %v2846 = vadd.f32 %v2397, %v2845
        %2847 = vmatprep.mubr.f32.mxu0 %v865
        %2848 = vmatmul.mubr.f32.gmra.mrb[0].mxu0 %v864
        %v2849 = vpop.f32.mrb[0].mxu0
        %v2850 = vadd.f32 %v2401, %v2849
        %v2851 = vpop.f32.mrb[0].mxu0
        %v2852 = vadd.f32 %v2403, %v2851
        %2853 = vmatprep.mubr.f32.mxu0 %v869
        %2854 = vmatmul.mubr.f32.gmra.mrb[0].mxu0 %v868
        %v2855 = vpop.f32.mrb[0].mxu0
        %v2856 = vadd.f32 %v2407, %v2855
        %v2857 = vpop.f32.mrb[0].mxu0
        %v2858 = vadd.f32 %v2409, %v2857
        %2859 = vmatprep.mubr.f32.mxu0 %v873
        %2860 = vmatmul.mubr.f32.gmra.mrb[0].mxu0 %v872
        %v2861 = vpop.f32.mrb[0].mxu0
        %v2862 = vadd.f32 %v2413, %v2861
        %v2863 = vpop.f32.mrb[0].mxu0
        %v2864 = vadd.f32 %v2415, %v2863
        %2865 = vmatprep.mubr.f32.mxu0 %v877
        %2866 = vmatmul.mubr.f32.gmra.mrb[0].mxu0 %v876
        %v2867 = vpop.f32.mrb[0].mxu0
        %v2868 = vadd.f32 %v2419, %v2867
        %v2869 = vpop.f32.mrb[0].mxu0
        %v2870 = vadd.f32 %v2421, %v2869
        %2871 = vmatprep.mubr.f32.mxu0 %v881
        %2872 = vmatmul.mubr.f32.gmra.mrb[0].mxu0 %v880
        %v2873 = vpop.f32.mrb[0].mxu0
        %v2874 = vadd.f32 %v2425, %v2873
        %v2875 = vpop.f32.mrb[0].mxu0
        %v2876 = vadd.f32 %v2427, %v2875
        %2877 = vmatprep.mubr.f32.mxu0 %v885
        %2878 = vmatmul.mubr.f32.gmra.mrb[0].mxu0 %v884
        %v2879 = vpop.f32.mrb[0].mxu0
        %v2880 = vadd.f32 %v2431, %v2879
        %v2881 = vpop.f32.mrb[0].mxu0
        %v2882 = vadd.f32 %v2433, %v2881
        %2883 = vmatprep.mubr.f32.mxu0 %v889
        %2884 = vmatmul.mubr.f32.gmra.mrb[0].mxu0 %v888
        %v2885 = vpop.f32.mrb[0].mxu0
        %v2886 = vadd.f32 %v2437, %v2885
        %v2887 = vpop.f32.mrb[0].mxu0
        %v2888 = vadd.f32 %v2439, %v2887
        %2889 = vmatprep.mubr.f32.mxu0 %v893
        %2890 = vmatmul.mubr.f32.gmra.mrb[0].mxu0 %v892
        %v2891 = vpop.f32.mrb[0].mxu0
        %v2892 = vadd.f32 %v2443, %v2891
        %v2893 = vpop.f32.mrb[0].mxu0
        %v2894 = vadd.f32 %v2445, %v2893
        %2895 = vmatprep.mubr.f32.mxu0 %v897
        %2896 = vmatmul.mubr.f32.gmra.mrb[0].mxu0 %v896
        %v2897 = vpop.f32.mrb[0].mxu0
        %v2898 = vadd.f32 %v2449, %v2897
        %v2899 = vpop.f32.mrb[0].mxu0
        %v2900 = vadd.f32 %v2451, %v2899
        %2901 = vmatprep.mubr.f32.mxu0 %v901
        %2902 = vmatmul.mubr.f32.gmra.mrb[0].mxu0 %v900
        %v2903 = vpop.f32.mrb[0].mxu0
        %v2904 = vadd.f32 %v2455, %v2903
        %v2905 = vpop.f32.mrb[0].mxu0
        %v2906 = vadd.f32 %v2457, %v2905
        %2907 = vmatprep.mubr.f32.mxu0 %v905
        %2908 = vmatmul.mubr.f32.gmra.mrb[0].mxu0 %v904
        %v2909 = vpop.f32.mrb[0].mxu0
        %v2910 = vadd.f32 %v2461, %v2909
        %v2911 = vpop.f32.mrb[0].mxu0
        %v2912 = vadd.f32 %v2463, %v2911
        %2913 = vmatprep.mubr.f32.mxu0 %v909
        %2914 = vmatmul.mubr.f32.gmra.mrb[0].mxu0 %v908
        %v2915 = vpop.f32.mrb[0].mxu0
        %v2916 = vadd.f32 %v2467, %v2915
        %v2917 = vpop.f32.mrb[0].mxu0
        %v2918 = vadd.f32 %v2469, %v2917
        %2919 = vmatprep.mubr.f32.mxu0 %v913
        %2920 = vmatmul.mubr.f32.gmra.mrb[0].mxu0 %v912
        %v2921 = vpop.f32.mrb[0].mxu0
        %v2922 = vadd.f32 %v2473, %v2921
        %v2923 = vpop.f32.mrb[0].mxu0
        %v2924 = vadd.f32 %v2475, %v2923
        %2925 = vmatprep.mubr.f32.mxu0 %v917
        %2926 = vmatmul.mubr.f32.gmra.mrb[0].mxu0 %v916
        %v2927 = vpop.f32.mrb[0].mxu0
        %v2928 = vadd.f32 %v2479, %v2927
        %v2929 = vpop.f32.mrb[0].mxu0
        %v2930 = vadd.f32 %v2481, %v2929
        %2931 = vmatprep.mubr.f32.mxu0 %v921
        %2932 = vmatmul.mubr.f32.gmra.mrb[0].mxu0 %v920
        %v2933 = vpop.f32.mrb[0].mxu0
        %v2934 = vadd.f32 %v2485, %v2933
        %v2935 = vpop.f32.mrb[0].mxu0
        %v2936 = vadd.f32 %v2487, %v2935
        %2937 = vmatprep.mubr.f32.mxu0 %v925
        %2938 = vmatmul.mubr.f32.gmra.mrb[0].mxu0 %v924
        %v2939 = vpop.f32.mrb[0].mxu0
        %v2940 = vadd.f32 %v2491, %v2939
        %v2941 = vpop.f32.mrb[0].mxu0
        %v2942 = vadd.f32 %v2493, %v2941
        %2943 = vmatprep.mubr.f32.mxu0 %v929
        %2944 = vmatmul.mubr.f32.gmra.mrb[0].mxu0 %v928
        %v2945 = vpop.f32.mrb[0].mxu0
        %v2946 = vadd.f32 %v2497, %v2945
        %v2947 = vpop.f32.mrb[0].mxu0
        %v2948 = vadd.f32 %v2499, %v2947
        %2949 = vmatprep.mubr.f32.mxu0 %v933
        %2950 = vmatmul.mubr.f32.gmra.mrb[0].mxu0 %v932
        %v2951 = vpop.f32.mrb[0].mxu0
        %v2952 = vadd.f32 %v2503, %v2951
        %v2953 = vpop.f32.mrb[0].mxu0
        %v2954 = vadd.f32 %v2505, %v2953
        %2955 = vmatprep.mubr.f32.mxu0 %v937
        %2956 = vmatmul.mubr.f32.gmra.mrb[0].mxu0 %v936
        %v2957 = vpop.f32.mrb[0].mxu0
        %v2958 = vadd.f32 %v2509, %v2957
        %v2959 = vpop.f32.mrb[0].mxu0
        %v2960 = vadd.f32 %v2511, %v2959
        %2961 = vmatprep.mubr.f32.mxu0 %v941
        %2962 = vmatmul.mubr.f32.gmra.mrb[0].mxu0 %v940
        %v2963 = vpop.f32.mrb[0].mxu0
        %v2964 = vadd.f32 %v2515, %v2963
        %v2965 = vpop.f32.mrb[0].mxu0
        %v2966 = vadd.f32 %v2517, %v2965
        %2967 = vmatprep.mubr.f32.mxu0 %v945
        %2968 = vmatmul.mubr.f32.gmra.mrb[0].mxu0 %v944
        %v2969 = vpop.f32.mrb[0].mxu0
        %v2970 = vadd.f32 %v2521, %v2969
        %v2971 = vpop.f32.mrb[0].mxu0
        %v2972 = vadd.f32 %v2523, %v2971
        %2973 = vmatprep.mubr.f32.mxu0 %v949
        %2974 = vmatmul.mubr.f32.gmra.mrb[0].mxu0 %v948
        %v2975 = vpop.f32.mrb[0].mxu0
        %v2976 = vadd.f32 %v2527, %v2975
        %v2977 = vpop.f32.mrb[0].mxu0
        %v2978 = vadd.f32 %v2529, %v2977
        %2979 = vmatprep.mubr.f32.mxu0 %v953
        %2980 = vmatmul.mubr.f32.gmra.mrb[0].mxu0 %v952
        %v2981 = vpop.f32.mrb[0].mxu0
        %v2982 = vadd.f32 %v2533, %v2981
        %v2983 = vpop.f32.mrb[0].mxu0
        %v2984 = vadd.f32 %v2535, %v2983
        %2985 = vmatprep.mubr.f32.mxu0 %v957
        %2986 = vmatmul.mubr.f32.gmra.mrb[0].mxu0 %v956
        %v2987 = vpop.f32.mrb[0].mxu0
        %v2988 = vadd.f32 %v2539, %v2987
        %v2989 = vpop.f32.mrb[0].mxu0
        %v2990 = vadd.f32 %v2541, %v2989
        %2991 = vmatprep.mubr.f32.mxu0 %v961
        %2992 = vmatmul.mubr.f32.gmra.mrb[0].mxu0 %v960
        %v2993 = vpop.f32.mrb[0].mxu0
        %v2994 = vadd.f32 %v2545, %v2993
        %v2995 = vpop.f32.mrb[0].mxu0
        %v2996 = vadd.f32 %v2547, %v2995
        %2997 = vmatprep.mubr.f32.mxu0 %v965
        %2998 = vmatmul.mubr.f32.gmra.mrb[0].mxu0 %v964
        %v2999 = vpop.f32.mrb[0].mxu0
        %v3000 = vadd.f32 %v2551, %v2999
        %v3001 = vpop.f32.mrb[0].mxu0
        %v3002 = vadd.f32 %v2553, %v3001
        %3003 = vmatprep.mubr.f32.mxu0 %v969
        %3004 = vmatmul.mubr.f32.gmra.mrb[0].mxu0 %v968
        %v3005 = vpop.f32.mrb[0].mxu0
        %v3006 = vadd.f32 %v2557, %v3005
        %v3007 = vpop.f32.mrb[0].mxu0
        %v3008 = vadd.f32 %v2559, %v3007
        %3009 = vmatprep.mubr.f32.mxu0 %v973
        %3010 = vmatmul.mubr.f32.gmra.mrb[0].mxu0 %v972
        %v3011 = vpop.f32.mrb[0].mxu0
        %v3012 = vadd.f32 %v2563, %v3011
        %v3013 = vpop.f32.mrb[0].mxu0
        %v3014 = vadd.f32 %v2565, %v3013
        %3015 = vmatprep.mubr.f32.mxu0 %v977
        %3016 = vmatmul.mubr.f32.gmra.mrb[0].mxu0 %v976
        %v3017 = vpop.f32.mrb[0].mxu0
        %v3018 = vadd.f32 %v2569, %v3017
        %v3019 = vpop.f32.mrb[0].mxu0
        %v3020 = vadd.f32 %v2571, %v3019
        %3021 = vmatprep.mubr.f32.mxu0 %v981
        %3022 = vmatmul.mubr.f32.gmra.mrb[0].mxu0 %v980
        %v3023 = vpop.f32.mrb[0].mxu0
        %v3024 = vadd.f32 %v2575, %v3023
        %v3025 = vpop.f32.mrb[0].mxu0
        %v3026 = vadd.f32 %v2577, %v3025
        %3027 = vmatprep.mubr.f32.mxu0 %v985
        %3028 = vmatmul.mubr.f32.gmra.mrb[0].mxu0 %v984
        %v3029 = vpop.f32.mrb[0].mxu0
        %v3030 = vadd.f32 %v2581, %v3029
        %v3031 = vpop.f32.mrb[0].mxu0
        %v3032 = vadd.f32 %v2583, %v3031
        %3033 = vmatprep.mubr.f32.mxu0 %v989
        %3034 = vmatmul.mubr.f32.gmra.mrb[0].mxu0 %v988
        %v3035 = vpop.f32.mrb[0].mxu0
        %v3036 = vadd.f32 %v2587, %v3035
        %v3037 = vpop.f32.mrb[0].mxu0
        %v3038 = vadd.f32 %v2589, %v3037
        %3039 = vmatprep.mubr.f32.mxu0 %v993
        %3040 = vmatmul.mubr.f32.gmra.mrb[0].mxu0 %v992
        %v3041 = vpop.f32.mrb[0].mxu0
        %v3042 = vadd.f32 %v2593, %v3041
        %v3043 = vpop.f32.mrb[0].mxu0
        %v3044 = vadd.f32 %v2595, %v3043
        %3045 = vdwg.mxu0
        %v3046 = vadd.f32 %v482, %v1766
        %v3047 = vadd.f32 %v483, %v1768
        %v3048 = vadd.f32 %v484, %v2664
        %v3049 = vadd.f32 %v485, %v2666
        %v3050 = vadd.f32 %v486, %v1772
        %v3051 = vadd.f32 %v487, %v1774
        %v3052 = vadd.f32 %v488, %v2670
        %v3053 = vadd.f32 %v489, %v2672
        %v3054 = vadd.f32 %v490, %v1778
        %v3055 = vadd.f32 %v491, %v1780
        %v3056 = vadd.f32 %v492, %v2676
        %v3057 = vadd.f32 %v493, %v2678
        %v3058 = vadd.f32 %v494, %v1784
        %v3059 = vadd.f32 %v495, %v1786
        %v3060 = vadd.f32 %v496, %v2682
        %v3061 = vadd.f32 %v497, %v2684
        %v3062 = vadd.f32 %v498, %v1790
        %v3063 = vadd.f32 %v499, %v1792
        %v3064 = vadd.f32 %v500, %v2688
        %v3065 = vadd.f32 %v501, %v2690
        %v3066 = vadd.f32 %v502, %v1796
        %v3067 = vadd.f32 %v503, %v1798
        %v3068 = vadd.f32 %v504, %v2694
        %v3069 = vadd.f32 %v505, %v2696
        %v3070 = vadd.f32 %v506, %v1802
        %v3071 = vadd.f32 %v507, %v1804
        %v3072 = vadd.f32 %v508, %v2700
        %v3073 = vadd.f32 %v509, %v2702
        %v3074 = vadd.f32 %v510, %v1808
        %v3075 = vadd.f32 %v511, %v1810
        %v3076 = vadd.f32 %v512, %v2706
        %v3077 = vadd.f32 %v513, %v2708
        %v3078 = vadd.f32 %v514, %v1814
        %v3079 = vadd.f32 %v515, %v1816
        %v3080 = vadd.f32 %v516, %v2712
        %v3081 = vadd.f32 %v517, %v2714
        %v3082 = vadd.f32 %v518, %v1820
        %v3083 = vadd.f32 %v519, %v1822
        %v3084 = vadd.f32 %v520, %v2718
        %v3085 = vadd.f32 %v521, %v2720
        %v3086 = vadd.f32 %v522, %v1826
        %v3087 = vadd.f32 %v523, %v1828
        %v3088 = vadd.f32 %v524, %v2724
        %v3089 = vadd.f32 %v525, %v2726
        %v3090 = vadd.f32 %v526, %v1832
        %v3091 = vadd.f32 %v527, %v1834
        %v3092 = vadd.f32 %v528, %v2730
        %v3093 = vadd.f32 %v529, %v2732
        %v3094 = vadd.f32 %v530, %v1838
        %v3095 = vadd.f32 %v531, %v1840
        %v3096 = vadd.f32 %v532, %v2736
        %v3097 = vadd.f32 %v533, %v2738
        %v3098 = vadd.f32 %v534, %v1844
        %v3099 = vadd.f32 %v535, %v1846
        %v3100 = vadd.f32 %v536, %v2742
        %v3101 = vadd.f32 %v537, %v2744
        %v3102 = vadd.f32 %v538, %v1850
        %v3103 = vadd.f32 %v539, %v1852
        %v3104 = vadd.f32 %v540, %v2748
        %v3105 = vadd.f32 %v541, %v2750
        %v3106 = vadd.f32 %v542, %v1856
        %v3107 = vadd.f32 %v543, %v1858
        %v3108 = vadd.f32 %v544, %v2754
        %v3109 = vadd.f32 %v545, %v2756
        %v3110 = vadd.f32 %v546, %v1862
        %v3111 = vadd.f32 %v547, %v1864
        %v3112 = vadd.f32 %v548, %v2760
        %v3113 = vadd.f32 %v549, %v2762
        %v3114 = vadd.f32 %v550, %v1868
        %v3115 = vadd.f32 %v551, %v1870
        %v3116 = vadd.f32 %v552, %v2766
        %v3117 = vadd.f32 %v553, %v2768
        %v3118 = vadd.f32 %v554, %v1874
        %v3119 = vadd.f32 %v555, %v1876
        %v3120 = vadd.f32 %v556, %v2772
        %v3121 = vadd.f32 %v557, %v2774
        %v3122 = vadd.f32 %v558, %v1880
        %v3123 = vadd.f32 %v559, %v1882
        %v3124 = vadd.f32 %v560, %v2778
        %v3125 = vadd.f32 %v561, %v2780
        %v3126 = vadd.f32 %v562, %v1886
        %v3127 = vadd.f32 %v563, %v1888
        %v3128 = vadd.f32 %v564, %v2784
        %v3129 = vadd.f32 %v565, %v2786
        %v3130 = vadd.f32 %v566, %v1892
        %v3131 = vadd.f32 %v567, %v1894
        %v3132 = vadd.f32 %v568, %v2790
        %v3133 = vadd.f32 %v569, %v2792
        %v3134 = vadd.f32 %v570, %v1898
        %v3135 = vadd.f32 %v571, %v1900
        %v3136 = vadd.f32 %v572, %v2796
        %v3137 = vadd.f32 %v573, %v2798
        %v3138 = vadd.f32 %v574, %v1904
        %v3139 = vadd.f32 %v575, %v1906
        %v3140 = vadd.f32 %v576, %v2802
        %v3141 = vadd.f32 %v577, %v2804
        %v3142 = vadd.f32 %v578, %v1910
        %v3143 = vadd.f32 %v579, %v1912
        %v3144 = vadd.f32 %v580, %v2808
        %v3145 = vadd.f32 %v581, %v2810
        %v3146 = vadd.f32 %v582, %v1916
        %v3147 = vadd.f32 %v583, %v1918
        %v3148 = vadd.f32 %v584, %v2814
        %v3149 = vadd.f32 %v585, %v2816
        %v3150 = vadd.f32 %v586, %v1922
        %v3151 = vadd.f32 %v587, %v1924
        %v3152 = vadd.f32 %v588, %v2820
        %v3153 = vadd.f32 %v589, %v2822
        %v3154 = vadd.f32 %v590, %v1928
        %v3155 = vadd.f32 %v591, %v1930
        %v3156 = vadd.f32 %v592, %v2826
        %v3157 = vadd.f32 %v593, %v2828
        %v3158 = vadd.f32 %v594, %v1934
        %v3159 = vadd.f32 %v595, %v1936
        %v3160 = vadd.f32 %v596, %v2832
        %v3161 = vadd.f32 %v597, %v2834
        %v3162 = vadd.f32 %v598, %v1940
        %v3163 = vadd.f32 %v599, %v1942
        %v3164 = vadd.f32 %v600, %v2838
        %v3165 = vadd.f32 %v601, %v2840
        %v3166 = vadd.f32 %v602, %v1946
        %v3167 = vadd.f32 %v603, %v1948
        %v3168 = vadd.f32 %v604, %v2844
        %v3169 = vadd.f32 %v605, %v2846
        %v3170 = vadd.f32 %v606, %v1952
        %v3171 = vadd.f32 %v607, %v1954
        %v3172 = vadd.f32 %v608, %v2850
        %v3173 = vadd.f32 %v609, %v2852
        %v3174 = vadd.f32 %v610, %v1958
        %v3175 = vadd.f32 %v611, %v1960
        %v3176 = vadd.f32 %v612, %v2856
        %v3177 = vadd.f32 %v613, %v2858
        %v3178 = vadd.f32 %v614, %v1964
        %v3179 = vadd.f32 %v615, %v1966
        %v3180 = vadd.f32 %v616, %v2862
        %v3181 = vadd.f32 %v617, %v2864
        %v3182 = vadd.f32 %v618, %v1970
        %v3183 = vadd.f32 %v619, %v1972
        %v3184 = vadd.f32 %v620, %v2868
        %v3185 = vadd.f32 %v621, %v2870
        %v3186 = vadd.f32 %v622, %v1976
        %v3187 = vadd.f32 %v623, %v1978
        %v3188 = vadd.f32 %v624, %v2874
        %v3189 = vadd.f32 %v625, %v2876
        %v3190 = vadd.f32 %v626, %v1982
        %v3191 = vadd.f32 %v627, %v1984
        %v3192 = vadd.f32 %v628, %v2880
        %v3193 = vadd.f32 %v629, %v2882
        %v3194 = vadd.f32 %v630, %v1988
        %v3195 = vadd.f32 %v631, %v1990
        %v3196 = vadd.f32 %v632, %v2886
        %v3197 = vadd.f32 %v633, %v2888
        %v3198 = vadd.f32 %v634, %v1994
        %v3199 = vadd.f32 %v635, %v1996
        %v3200 = vadd.f32 %v636, %v2892
        %v3201 = vadd.f32 %v637, %v2894
        %v3202 = vadd.f32 %v638, %v2000
        %v3203 = vadd.f32 %v639, %v2002
        %v3204 = vadd.f32 %v640, %v2898
        %v3205 = vadd.f32 %v641, %v2900
        %v3206 = vadd.f32 %v642, %v2006
        %v3207 = vadd.f32 %v643, %v2008
        %v3208 = vadd.f32 %v644, %v2904
        %v3209 = vadd.f32 %v645, %v2906
        %v3210 = vadd.f32 %v646, %v2012
        %v3211 = vadd.f32 %v647, %v2014
        %v3212 = vadd.f32 %v648, %v2910
        %v3213 = vadd.f32 %v649, %v2912
        %v3214 = vadd.f32 %v650, %v2018
        %v3215 = vadd.f32 %v651, %v2020
        %v3216 = vadd.f32 %v652, %v2916
        %v3217 = vadd.f32 %v653, %v2918
        %v3218 = vadd.f32 %v654, %v2024
        %v3219 = vadd.f32 %v655, %v2026
        %v3220 = vadd.f32 %v656, %v2922
        %v3221 = vadd.f32 %v657, %v2924
        %v3222 = vadd.f32 %v658, %v2030
        %v3223 = vadd.f32 %v659, %v2032
        %v3224 = vadd.f32 %v660, %v2928
        %v3225 = vadd.f32 %v661, %v2930
        %v3226 = vadd.f32 %v662, %v2036
        %v3227 = vadd.f32 %v663, %v2038
        %v3228 = vadd.f32 %v664, %v2934
        %v3229 = vadd.f32 %v665, %v2936
        %v3230 = vadd.f32 %v666, %v2042
        %v3231 = vadd.f32 %v667, %v2044
        %v3232 = vadd.f32 %v668, %v2940
        %v3233 = vadd.f32 %v669, %v2942
        %v3234 = vadd.f32 %v670, %v2048
        %v3235 = vadd.f32 %v671, %v2050
        %v3236 = vadd.f32 %v672, %v2946
        %v3237 = vadd.f32 %v673, %v2948
        %v3238 = vadd.f32 %v674, %v2054
        %v3239 = vadd.f32 %v675, %v2056
        %v3240 = vadd.f32 %v676, %v2952
        %v3241 = vadd.f32 %v677, %v2954
        %v3242 = vadd.f32 %v678, %v2060
        %v3243 = vadd.f32 %v679, %v2062
        %v3244 = vadd.f32 %v680, %v2958
        %v3245 = vadd.f32 %v681, %v2960
        %v3246 = vadd.f32 %v682, %v2066
        %v3247 = vadd.f32 %v683, %v2068
        %v3248 = vadd.f32 %v684, %v2964
        %v3249 = vadd.f32 %v685, %v2966
        %v3250 = vadd.f32 %v686, %v2072
        %v3251 = vadd.f32 %v687, %v2074
        %v3252 = vadd.f32 %v688, %v2970
        %v3253 = vadd.f32 %v689, %v2972
        %v3254 = vadd.f32 %v690, %v2078
        %v3255 = vadd.f32 %v691, %v2080
        %v3256 = vadd.f32 %v692, %v2976
        %v3257 = vadd.f32 %v693, %v2978
        %v3258 = vadd.f32 %v694, %v2084
        %v3259 = vadd.f32 %v695, %v2086
        %v3260 = vadd.f32 %v696, %v2982
        %v3261 = vadd.f32 %v697, %v2984
        %v3262 = vadd.f32 %v698, %v2090
        %v3263 = vadd.f32 %v699, %v2092
        %v3264 = vadd.f32 %v700, %v2988
        %v3265 = vadd.f32 %v701, %v2990
        %v3266 = vadd.f32 %v702, %v2096
        %v3267 = vadd.f32 %v703, %v2098
        %v3268 = vadd.f32 %v704, %v2994
        %v3269 = vadd.f32 %v705, %v2996
        %v3270 = vadd.f32 %v706, %v2102
        %v3271 = vadd.f32 %v707, %v2104
        %v3272 = vadd.f32 %v708, %v3000
        %v3273 = vadd.f32 %v709, %v3002
        %v3274 = vadd.f32 %v710, %v2108
        %v3275 = vadd.f32 %v711, %v2110
        %v3276 = vadd.f32 %v712, %v3006
        %v3277 = vadd.f32 %v713, %v3008
        %v3278 = vadd.f32 %v714, %v2114
        %v3279 = vadd.f32 %v715, %v2116
        %v3280 = vadd.f32 %v716, %v3012
        %v3281 = vadd.f32 %v717, %v3014
        %v3282 = vadd.f32 %v718, %v2120
        %v3283 = vadd.f32 %v719, %v2122
        %v3284 = vadd.f32 %v720, %v3018
        %v3285 = vadd.f32 %v721, %v3020
        %v3286 = vadd.f32 %v722, %v2126
        %v3287 = vadd.f32 %v723, %v2128
        %v3288 = vadd.f32 %v724, %v3024
        %v3289 = vadd.f32 %v725, %v3026
        %v3290 = vadd.f32 %v726, %v2132
        %v3291 = vadd.f32 %v727, %v2134
        %v3292 = vadd.f32 %v728, %v3030
        %v3293 = vadd.f32 %v729, %v3032
        %v3294 = vadd.f32 %v730, %v2138
        %v3295 = vadd.f32 %v731, %v2140
        %v3296 = vadd.f32 %v732, %v3036
        %v3297 = vadd.f32 %v733, %v3038
        %v3298 = vadd.f32 %v734, %v2144
        %v3299 = vadd.f32 %v735, %v2146
        %v3300 = vadd.f32 %v736, %v3042
        %v3301 = vadd.f32 %v737, %v3044
        %3302 = vst [vmem:[#allocation2] sm:$0xff] %v3046
        %3303 = vst [vmem:[#allocation2 + $0x8] sm:$0xff] %v3047
        %3304 = vst [vmem:[#allocation2 + $0x10] sm:$0xff] %v3048
        %3305 = vst [vmem:[#allocation2 + $0x18] sm:$0xff] %v3049
        %3306 = vst [vmem:[#allocation2 + $0x20] sm:$0xff] %v3050
        %3307 = vst [vmem:[#allocation2 + $0x28] sm:$0xff] %v3051
        %3308 = vst [vmem:[#allocation2 + $0x30] sm:$0xff] %v3052
        %3309 = vst [vmem:[#allocation2 + $0x38] sm:$0xff] %v3053
        %3310 = vst [vmem:[#allocation2 + $0x40] sm:$0xff] %v3054
        %3311 = vst [vmem:[#allocation2 + $0x48] sm:$0xff] %v3055
        %3312 = vst [vmem:[#allocation2 + $0x50] sm:$0xff] %v3056
        %3313 = vst [vmem:[#allocation2 + $0x58] sm:$0xff] %v3057
        %3314 = vst [vmem:[#allocation2 + $0x60] sm:$0xff] %v3058
        %3315 = vst [vmem:[#allocation2 + $0x68] sm:$0xff] %v3059
        %3316 = vst [vmem:[#allocation2 + $0x70] sm:$0xff] %v3060
        %3317 = vst [vmem:[#allocation2 + $0x78] sm:$0xff] %v3061
        %3318 = vst [vmem:[#allocation2 + $0x80] sm:$0xff] %v3062
        %3319 = vst [vmem:[#allocation2 + $0x88] sm:$0xff] %v3063
        %3320 = vst [vmem:[#allocation2 + $0x90] sm:$0xff] %v3064
        %3321 = vst [vmem:[#allocation2 + $0x98] sm:$0xff] %v3065
        %3322 = vst [vmem:[#allocation2 + $0xa0] sm:$0xff] %v3066
        %3323 = vst [vmem:[#allocation2 + $0xa8] sm:$0xff] %v3067
        %3324 = vst [vmem:[#allocation2 + $0xb0] sm:$0xff] %v3068
        %3325 = vst [vmem:[#allocation2 + $0xb8] sm:$0xff] %v3069
        %3326 = vst [vmem:[#allocation2 + $0xc0] sm:$0xff] %v3070
        %3327 = vst [vmem:[#allocation2 + $0xc8] sm:$0xff] %v3071
        %3328 = vst [vmem:[#allocation2 + $0xd0] sm:$0xff] %v3072
        %3329 = vst [vmem:[#allocation2 + $0xd8] sm:$0xff] %v3073
        %3330 = vst [vmem:[#allocation2 + $0xe0] sm:$0xff] %v3074
        %3331 = vst [vmem:[#allocation2 + $0xe8] sm:$0xff] %v3075
        %3332 = vst [vmem:[#allocation2 + $0xf0] sm:$0xff] %v3076
        %3333 = vst [vmem:[#allocation2 + $0xf8] sm:$0xff] %v3077
        %3334 = vst [vmem:[#allocation2 + $0x100] sm:$0xff] %v3078
        %3335 = vst [vmem:[#allocation2 + $0x108] sm:$0xff] %v3079
        %3336 = vst [vmem:[#allocation2 + $0x110] sm:$0xff] %v3080
        %3337 = vst [vmem:[#allocation2 + $0x118] sm:$0xff] %v3081
        %3338 = vst [vmem:[#allocation2 + $0x120] sm:$0xff] %v3082
        %3339 = vst [vmem:[#allocation2 + $0x128] sm:$0xff] %v3083
        %3340 = vst [vmem:[#allocation2 + $0x130] sm:$0xff] %v3084
        %3341 = vst [vmem:[#allocation2 + $0x138] sm:$0xff] %v3085
        %3342 = vst [vmem:[#allocation2 + $0x140] sm:$0xff] %v3086
        %3343 = vst [vmem:[#allocation2 + $0x148] sm:$0xff] %v3087
        %3344 = vst [vmem:[#allocation2 + $0x150] sm:$0xff] %v3088
        %3345 = vst [vmem:[#allocation2 + $0x158] sm:$0xff] %v3089
        %3346 = vst [vmem:[#allocation2 + $0x160] sm:$0xff] %v3090
        %3347 = vst [vmem:[#allocation2 + $0x168] sm:$0xff] %v3091
        %3348 = vst [vmem:[#allocation2 + $0x170] sm:$0xff] %v3092
        %3349 = vst [vmem:[#allocation2 + $0x178] sm:$0xff] %v3093
        %3350 = vst [vmem:[#allocation2 + $0x180] sm:$0xff] %v3094
        %3351 = vst [vmem:[#allocation2 + $0x188] sm:$0xff] %v3095
        %3352 = vst [vmem:[#allocation2 + $0x190] sm:$0xff] %v3096
        %3353 = vst [vmem:[#allocation2 + $0x198] sm:$0xff] %v3097
        %3354 = vst [vmem:[#allocation2 + $0x1a0] sm:$0xff] %v3098
        %3355 = vst [vmem:[#allocation2 + $0x1a8] sm:$0xff] %v3099
        %3356 = vst [vmem:[#allocation2 + $0x1b0] sm:$0xff] %v3100
        %3357 = vst [vmem:[#allocation2 + $0x1b8] sm:$0xff] %v3101
        %3358 = vst [vmem:[#allocation2 + $0x1c0] sm:$0xff] %v3102
        %3359 = vst [vmem:[#allocation2 + $0x1c8] sm:$0xff] %v3103
        %3360 = vst [vmem:[#allocation2 + $0x1d0] sm:$0xff] %v3104
        %3361 = vst [vmem:[#allocation2 + $0x1d8] sm:$0xff] %v3105
        %3362 = vst [vmem:[#allocation2 + $0x1e0] sm:$0xff] %v3106
        %3363 = vst [vmem:[#allocation2 + $0x1e8] sm:$0xff] %v3107
        %3364 = vst [vmem:[#allocation2 + $0x1f0] sm:$0xff] %v3108
        %3365 = vst [vmem:[#allocation2 + $0x1f8] sm:$0xff] %v3109
        %3366 = vst [vmem:[#allocation2 + $0x200] sm:$0xff] %v3110
        %3367 = vst [vmem:[#allocation2 + $0x208] sm:$0xff] %v3111
        %3368 = vst [vmem:[#allocation2 + $0x210] sm:$0xff] %v3112
        %3369 = vst [vmem:[#allocation2 + $0x218] sm:$0xff] %v3113
        %3370 = vst [vmem:[#allocation2 + $0x220] sm:$0xff] %v3114
        %3371 = vst [vmem:[#allocation2 + $0x228] sm:$0xff] %v3115
        %3372 = vst [vmem:[#allocation2 + $0x230] sm:$0xff] %v3116
        %3373 = vst [vmem:[#allocation2 + $0x238] sm:$0xff] %v3117
        %3374 = vst [vmem:[#allocation2 + $0x240] sm:$0xff] %v3118
        %3375 = vst [vmem:[#allocation2 + $0x248] sm:$0xff] %v3119
        %3376 = vst [vmem:[#allocation2 + $0x250] sm:$0xff] %v3120
        %3377 = vst [vmem:[#allocation2 + $0x258] sm:$0xff] %v3121
        %3378 = vst [vmem:[#allocation2 + $0x260] sm:$0xff] %v3122
        %3379 = vst [vmem:[#allocation2 + $0x268] sm:$0xff] %v3123
        %3380 = vst [vmem:[#allocation2 + $0x270] sm:$0xff] %v3124
        %3381 = vst [vmem:[#allocation2 + $0x278] sm:$0xff] %v3125
        %3382 = vst [vmem:[#allocation2 + $0x280] sm:$0xff] %v3126
        %3383 = vst [vmem:[#allocation2 + $0x288] sm:$0xff] %v3127
        %3384 = vst [vmem:[#allocation2 + $0x290] sm:$0xff] %v3128
        %3385 = vst [vmem:[#allocation2 + $0x298] sm:$0xff] %v3129
        %3386 = vst [vmem:[#allocation2 + $0x2a0] sm:$0xff] %v3130
        %3387 = vst [vmem:[#allocation2 + $0x2a8] sm:$0xff] %v3131
        %3388 = vst [vmem:[#allocation2 + $0x2b0] sm:$0xff] %v3132
        %3389 = vst [vmem:[#allocation2 + $0x2b8] sm:$0xff] %v3133
        %3390 = vst [vmem:[#allocation2 + $0x2c0] sm:$0xff] %v3134
        %3391 = vst [vmem:[#allocation2 + $0x2c8] sm:$0xff] %v3135
        %3392 = vst [vmem:[#allocation2 + $0x2d0] sm:$0xff] %v3136
        %3393 = vst [vmem:[#allocation2 + $0x2d8] sm:$0xff] %v3137
        %3394 = vst [vmem:[#allocation2 + $0x2e0] sm:$0xff] %v3138
        %3395 = vst [vmem:[#allocation2 + $0x2e8] sm:$0xff] %v3139
        %3396 = vst [vmem:[#allocation2 + $0x2f0] sm:$0xff] %v3140
        %3397 = vst [vmem:[#allocation2 + $0x2f8] sm:$0xff] %v3141
        %3398 = vst [vmem:[#allocation2 + $0x300] sm:$0xff] %v3142
        %3399 = vst [vmem:[#allocation2 + $0x308] sm:$0xff] %v3143
        %3400 = vst [vmem:[#allocation2 + $0x310] sm:$0xff] %v3144
        %3401 = vst [vmem:[#allocation2 + $0x318] sm:$0xff] %v3145
        %3402 = vst [vmem:[#allocation2 + $0x320] sm:$0xff] %v3146
        %3403 = vst [vmem:[#allocation2 + $0x328] sm:$0xff] %v3147
        %3404 = vst [vmem:[#allocation2 + $0x330] sm:$0xff] %v3148
        %3405 = vst [vmem:[#allocation2 + $0x338] sm:$0xff] %v3149
        %3406 = vst [vmem:[#allocation2 + $0x340] sm:$0xff] %v3150
        %3407 = vst [vmem:[#allocation2 + $0x348] sm:$0xff] %v3151
        %3408 = vst [vmem:[#allocation2 + $0x350] sm:$0xff] %v3152
        %3409 = vst [vmem:[#allocation2 + $0x358] sm:$0xff] %v3153
        %3410 = vst [vmem:[#allocation2 + $0x360] sm:$0xff] %v3154
        %3411 = vst [vmem:[#allocation2 + $0x368] sm:$0xff] %v3155
        %3412 = vst [vmem:[#allocation2 + $0x370] sm:$0xff] %v3156
        %3413 = vst [vmem:[#allocation2 + $0x378] sm:$0xff] %v3157
        %3414 = vst [vmem:[#allocation2 + $0x380] sm:$0xff] %v3158
        %3415 = vst [vmem:[#allocation2 + $0x388] sm:$0xff] %v3159
        %3416 = vst [vmem:[#allocation2 + $0x390] sm:$0xff] %v3160
        %3417 = vst [vmem:[#allocation2 + $0x398] sm:$0xff] %v3161
        %3418 = vst [vmem:[#allocation2 + $0x3a0] sm:$0xff] %v3162
        %3419 = vst [vmem:[#allocation2 + $0x3a8] sm:$0xff] %v3163
        %3420 = vst [vmem:[#allocation2 + $0x3b0] sm:$0xff] %v3164
        %3421 = vst [vmem:[#allocation2 + $0x3b8] sm:$0xff] %v3165
        %3422 = vst [vmem:[#allocation2 + $0x3c0] sm:$0xff] %v3166
        %3423 = vst [vmem:[#allocation2 + $0x3c8] sm:$0xff] %v3167
        %3424 = vst [vmem:[#allocation2 + $0x3d0] sm:$0xff] %v3168
        %3425 = vst [vmem:[#allocation2 + $0x3d8] sm:$0xff] %v3169
        %3426 = vst [vmem:[#allocation2 + $0x3e0] sm:$0xff] %v3170
        %3427 = vst [vmem:[#allocation2 + $0x3e8] sm:$0xff] %v3171
        %3428 = vst [vmem:[#allocation2 + $0x3f0] sm:$0xff] %v3172
        %3429 = vst [vmem:[#allocation2 + $0x3f8] sm:$0xff] %v3173
        %3430 = vst [vmem:[#allocation2 + $0x400] sm:$0xff] %v3174
        %3431 = vst [vmem:[#allocation2 + $0x408] sm:$0xff] %v3175
        %3432 = vst [vmem:[#allocation2 + $0x410] sm:$0xff] %v3176
        %3433 = vst [vmem:[#allocation2 + $0x418] sm:$0xff] %v3177
        %3434 = vst [vmem:[#allocation2 + $0x420] sm:$0xff] %v3178
        %3435 = vst [vmem:[#allocation2 + $0x428] sm:$0xff] %v3179
        %3436 = vst [vmem:[#allocation2 + $0x430] sm:$0xff] %v3180
        %3437 = vst [vmem:[#allocation2 + $0x438] sm:$0xff] %v3181
        %3438 = vst [vmem:[#allocation2 + $0x440] sm:$0xff] %v3182
        %3439 = vst [vmem:[#allocation2 + $0x448] sm:$0xff] %v3183
        %3440 = vst [vmem:[#allocation2 + $0x450] sm:$0xff] %v3184
        %3441 = vst [vmem:[#allocation2 + $0x458] sm:$0xff] %v3185
        %3442 = vst [vmem:[#allocation2 + $0x460] sm:$0xff] %v3186
        %3443 = vst [vmem:[#allocation2 + $0x468] sm:$0xff] %v3187
        %3444 = vst [vmem:[#allocation2 + $0x470] sm:$0xff] %v3188
        %3445 = vst [vmem:[#allocation2 + $0x478] sm:$0xff] %v3189
        %3446 = vst [vmem:[#allocation2 + $0x480] sm:$0xff] %v3190
        %3447 = vst [vmem:[#allocation2 + $0x488] sm:$0xff] %v3191
        %3448 = vst [vmem:[#allocation2 + $0x490] sm:$0xff] %v3192
        %3449 = vst [vmem:[#allocation2 + $0x498] sm:$0xff] %v3193
        %3450 = vst [vmem:[#allocation2 + $0x4a0] sm:$0xff] %v3194
        %3451 = vst [vmem:[#allocation2 + $0x4a8] sm:$0xff] %v3195
        %3452 = vst [vmem:[#allocation2 + $0x4b0] sm:$0xff] %v3196
        %3453 = vst [vmem:[#allocation2 + $0x4b8] sm:$0xff] %v3197
        %3454 = vst [vmem:[#allocation2 + $0x4c0] sm:$0xff] %v3198
        %3455 = vst [vmem:[#allocation2 + $0x4c8] sm:$0xff] %v3199
        %3456 = vst [vmem:[#allocation2 + $0x4d0] sm:$0xff] %v3200
        %3457 = vst [vmem:[#allocation2 + $0x4d8] sm:$0xff] %v3201
        %3458 = vst [vmem:[#allocation2 + $0x4e0] sm:$0xff] %v3202
        %3459 = vst [vmem:[#allocation2 + $0x4e8] sm:$0xff] %v3203
        %3460 = vst [vmem:[#allocation2 + $0x4f0] sm:$0xff] %v3204
        %3461 = vst [vmem:[#allocation2 + $0x4f8] sm:$0xff] %v3205
        %3462 = vst [vmem:[#allocation2 + $0x500] sm:$0xff] %v3206
        %3463 = vst [vmem:[#allocation2 + $0x508] sm:$0xff] %v3207
        %3464 = vst [vmem:[#allocation2 + $0x510] sm:$0xff] %v3208
        %3465 = vst [vmem:[#allocation2 + $0x518] sm:$0xff] %v3209
        %3466 = vst [vmem:[#allocation2 + $0x520] sm:$0xff] %v3210
        %3467 = vst [vmem:[#allocation2 + $0x528] sm:$0xff] %v3211
        %3468 = vst [vmem:[#allocation2 + $0x530] sm:$0xff] %v3212
        %3469 = vst [vmem:[#allocation2 + $0x538] sm:$0xff] %v3213
        %3470 = vst [vmem:[#allocation2 + $0x540] sm:$0xff] %v3214
        %3471 = vst [vmem:[#allocation2 + $0x548] sm:$0xff] %v3215
        %3472 = vst [vmem:[#allocation2 + $0x550] sm:$0xff] %v3216
        %3473 = vst [vmem:[#allocation2 + $0x558] sm:$0xff] %v3217
        %3474 = vst [vmem:[#allocation2 + $0x560] sm:$0xff] %v3218
        %3475 = vst [vmem:[#allocation2 + $0x568] sm:$0xff] %v3219
        %3476 = vst [vmem:[#allocation2 + $0x570] sm:$0xff] %v3220
        %3477 = vst [vmem:[#allocation2 + $0x578] sm:$0xff] %v3221
        %3478 = vst [vmem:[#allocation2 + $0x580] sm:$0xff] %v3222
        %3479 = vst [vmem:[#allocation2 + $0x588] sm:$0xff] %v3223
        %3480 = vst [vmem:[#allocation2 + $0x590] sm:$0xff] %v3224
        %3481 = vst [vmem:[#allocation2 + $0x598] sm:$0xff] %v3225
        %3482 = vst [vmem:[#allocation2 + $0x5a0] sm:$0xff] %v3226
        %3483 = vst [vmem:[#allocation2 + $0x5a8] sm:$0xff] %v3227
        %3484 = vst [vmem:[#allocation2 + $0x5b0] sm:$0xff] %v3228
        %3485 = vst [vmem:[#allocation2 + $0x5b8] sm:$0xff] %v3229
        %3486 = vst [vmem:[#allocation2 + $0x5c0] sm:$0xff] %v3230
        %3487 = vst [vmem:[#allocation2 + $0x5c8] sm:$0xff] %v3231
        %3488 = vst [vmem:[#allocation2 + $0x5d0] sm:$0xff] %v3232
        %3489 = vst [vmem:[#allocation2 + $0x5d8] sm:$0xff] %v3233
        %3490 = vst [vmem:[#allocation2 + $0x5e0] sm:$0xff] %v3234
        %3491 = vst [vmem:[#allocation2 + $0x5e8] sm:$0xff] %v3235
        %3492 = vst [vmem:[#allocation2 + $0x5f0] sm:$0xff] %v3236
        %3493 = vst [vmem:[#allocation2 + $0x5f8] sm:$0xff] %v3237
        %3494 = vst [vmem:[#allocation2 + $0x600] sm:$0xff] %v3238
        %3495 = vst [vmem:[#allocation2 + $0x608] sm:$0xff] %v3239
        %3496 = vst [vmem:[#allocation2 + $0x610] sm:$0xff] %v3240
        %3497 = vst [vmem:[#allocation2 + $0x618] sm:$0xff] %v3241
        %3498 = vst [vmem:[#allocation2 + $0x620] sm:$0xff] %v3242
        %3499 = vst [vmem:[#allocation2 + $0x628] sm:$0xff] %v3243
        %3500 = vst [vmem:[#allocation2 + $0x630] sm:$0xff] %v3244
        %3501 = vst [vmem:[#allocation2 + $0x638] sm:$0xff] %v3245
        %3502 = vst [vmem:[#allocation2 + $0x640] sm:$0xff] %v3246
        %3503 = vst [vmem:[#allocation2 + $0x648] sm:$0xff] %v3247
        %3504 = vst [vmem:[#allocation2 + $0x650] sm:$0xff] %v3248
        %3505 = vst [vmem:[#allocation2 + $0x658] sm:$0xff] %v3249
        %3506 = vst [vmem:[#allocation2 + $0x660] sm:$0xff] %v3250
        %3507 = vst [vmem:[#allocation2 + $0x668] sm:$0xff] %v3251
        %3508 = vst [vmem:[#allocation2 + $0x670] sm:$0xff] %v3252
        %3509 = vst [vmem:[#allocation2 + $0x678] sm:$0xff] %v3253
        %3510 = vst [vmem:[#allocation2 + $0x680] sm:$0xff] %v3254
        %3511 = vst [vmem:[#allocation2 + $0x688] sm:$0xff] %v3255
        %3512 = vst [vmem:[#allocation2 + $0x690] sm:$0xff] %v3256
        %3513 = vst [vmem:[#allocation2 + $0x698] sm:$0xff] %v3257
        %3514 = vst [vmem:[#allocation2 + $0x6a0] sm:$0xff] %v3258
        %3515 = vst [vmem:[#allocation2 + $0x6a8] sm:$0xff] %v3259
        %3516 = vst [vmem:[#allocation2 + $0x6b0] sm:$0xff] %v3260
        %3517 = vst [vmem:[#allocation2 + $0x6b8] sm:$0xff] %v3261
        %3518 = vst [vmem:[#allocation2 + $0x6c0] sm:$0xff] %v3262
        %3519 = vst [vmem:[#allocation2 + $0x6c8] sm:$0xff] %v3263
        %3520 = vst [vmem:[#allocation2 + $0x6d0] sm:$0xff] %v3264
        %3521 = vst [vmem:[#allocation2 + $0x6d8] sm:$0xff] %v3265
        %3522 = vst [vmem:[#allocation2 + $0x6e0] sm:$0xff] %v3266
        %3523 = vst [vmem:[#allocation2 + $0x6e8] sm:$0xff] %v3267
        %3524 = vst [vmem:[#allocation2 + $0x6f0] sm:$0xff] %v3268
        %3525 = vst [vmem:[#allocation2 + $0x6f8] sm:$0xff] %v3269
        %3526 = vst [vmem:[#allocation2 + $0x700] sm:$0xff] %v3270
        %3527 = vst [vmem:[#allocation2 + $0x708] sm:$0xff] %v3271
        %3528 = vst [vmem:[#allocation2 + $0x710] sm:$0xff] %v3272
        %3529 = vst [vmem:[#allocation2 + $0x718] sm:$0xff] %v3273
        %3530 = vst [vmem:[#allocation2 + $0x720] sm:$0xff] %v3274
        %3531 = vst [vmem:[#allocation2 + $0x728] sm:$0xff] %v3275
        %3532 = vst [vmem:[#allocation2 + $0x730] sm:$0xff] %v3276
        %3533 = vst [vmem:[#allocation2 + $0x738] sm:$0xff] %v3277
        %3534 = vst [vmem:[#allocation2 + $0x740] sm:$0xff] %v3278
        %3535 = vst [vmem:[#allocation2 + $0x748] sm:$0xff] %v3279
        %3536 = vst [vmem:[#allocation2 + $0x750] sm:$0xff] %v3280
        %3537 = vst [vmem:[#allocation2 + $0x758] sm:$0xff] %v3281
        %3538 = vst [vmem:[#allocation2 + $0x760] sm:$0xff] %v3282
        %3539 = vst [vmem:[#allocation2 + $0x768] sm:$0xff] %v3283
        %3540 = vst [vmem:[#allocation2 + $0x770] sm:$0xff] %v3284
        %3541 = vst [vmem:[#allocation2 + $0x778] sm:$0xff] %v3285
        %3542 = vst [vmem:[#allocation2 + $0x780] sm:$0xff] %v3286
        %3543 = vst [vmem:[#allocation2 + $0x788] sm:$0xff] %v3287
        %3544 = vst [vmem:[#allocation2 + $0x790] sm:$0xff] %v3288
        %3545 = vst [vmem:[#allocation2 + $0x798] sm:$0xff] %v3289
        %3546 = vst [vmem:[#allocation2 + $0x7a0] sm:$0xff] %v3290
        %3547 = vst [vmem:[#allocation2 + $0x7a8] sm:$0xff] %v3291
        %3548 = vst [vmem:[#allocation2 + $0x7b0] sm:$0xff] %v3292
        %3549 = vst [vmem:[#allocation2 + $0x7b8] sm:$0xff] %v3293
        %3550 = vst [vmem:[#allocation2 + $0x7c0] sm:$0xff] %v3294
        %3551 = vst [vmem:[#allocation2 + $0x7c8] sm:$0xff] %v3295
        %3552 = vst [vmem:[#allocation2 + $0x7d0] sm:$0xff] %v3296
        %3553 = vst [vmem:[#allocation2 + $0x7d8] sm:$0xff] %v3297
        %3554 = vst [vmem:[#allocation2 + $0x7e0] sm:$0xff] %v3298
        %3555 = vst [vmem:[#allocation2 + $0x7e8] sm:$0xff] %v3299
        %3556 = vst [vmem:[#allocation2 + $0x7f0] sm:$0xff] %v3300
        %3557 = vst [vmem:[#allocation2 + $0x7f8] sm:$0xff] %v3301
        // Predicated region
        $region41: #{tpu_custom_call.1} parent=27 // pred_check
          %p3558 = pneg %p222
        $region42: #{tpu_custom_call.1} parent=27 // pred_check_branch
          %3560 = sbr.rel (%p3558) target = $region44
        $region43: #{tpu_custom_call.1} parent=27 // pred_region
          %v3561 = vld [vmem:[#allocation2] sm:$0xff]
          %v3562 = vld [vmem:[#allocation2 + $0x8] sm:$0xff]
          %v3563 = vld [vmem:[#allocation2 + $0x10] sm:$0xff]
          %v3564 = vld [vmem:[#allocation2 + $0x18] sm:$0xff]
          %v3565 = vld [vmem:[#allocation2 + $0x20] sm:$0xff]
          %v3566 = vld [vmem:[#allocation2 + $0x28] sm:$0xff]
          %v3567 = vld [vmem:[#allocation2 + $0x30] sm:$0xff]
          %v3568 = vld [vmem:[#allocation2 + $0x38] sm:$0xff]
          %v3569 = vld [vmem:[#allocation2 + $0x40] sm:$0xff]
          %v3570 = vld [vmem:[#allocation2 + $0x48] sm:$0xff]
          %v3571 = vld [vmem:[#allocation2 + $0x50] sm:$0xff]
          %v3572 = vld [vmem:[#allocation2 + $0x58] sm:$0xff]
          %v3573 = vld [vmem:[#allocation2 + $0x60] sm:$0xff]
          %v3574 = vld [vmem:[#allocation2 + $0x68] sm:$0xff]
          %v3575 = vld [vmem:[#allocation2 + $0x70] sm:$0xff]
          %v3576 = vld [vmem:[#allocation2 + $0x78] sm:$0xff]
          %v3577 = vld [vmem:[#allocation2 + $0x80] sm:$0xff]
          %v3578 = vld [vmem:[#allocation2 + $0x88] sm:$0xff]
          %v3579 = vld [vmem:[#allocation2 + $0x90] sm:$0xff]
          %v3580 = vld [vmem:[#allocation2 + $0x98] sm:$0xff]
          %v3581 = vld [vmem:[#allocation2 + $0xa0] sm:$0xff]
          %v3582 = vld [vmem:[#allocation2 + $0xa8] sm:$0xff]
          %v3583 = vld [vmem:[#allocation2 + $0xb0] sm:$0xff]
          %v3584 = vld [vmem:[#allocation2 + $0xb8] sm:$0xff]
          %v3585 = vld [vmem:[#allocation2 + $0xc0] sm:$0xff]
          %v3586 = vld [vmem:[#allocation2 + $0xc8] sm:$0xff]
          %v3587 = vld [vmem:[#allocation2 + $0xd0] sm:$0xff]
          %v3588 = vld [vmem:[#allocation2 + $0xd8] sm:$0xff]
          %v3589 = vld [vmem:[#allocation2 + $0xe0] sm:$0xff]
          %v3590 = vld [vmem:[#allocation2 + $0xe8] sm:$0xff]
          %v3591 = vld [vmem:[#allocation2 + $0xf0] sm:$0xff]
          %v3592 = vld [vmem:[#allocation2 + $0xf8] sm:$0xff]
          %v3593 = vld [vmem:[#allocation2 + $0x100] sm:$0xff]
          %v3594 = vld [vmem:[#allocation2 + $0x108] sm:$0xff]
          %v3595 = vld [vmem:[#allocation2 + $0x110] sm:$0xff]
          %v3596 = vld [vmem:[#allocation2 + $0x118] sm:$0xff]
          %v3597 = vld [vmem:[#allocation2 + $0x120] sm:$0xff]
          %v3598 = vld [vmem:[#allocation2 + $0x128] sm:$0xff]
          %v3599 = vld [vmem:[#allocation2 + $0x130] sm:$0xff]
          %v3600 = vld [vmem:[#allocation2 + $0x138] sm:$0xff]
          %v3601 = vld [vmem:[#allocation2 + $0x140] sm:$0xff]
          %v3602 = vld [vmem:[#allocation2 + $0x148] sm:$0xff]
          %v3603 = vld [vmem:[#allocation2 + $0x150] sm:$0xff]
          %v3604 = vld [vmem:[#allocation2 + $0x158] sm:$0xff]
          %v3605 = vld [vmem:[#allocation2 + $0x160] sm:$0xff]
          %v3606 = vld [vmem:[#allocation2 + $0x168] sm:$0xff]
          %v3607 = vld [vmem:[#allocation2 + $0x170] sm:$0xff]
          %v3608 = vld [vmem:[#allocation2 + $0x178] sm:$0xff]
          %v3609 = vld [vmem:[#allocation2 + $0x180] sm:$0xff]
          %v3610 = vld [vmem:[#allocation2 + $0x188] sm:$0xff]
          %v3611 = vld [vmem:[#allocation2 + $0x190] sm:$0xff]
          %v3612 = vld [vmem:[#allocation2 + $0x198] sm:$0xff]
          %v3613 = vld [vmem:[#allocation2 + $0x1a0] sm:$0xff]
          %v3614 = vld [vmem:[#allocation2 + $0x1a8] sm:$0xff]
          %v3615 = vld [vmem:[#allocation2 + $0x1b0] sm:$0xff]
          %v3616 = vld [vmem:[#allocation2 + $0x1b8] sm:$0xff]
          %v3617 = vld [vmem:[#allocation2 + $0x1c0] sm:$0xff]
          %v3618 = vld [vmem:[#allocation2 + $0x1c8] sm:$0xff]
          %v3619 = vld [vmem:[#allocation2 + $0x1d0] sm:$0xff]
          %v3620 = vld [vmem:[#allocation2 + $0x1d8] sm:$0xff]
          %v3621 = vld [vmem:[#allocation2 + $0x1e0] sm:$0xff]
          %v3622 = vld [vmem:[#allocation2 + $0x1e8] sm:$0xff]
          %v3623 = vld [vmem:[#allocation2 + $0x1f0] sm:$0xff]
          %v3624 = vld [vmem:[#allocation2 + $0x1f8] sm:$0xff]
          %v3625 = vld [vmem:[#allocation2 + $0x200] sm:$0xff]
          %v3626 = vld [vmem:[#allocation2 + $0x208] sm:$0xff]
          %v3627 = vld [vmem:[#allocation2 + $0x210] sm:$0xff]
          %v3628 = vld [vmem:[#allocation2 + $0x218] sm:$0xff]
          %v3629 = vld [vmem:[#allocation2 + $0x220] sm:$0xff]
          %v3630 = vld [vmem:[#allocation2 + $0x228] sm:$0xff]
          %v3631 = vld [vmem:[#allocation2 + $0x230] sm:$0xff]
          %v3632 = vld [vmem:[#allocation2 + $0x238] sm:$0xff]
          %v3633 = vld [vmem:[#allocation2 + $0x240] sm:$0xff]
          %v3634 = vld [vmem:[#allocation2 + $0x248] sm:$0xff]
          %v3635 = vld [vmem:[#allocation2 + $0x250] sm:$0xff]
          %v3636 = vld [vmem:[#allocation2 + $0x258] sm:$0xff]
          %v3637 = vld [vmem:[#allocation2 + $0x260] sm:$0xff]
          %v3638 = vld [vmem:[#allocation2 + $0x268] sm:$0xff]
          %v3639 = vld [vmem:[#allocation2 + $0x270] sm:$0xff]
          %v3640 = vld [vmem:[#allocation2 + $0x278] sm:$0xff]
          %v3641 = vld [vmem:[#allocation2 + $0x280] sm:$0xff]
          %v3642 = vld [vmem:[#allocation2 + $0x288] sm:$0xff]
          %v3643 = vld [vmem:[#allocation2 + $0x290] sm:$0xff]
          %v3644 = vld [vmem:[#allocation2 + $0x298] sm:$0xff]
          %v3645 = vld [vmem:[#allocation2 + $0x2a0] sm:$0xff]
          %v3646 = vld [vmem:[#allocation2 + $0x2a8] sm:$0xff]
          %v3647 = vld [vmem:[#allocation2 + $0x2b0] sm:$0xff]
          %v3648 = vld [vmem:[#allocation2 + $0x2b8] sm:$0xff]
          %v3649 = vld [vmem:[#allocation2 + $0x2c0] sm:$0xff]
          %v3650 = vld [vmem:[#allocation2 + $0x2c8] sm:$0xff]
          %v3651 = vld [vmem:[#allocation2 + $0x2d0] sm:$0xff]
          %v3652 = vld [vmem:[#allocation2 + $0x2d8] sm:$0xff]
          %v3653 = vld [vmem:[#allocation2 + $0x2e0] sm:$0xff]
          %v3654 = vld [vmem:[#allocation2 + $0x2e8] sm:$0xff]
          %v3655 = vld [vmem:[#allocation2 + $0x2f0] sm:$0xff]
          %v3656 = vld [vmem:[#allocation2 + $0x2f8] sm:$0xff]
          %v3657 = vld [vmem:[#allocation2 + $0x300] sm:$0xff]
          %v3658 = vld [vmem:[#allocation2 + $0x308] sm:$0xff]
          %v3659 = vld [vmem:[#allocation2 + $0x310] sm:$0xff]
          %v3660 = vld [vmem:[#allocation2 + $0x318] sm:$0xff]
          %v3661 = vld [vmem:[#allocation2 + $0x320] sm:$0xff]
          %v3662 = vld [vmem:[#allocation2 + $0x328] sm:$0xff]
          %v3663 = vld [vmem:[#allocation2 + $0x330] sm:$0xff]
          %v3664 = vld [vmem:[#allocation2 + $0x338] sm:$0xff]
          %v3665 = vld [vmem:[#allocation2 + $0x340] sm:$0xff]
          %v3666 = vld [vmem:[#allocation2 + $0x348] sm:$0xff]
          %v3667 = vld [vmem:[#allocation2 + $0x350] sm:$0xff]
          %v3668 = vld [vmem:[#allocation2 + $0x358] sm:$0xff]
          %v3669 = vld [vmem:[#allocation2 + $0x360] sm:$0xff]
          %v3670 = vld [vmem:[#allocation2 + $0x368] sm:$0xff]
          %v3671 = vld [vmem:[#allocation2 + $0x370] sm:$0xff]
          %v3672 = vld [vmem:[#allocation2 + $0x378] sm:$0xff]
          %v3673 = vld [vmem:[#allocation2 + $0x380] sm:$0xff]
          %v3674 = vld [vmem:[#allocation2 + $0x388] sm:$0xff]
          %v3675 = vld [vmem:[#allocation2 + $0x390] sm:$0xff]
          %v3676 = vld [vmem:[#allocation2 + $0x398] sm:$0xff]
          %v3677 = vld [vmem:[#allocation2 + $0x3a0] sm:$0xff]
          %v3678 = vld [vmem:[#allocation2 + $0x3a8] sm:$0xff]
          %v3679 = vld [vmem:[#allocation2 + $0x3b0] sm:$0xff]
          %v3680 = vld [vmem:[#allocation2 + $0x3b8] sm:$0xff]
          %v3681 = vld [vmem:[#allocation2 + $0x3c0] sm:$0xff]
          %v3682 = vld [vmem:[#allocation2 + $0x3c8] sm:$0xff]
          %v3683 = vld [vmem:[#allocation2 + $0x3d0] sm:$0xff]
          %v3684 = vld [vmem:[#allocation2 + $0x3d8] sm:$0xff]
          %v3685 = vld [vmem:[#allocation2 + $0x3e0] sm:$0xff]
          %v3686 = vld [vmem:[#allocation2 + $0x3e8] sm:$0xff]
          %v3687 = vld [vmem:[#allocation2 + $0x3f0] sm:$0xff]
          %v3688 = vld [vmem:[#allocation2 + $0x3f8] sm:$0xff]
          %v3689 = vld [vmem:[#allocation2 + $0x400] sm:$0xff]
          %v3690 = vld [vmem:[#allocation2 + $0x408] sm:$0xff]
          %v3691 = vld [vmem:[#allocation2 + $0x410] sm:$0xff]
          %v3692 = vld [vmem:[#allocation2 + $0x418] sm:$0xff]
          %v3693 = vld [vmem:[#allocation2 + $0x420] sm:$0xff]
          %v3694 = vld [vmem:[#allocation2 + $0x428] sm:$0xff]
          %v3695 = vld [vmem:[#allocation2 + $0x430] sm:$0xff]
          %v3696 = vld [vmem:[#allocation2 + $0x438] sm:$0xff]
          %v3697 = vld [vmem:[#allocation2 + $0x440] sm:$0xff]
          %v3698 = vld [vmem:[#allocation2 + $0x448] sm:$0xff]
          %v3699 = vld [vmem:[#allocation2 + $0x450] sm:$0xff]
          %v3700 = vld [vmem:[#allocation2 + $0x458] sm:$0xff]
          %v3701 = vld [vmem:[#allocation2 + $0x460] sm:$0xff]
          %v3702 = vld [vmem:[#allocation2 + $0x468] sm:$0xff]
          %v3703 = vld [vmem:[#allocation2 + $0x470] sm:$0xff]
          %v3704 = vld [vmem:[#allocation2 + $0x478] sm:$0xff]
          %v3705 = vld [vmem:[#allocation2 + $0x480] sm:$0xff]
          %v3706 = vld [vmem:[#allocation2 + $0x488] sm:$0xff]
          %v3707 = vld [vmem:[#allocation2 + $0x490] sm:$0xff]
          %v3708 = vld [vmem:[#allocation2 + $0x498] sm:$0xff]
          %v3709 = vld [vmem:[#allocation2 + $0x4a0] sm:$0xff]
          %v3710 = vld [vmem:[#allocation2 + $0x4a8] sm:$0xff]
          %v3711 = vld [vmem:[#allocation2 + $0x4b0] sm:$0xff]
          %v3712 = vld [vmem:[#allocation2 + $0x4b8] sm:$0xff]
          %v3713 = vld [vmem:[#allocation2 + $0x4c0] sm:$0xff]
          %v3714 = vld [vmem:[#allocation2 + $0x4c8] sm:$0xff]
          %v3715 = vld [vmem:[#allocation2 + $0x4d0] sm:$0xff]
          %v3716 = vld [vmem:[#allocation2 + $0x4d8] sm:$0xff]
          %v3717 = vld [vmem:[#allocation2 + $0x4e0] sm:$0xff]
          %v3718 = vld [vmem:[#allocation2 + $0x4e8] sm:$0xff]
          %v3719 = vld [vmem:[#allocation2 + $0x4f0] sm:$0xff]
          %v3720 = vld [vmem:[#allocation2 + $0x4f8] sm:$0xff]
          %v3721 = vld [vmem:[#allocation2 + $0x500] sm:$0xff]
          %v3722 = vld [vmem:[#allocation2 + $0x508] sm:$0xff]
          %v3723 = vld [vmem:[#allocation2 + $0x510] sm:$0xff]
          %v3724 = vld [vmem:[#allocation2 + $0x518] sm:$0xff]
          %v3725 = vld [vmem:[#allocation2 + $0x520] sm:$0xff]
          %v3726 = vld [vmem:[#allocation2 + $0x528] sm:$0xff]
          %v3727 = vld [vmem:[#allocation2 + $0x530] sm:$0xff]
          %v3728 = vld [vmem:[#allocation2 + $0x538] sm:$0xff]
          %v3729 = vld [vmem:[#allocation2 + $0x540] sm:$0xff]
          %v3730 = vld [vmem:[#allocation2 + $0x548] sm:$0xff]
          %v3731 = vld [vmem:[#allocation2 + $0x550] sm:$0xff]
          %v3732 = vld [vmem:[#allocation2 + $0x558] sm:$0xff]
          %v3733 = vld [vmem:[#allocation2 + $0x560] sm:$0xff]
          %v3734 = vld [vmem:[#allocation2 + $0x568] sm:$0xff]
          %v3735 = vld [vmem:[#allocation2 + $0x570] sm:$0xff]
          %v3736 = vld [vmem:[#allocation2 + $0x578] sm:$0xff]
          %v3737 = vld [vmem:[#allocation2 + $0x580] sm:$0xff]
          %v3738 = vld [vmem:[#allocation2 + $0x588] sm:$0xff]
          %v3739 = vld [vmem:[#allocation2 + $0x590] sm:$0xff]
          %v3740 = vld [vmem:[#allocation2 + $0x598] sm:$0xff]
          %v3741 = vld [vmem:[#allocation2 + $0x5a0] sm:$0xff]
          %v3742 = vld [vmem:[#allocation2 + $0x5a8] sm:$0xff]
          %v3743 = vld [vmem:[#allocation2 + $0x5b0] sm:$0xff]
          %v3744 = vld [vmem:[#allocation2 + $0x5b8] sm:$0xff]
          %v3745 = vld [vmem:[#allocation2 + $0x5c0] sm:$0xff]
          %v3746 = vld [vmem:[#allocation2 + $0x5c8] sm:$0xff]
          %v3747 = vld [vmem:[#allocation2 + $0x5d0] sm:$0xff]
          %v3748 = vld [vmem:[#allocation2 + $0x5d8] sm:$0xff]
          %v3749 = vld [vmem:[#allocation2 + $0x5e0] sm:$0xff]
          %v3750 = vld [vmem:[#allocation2 + $0x5e8] sm:$0xff]
          %v3751 = vld [vmem:[#allocation2 + $0x5f0] sm:$0xff]
          %v3752 = vld [vmem:[#allocation2 + $0x5f8] sm:$0xff]
          %v3753 = vld [vmem:[#allocation2 + $0x600] sm:$0xff]
          %v3754 = vld [vmem:[#allocation2 + $0x608] sm:$0xff]
          %v3755 = vld [vmem:[#allocation2 + $0x610] sm:$0xff]
          %v3756 = vld [vmem:[#allocation2 + $0x618] sm:$0xff]
          %v3757 = vld [vmem:[#allocation2 + $0x620] sm:$0xff]
          %v3758 = vld [vmem:[#allocation2 + $0x628] sm:$0xff]
          %v3759 = vld [vmem:[#allocation2 + $0x630] sm:$0xff]
          %v3760 = vld [vmem:[#allocation2 + $0x638] sm:$0xff]
          %v3761 = vld [vmem:[#allocation2 + $0x640] sm:$0xff]
          %v3762 = vld [vmem:[#allocation2 + $0x648] sm:$0xff]
          %v3763 = vld [vmem:[#allocation2 + $0x650] sm:$0xff]
          %v3764 = vld [vmem:[#allocation2 + $0x658] sm:$0xff]
          %v3765 = vld [vmem:[#allocation2 + $0x660] sm:$0xff]
          %v3766 = vld [vmem:[#allocation2 + $0x668] sm:$0xff]
          %v3767 = vld [vmem:[#allocation2 + $0x670] sm:$0xff]
          %v3768 = vld [vmem:[#allocation2 + $0x678] sm:$0xff]
          %v3769 = vld [vmem:[#allocation2 + $0x680] sm:$0xff]
          %v3770 = vld [vmem:[#allocation2 + $0x688] sm:$0xff]
          %v3771 = vld [vmem:[#allocation2 + $0x690] sm:$0xff]
          %v3772 = vld [vmem:[#allocation2 + $0x698] sm:$0xff]
          %v3773 = vld [vmem:[#allocation2 + $0x6a0] sm:$0xff]
          %v3774 = vld [vmem:[#allocation2 + $0x6a8] sm:$0xff]
          %v3775 = vld [vmem:[#allocation2 + $0x6b0] sm:$0xff]
          %v3776 = vld [vmem:[#allocation2 + $0x6b8] sm:$0xff]
          %v3777 = vld [vmem:[#allocation2 + $0x6c0] sm:$0xff]
          %v3778 = vld [vmem:[#allocation2 + $0x6c8] sm:$0xff]
          %v3779 = vld [vmem:[#allocation2 + $0x6d0] sm:$0xff]
          %v3780 = vld [vmem:[#allocation2 + $0x6d8] sm:$0xff]
          %v3781 = vld [vmem:[#allocation2 + $0x6e0] sm:$0xff]
          %v3782 = vld [vmem:[#allocation2 + $0x6e8] sm:$0xff]
          %v3783 = vld [vmem:[#allocation2 + $0x6f0] sm:$0xff]
          %v3784 = vld [vmem:[#allocation2 + $0x6f8] sm:$0xff]
          %v3785 = vld [vmem:[#allocation2 + $0x700] sm:$0xff]
          %v3786 = vld [vmem:[#allocation2 + $0x708] sm:$0xff]
          %v3787 = vld [vmem:[#allocation2 + $0x710] sm:$0xff]
          %v3788 = vld [vmem:[#allocation2 + $0x718] sm:$0xff]
          %v3789 = vld [vmem:[#allocation2 + $0x720] sm:$0xff]
          %v3790 = vld [vmem:[#allocation2 + $0x728] sm:$0xff]
          %v3791 = vld [vmem:[#allocation2 + $0x730] sm:$0xff]
          %v3792 = vld [vmem:[#allocation2 + $0x738] sm:$0xff]
          %v3793 = vld [vmem:[#allocation2 + $0x740] sm:$0xff]
          %v3794 = vld [vmem:[#allocation2 + $0x748] sm:$0xff]
          %v3795 = vld [vmem:[#allocation2 + $0x750] sm:$0xff]
          %v3796 = vld [vmem:[#allocation2 + $0x758] sm:$0xff]
          %v3797 = vld [vmem:[#allocation2 + $0x760] sm:$0xff]
          %v3798 = vld [vmem:[#allocation2 + $0x768] sm:$0xff]
          %v3799 = vld [vmem:[#allocation2 + $0x770] sm:$0xff]
          %v3800 = vld [vmem:[#allocation2 + $0x778] sm:$0xff]
          %v3801 = vld [vmem:[#allocation2 + $0x780] sm:$0xff]
          %v3802 = vld [vmem:[#allocation2 + $0x788] sm:$0xff]
          %v3803 = vld [vmem:[#allocation2 + $0x790] sm:$0xff]
          %v3804 = vld [vmem:[#allocation2 + $0x798] sm:$0xff]
          %v3805 = vld [vmem:[#allocation2 + $0x7a0] sm:$0xff]
          %v3806 = vld [vmem:[#allocation2 + $0x7a8] sm:$0xff]
          %v3807 = vld [vmem:[#allocation2 + $0x7b0] sm:$0xff]
          %v3808 = vld [vmem:[#allocation2 + $0x7b8] sm:$0xff]
          %v3809 = vld [vmem:[#allocation2 + $0x7c0] sm:$0xff]
          %v3810 = vld [vmem:[#allocation2 + $0x7c8] sm:$0xff]
          %v3811 = vld [vmem:[#allocation2 + $0x7d0] sm:$0xff]
          %v3812 = vld [vmem:[#allocation2 + $0x7d8] sm:$0xff]
          %v3813 = vld [vmem:[#allocation2 + $0x7e0] sm:$0xff]
          %v3814 = vld [vmem:[#allocation2 + $0x7e8] sm:$0xff]
          %v3815 = vld [vmem:[#allocation2 + $0x7f0] sm:$0xff]
          %v3816 = vld [vmem:[#allocation2 + $0x7f8] sm:$0xff]
          %3817 = vst [vmem:[%s215] sm:$0xff] %v3561
          %3818 = vst [vmem:[%s215 + $0x8] sm:$0xff] %v3562
          %3819 = vst [vmem:[%s215 + $0x10] sm:$0xff] %v3563
          %3820 = vst [vmem:[%s215 + $0x18] sm:$0xff] %v3564
          %3821 = vst [vmem:[%s215 + $0x20] sm:$0xff] %v3565
          %3822 = vst [vmem:[%s215 + $0x28] sm:$0xff] %v3566
          %3823 = vst [vmem:[%s215 + $0x30] sm:$0xff] %v3567
          %3824 = vst [vmem:[%s215 + $0x38] sm:$0xff] %v3568
          %3825 = vst [vmem:[%s215 + $0x40] sm:$0xff] %v3569
          %3826 = vst [vmem:[%s215 + $0x48] sm:$0xff] %v3570
          %3827 = vst [vmem:[%s215 + $0x50] sm:$0xff] %v3571
          %3828 = vst [vmem:[%s215 + $0x58] sm:$0xff] %v3572
          %3829 = vst [vmem:[%s215 + $0x60] sm:$0xff] %v3573
          %3830 = vst [vmem:[%s215 + $0x68] sm:$0xff] %v3574
          %3831 = vst [vmem:[%s215 + $0x70] sm:$0xff] %v3575
          %3832 = vst [vmem:[%s215 + $0x78] sm:$0xff] %v3576
          %3833 = vst [vmem:[%s215 + $0x80] sm:$0xff] %v3577
          %3834 = vst [vmem:[%s215 + $0x88] sm:$0xff] %v3578
          %3835 = vst [vmem:[%s215 + $0x90] sm:$0xff] %v3579
          %3836 = vst [vmem:[%s215 + $0x98] sm:$0xff] %v3580
          %3837 = vst [vmem:[%s215 + $0xa0] sm:$0xff] %v3581
          %3838 = vst [vmem:[%s215 + $0xa8] sm:$0xff] %v3582
          %3839 = vst [vmem:[%s215 + $0xb0] sm:$0xff] %v3583
          %3840 = vst [vmem:[%s215 + $0xb8] sm:$0xff] %v3584
          %3841 = vst [vmem:[%s215 + $0xc0] sm:$0xff] %v3585
          %3842 = vst [vmem:[%s215 + $0xc8] sm:$0xff] %v3586
          %3843 = vst [vmem:[%s215 + $0xd0] sm:$0xff] %v3587
          %3844 = vst [vmem:[%s215 + $0xd8] sm:$0xff] %v3588
          %3845 = vst [vmem:[%s215 + $0xe0] sm:$0xff] %v3589
          %3846 = vst [vmem:[%s215 + $0xe8] sm:$0xff] %v3590
          %3847 = vst [vmem:[%s215 + $0xf0] sm:$0xff] %v3591
          %3848 = vst [vmem:[%s215 + $0xf8] sm:$0xff] %v3592
          %3849 = vst [vmem:[%s215 + $0x100] sm:$0xff] %v3593
          %3850 = vst [vmem:[%s215 + $0x108] sm:$0xff] %v3594
          %3851 = vst [vmem:[%s215 + $0x110] sm:$0xff] %v3595
          %3852 = vst [vmem:[%s215 + $0x118] sm:$0xff] %v3596
          %3853 = vst [vmem:[%s215 + $0x120] sm:$0xff] %v3597
          %3854 = vst [vmem:[%s215 + $0x128] sm:$0xff] %v3598
          %3855 = vst [vmem:[%s215 + $0x130] sm:$0xff] %v3599
          %3856 = vst [vmem:[%s215 + $0x138] sm:$0xff] %v3600
          %3857 = vst [vmem:[%s215 + $0x140] sm:$0xff] %v3601
          %3858 = vst [vmem:[%s215 + $0x148] sm:$0xff] %v3602
          %3859 = vst [vmem:[%s215 + $0x150] sm:$0xff] %v3603
          %3860 = vst [vmem:[%s215 + $0x158] sm:$0xff] %v3604
          %3861 = vst [vmem:[%s215 + $0x160] sm:$0xff] %v3605
          %3862 = vst [vmem:[%s215 + $0x168] sm:$0xff] %v3606
          %3863 = vst [vmem:[%s215 + $0x170] sm:$0xff] %v3607
          %3864 = vst [vmem:[%s215 + $0x178] sm:$0xff] %v3608
          %3865 = vst [vmem:[%s215 + $0x180] sm:$0xff] %v3609
          %3866 = vst [vmem:[%s215 + $0x188] sm:$0xff] %v3610
          %3867 = vst [vmem:[%s215 + $0x190] sm:$0xff] %v3611
          %3868 = vst [vmem:[%s215 + $0x198] sm:$0xff] %v3612
          %3869 = vst [vmem:[%s215 + $0x1a0] sm:$0xff] %v3613
          %3870 = vst [vmem:[%s215 + $0x1a8] sm:$0xff] %v3614
          %3871 = vst [vmem:[%s215 + $0x1b0] sm:$0xff] %v3615
          %3872 = vst [vmem:[%s215 + $0x1b8] sm:$0xff] %v3616
          %3873 = vst [vmem:[%s215 + $0x1c0] sm:$0xff] %v3617
          %3874 = vst [vmem:[%s215 + $0x1c8] sm:$0xff] %v3618
          %3875 = vst [vmem:[%s215 + $0x1d0] sm:$0xff] %v3619
          %3876 = vst [vmem:[%s215 + $0x1d8] sm:$0xff] %v3620
          %3877 = vst [vmem:[%s215 + $0x1e0] sm:$0xff] %v3621
          %3878 = vst [vmem:[%s215 + $0x1e8] sm:$0xff] %v3622
          %3879 = vst [vmem:[%s215 + $0x1f0] sm:$0xff] %v3623
          %3880 = vst [vmem:[%s215 + $0x1f8] sm:$0xff] %v3624
          %3881 = vst [vmem:[%s215 + $0x200] sm:$0xff] %v3625
          %3882 = vst [vmem:[%s215 + $0x208] sm:$0xff] %v3626
          %3883 = vst [vmem:[%s215 + $0x210] sm:$0xff] %v3627
          %3884 = vst [vmem:[%s215 + $0x218] sm:$0xff] %v3628
          %3885 = vst [vmem:[%s215 + $0x220] sm:$0xff] %v3629
          %3886 = vst [vmem:[%s215 + $0x228] sm:$0xff] %v3630
          %3887 = vst [vmem:[%s215 + $0x230] sm:$0xff] %v3631
          %3888 = vst [vmem:[%s215 + $0x238] sm:$0xff] %v3632
          %3889 = vst [vmem:[%s215 + $0x240] sm:$0xff] %v3633
          %3890 = vst [vmem:[%s215 + $0x248] sm:$0xff] %v3634
          %3891 = vst [vmem:[%s215 + $0x250] sm:$0xff] %v3635
          %3892 = vst [vmem:[%s215 + $0x258] sm:$0xff] %v3636
          %3893 = vst [vmem:[%s215 + $0x260] sm:$0xff] %v3637
          %3894 = vst [vmem:[%s215 + $0x268] sm:$0xff] %v3638
          %3895 = vst [vmem:[%s215 + $0x270] sm:$0xff] %v3639
          %3896 = vst [vmem:[%s215 + $0x278] sm:$0xff] %v3640
          %3897 = vst [vmem:[%s215 + $0x280] sm:$0xff] %v3641
          %3898 = vst [vmem:[%s215 + $0x288] sm:$0xff] %v3642
          %3899 = vst [vmem:[%s215 + $0x290] sm:$0xff] %v3643
          %3900 = vst [vmem:[%s215 + $0x298] sm:$0xff] %v3644
          %3901 = vst [vmem:[%s215 + $0x2a0] sm:$0xff] %v3645
          %3902 = vst [vmem:[%s215 + $0x2a8] sm:$0xff] %v3646
          %3903 = vst [vmem:[%s215 + $0x2b0] sm:$0xff] %v3647
          %3904 = vst [vmem:[%s215 + $0x2b8] sm:$0xff] %v3648
          %3905 = vst [vmem:[%s215 + $0x2c0] sm:$0xff] %v3649
          %3906 = vst [vmem:[%s215 + $0x2c8] sm:$0xff] %v3650
          %3907 = vst [vmem:[%s215 + $0x2d0] sm:$0xff] %v3651
          %3908 = vst [vmem:[%s215 + $0x2d8] sm:$0xff] %v3652
          %3909 = vst [vmem:[%s215 + $0x2e0] sm:$0xff] %v3653
          %3910 = vst [vmem:[%s215 + $0x2e8] sm:$0xff] %v3654
          %3911 = vst [vmem:[%s215 + $0x2f0] sm:$0xff] %v3655
          %3912 = vst [vmem:[%s215 + $0x2f8] sm:$0xff] %v3656
          %3913 = vst [vmem:[%s215 + $0x300] sm:$0xff] %v3657
          %3914 = vst [vmem:[%s215 + $0x308] sm:$0xff] %v3658
          %3915 = vst [vmem:[%s215 + $0x310] sm:$0xff] %v3659
          %3916 = vst [vmem:[%s215 + $0x318] sm:$0xff] %v3660
          %3917 = vst [vmem:[%s215 + $0x320] sm:$0xff] %v3661
          %3918 = vst [vmem:[%s215 + $0x328] sm:$0xff] %v3662
          %3919 = vst [vmem:[%s215 + $0x330] sm:$0xff] %v3663
          %3920 = vst [vmem:[%s215 + $0x338] sm:$0xff] %v3664
          %3921 = vst [vmem:[%s215 + $0x340] sm:$0xff] %v3665
          %3922 = vst [vmem:[%s215 + $0x348] sm:$0xff] %v3666
          %3923 = vst [vmem:[%s215 + $0x350] sm:$0xff] %v3667
          %3924 = vst [vmem:[%s215 + $0x358] sm:$0xff] %v3668
          %3925 = vst [vmem:[%s215 + $0x360] sm:$0xff] %v3669
          %3926 = vst [vmem:[%s215 + $0x368] sm:$0xff] %v3670
          %3927 = vst [vmem:[%s215 + $0x370] sm:$0xff] %v3671
          %3928 = vst [vmem:[%s215 + $0x378] sm:$0xff] %v3672
          %3929 = vst [vmem:[%s215 + $0x380] sm:$0xff] %v3673
          %3930 = vst [vmem:[%s215 + $0x388] sm:$0xff] %v3674
          %3931 = vst [vmem:[%s215 + $0x390] sm:$0xff] %v3675
          %3932 = vst [vmem:[%s215 + $0x398] sm:$0xff] %v3676
          %3933 = vst [vmem:[%s215 + $0x3a0] sm:$0xff] %v3677
          %3934 = vst [vmem:[%s215 + $0x3a8] sm:$0xff] %v3678
          %3935 = vst [vmem:[%s215 + $0x3b0] sm:$0xff] %v3679
          %3936 = vst [vmem:[%s215 + $0x3b8] sm:$0xff] %v3680
          %3937 = vst [vmem:[%s215 + $0x3c0] sm:$0xff] %v3681
          %3938 = vst [vmem:[%s215 + $0x3c8] sm:$0xff] %v3682
          %3939 = vst [vmem:[%s215 + $0x3d0] sm:$0xff] %v3683
          %3940 = vst [vmem:[%s215 + $0x3d8] sm:$0xff] %v3684
          %3941 = vst [vmem:[%s215 + $0x3e0] sm:$0xff] %v3685
          %3942 = vst [vmem:[%s215 + $0x3e8] sm:$0xff] %v3686
          %3943 = vst [vmem:[%s215 + $0x3f0] sm:$0xff] %v3687
          %3944 = vst [vmem:[%s215 + $0x3f8] sm:$0xff] %v3688
          %3945 = vst [vmem:[%s215 + $0x400] sm:$0xff] %v3689
          %3946 = vst [vmem:[%s215 + $0x408] sm:$0xff] %v3690
          %3947 = vst [vmem:[%s215 + $0x410] sm:$0xff] %v3691
          %3948 = vst [vmem:[%s215 + $0x418] sm:$0xff] %v3692
          %3949 = vst [vmem:[%s215 + $0x420] sm:$0xff] %v3693
          %3950 = vst [vmem:[%s215 + $0x428] sm:$0xff] %v3694
          %3951 = vst [vmem:[%s215 + $0x430] sm:$0xff] %v3695
          %3952 = vst [vmem:[%s215 + $0x438] sm:$0xff] %v3696
          %3953 = vst [vmem:[%s215 + $0x440] sm:$0xff] %v3697
          %3954 = vst [vmem:[%s215 + $0x448] sm:$0xff] %v3698
          %3955 = vst [vmem:[%s215 + $0x450] sm:$0xff] %v3699
          %3956 = vst [vmem:[%s215 + $0x458] sm:$0xff] %v3700
          %3957 = vst [vmem:[%s215 + $0x460] sm:$0xff] %v3701
          %3958 = vst [vmem:[%s215 + $0x468] sm:$0xff] %v3702
          %3959 = vst [vmem:[%s215 + $0x470] sm:$0xff] %v3703
          %3960 = vst [vmem:[%s215 + $0x478] sm:$0xff] %v3704
          %3961 = vst [vmem:[%s215 + $0x480] sm:$0xff] %v3705
          %3962 = vst [vmem:[%s215 + $0x488] sm:$0xff] %v3706
          %3963 = vst [vmem:[%s215 + $0x490] sm:$0xff] %v3707
          %3964 = vst [vmem:[%s215 + $0x498] sm:$0xff] %v3708
          %3965 = vst [vmem:[%s215 + $0x4a0] sm:$0xff] %v3709
          %3966 = vst [vmem:[%s215 + $0x4a8] sm:$0xff] %v3710
          %3967 = vst [vmem:[%s215 + $0x4b0] sm:$0xff] %v3711
          %3968 = vst [vmem:[%s215 + $0x4b8] sm:$0xff] %v3712
          %3969 = vst [vmem:[%s215 + $0x4c0] sm:$0xff] %v3713
          %3970 = vst [vmem:[%s215 + $0x4c8] sm:$0xff] %v3714
          %3971 = vst [vmem:[%s215 + $0x4d0] sm:$0xff] %v3715
          %3972 = vst [vmem:[%s215 + $0x4d8] sm:$0xff] %v3716
          %3973 = vst [vmem:[%s215 + $0x4e0] sm:$0xff] %v3717
          %3974 = vst [vmem:[%s215 + $0x4e8] sm:$0xff] %v3718
          %3975 = vst [vmem:[%s215 + $0x4f0] sm:$0xff] %v3719
          %3976 = vst [vmem:[%s215 + $0x4f8] sm:$0xff] %v3720
          %3977 = vst [vmem:[%s215 + $0x500] sm:$0xff] %v3721
          %3978 = vst [vmem:[%s215 + $0x508] sm:$0xff] %v3722
          %3979 = vst [vmem:[%s215 + $0x510] sm:$0xff] %v3723
          %3980 = vst [vmem:[%s215 + $0x518] sm:$0xff] %v3724
          %3981 = vst [vmem:[%s215 + $0x520] sm:$0xff] %v3725
          %3982 = vst [vmem:[%s215 + $0x528] sm:$0xff] %v3726
          %3983 = vst [vmem:[%s215 + $0x530] sm:$0xff] %v3727
          %3984 = vst [vmem:[%s215 + $0x538] sm:$0xff] %v3728
          %3985 = vst [vmem:[%s215 + $0x540] sm:$0xff] %v3729
          %3986 = vst [vmem:[%s215 + $0x548] sm:$0xff] %v3730
          %3987 = vst [vmem:[%s215 + $0x550] sm:$0xff] %v3731
          %3988 = vst [vmem:[%s215 + $0x558] sm:$0xff] %v3732
          %3989 = vst [vmem:[%s215 + $0x560] sm:$0xff] %v3733
          %3990 = vst [vmem:[%s215 + $0x568] sm:$0xff] %v3734
          %3991 = vst [vmem:[%s215 + $0x570] sm:$0xff] %v3735
          %3992 = vst [vmem:[%s215 + $0x578] sm:$0xff] %v3736
          %3993 = vst [vmem:[%s215 + $0x580] sm:$0xff] %v3737
          %3994 = vst [vmem:[%s215 + $0x588] sm:$0xff] %v3738
          %3995 = vst [vmem:[%s215 + $0x590] sm:$0xff] %v3739
          %3996 = vst [vmem:[%s215 + $0x598] sm:$0xff] %v3740
          %3997 = vst [vmem:[%s215 + $0x5a0] sm:$0xff] %v3741
          %3998 = vst [vmem:[%s215 + $0x5a8] sm:$0xff] %v3742
          %3999 = vst [vmem:[%s215 + $0x5b0] sm:$0xff] %v3743
          %4000 = vst [vmem:[%s215 + $0x5b8] sm:$0xff] %v3744
          %4001 = vst [vmem:[%s215 + $0x5c0] sm:$0xff] %v3745
          %4002 = vst [vmem:[%s215 + $0x5c8] sm:$0xff] %v3746
          %4003 = vst [vmem:[%s215 + $0x5d0] sm:$0xff] %v3747
          %4004 = vst [vmem:[%s215 + $0x5d8] sm:$0xff] %v3748
          %4005 = vst [vmem:[%s215 + $0x5e0] sm:$0xff] %v3749
          %4006 = vst [vmem:[%s215 + $0x5e8] sm:$0xff] %v3750
          %4007 = vst [vmem:[%s215 + $0x5f0] sm:$0xff] %v3751
          %4008 = vst [vmem:[%s215 + $0x5f8] sm:$0xff] %v3752
          %4009 = vst [vmem:[%s215 + $0x600] sm:$0xff] %v3753
          %4010 = vst [vmem:[%s215 + $0x608] sm:$0xff] %v3754
          %4011 = vst [vmem:[%s215 + $0x610] sm:$0xff] %v3755
          %4012 = vst [vmem:[%s215 + $0x618] sm:$0xff] %v3756
          %4013 = vst [vmem:[%s215 + $0x620] sm:$0xff] %v3757
          %4014 = vst [vmem:[%s215 + $0x628] sm:$0xff] %v3758
          %4015 = vst [vmem:[%s215 + $0x630] sm:$0xff] %v3759
          %4016 = vst [vmem:[%s215 + $0x638] sm:$0xff] %v3760
          %4017 = vst [vmem:[%s215 + $0x640] sm:$0xff] %v3761
          %4018 = vst [vmem:[%s215 + $0x648] sm:$0xff] %v3762
          %4019 = vst [vmem:[%s215 + $0x650] sm:$0xff] %v3763
          %4020 = vst [vmem:[%s215 + $0x658] sm:$0xff] %v3764
          %4021 = vst [vmem:[%s215 + $0x660] sm:$0xff] %v3765
          %4022 = vst [vmem:[%s215 + $0x668] sm:$0xff] %v3766
          %4023 = vst [vmem:[%s215 + $0x670] sm:$0xff] %v3767
          %4024 = vst [vmem:[%s215 + $0x678] sm:$0xff] %v3768
          %4025 = vst [vmem:[%s215 + $0x680] sm:$0xff] %v3769
          %4026 = vst [vmem:[%s215 + $0x688] sm:$0xff] %v3770
          %4027 = vst [vmem:[%s215 + $0x690] sm:$0xff] %v3771
          %4028 = vst [vmem:[%s215 + $0x698] sm:$0xff] %v3772
          %4029 = vst [vmem:[%s215 + $0x6a0] sm:$0xff] %v3773
          %4030 = vst [vmem:[%s215 + $0x6a8] sm:$0xff] %v3774
          %4031 = vst [vmem:[%s215 + $0x6b0] sm:$0xff] %v3775
          %4032 = vst [vmem:[%s215 + $0x6b8] sm:$0xff] %v3776
          %4033 = vst [vmem:[%s215 + $0x6c0] sm:$0xff] %v3777
          %4034 = vst [vmem:[%s215 + $0x6c8] sm:$0xff] %v3778
          %4035 = vst [vmem:[%s215 + $0x6d0] sm:$0xff] %v3779
          %4036 = vst [vmem:[%s215 + $0x6d8] sm:$0xff] %v3780
          %4037 = vst [vmem:[%s215 + $0x6e0] sm:$0xff] %v3781
          %4038 = vst [vmem:[%s215 + $0x6e8] sm:$0xff] %v3782
          %4039 = vst [vmem:[%s215 + $0x6f0] sm:$0xff] %v3783
          %4040 = vst [vmem:[%s215 + $0x6f8] sm:$0xff] %v3784
          %4041 = vst [vmem:[%s215 + $0x700] sm:$0xff] %v3785
          %4042 = vst [vmem:[%s215 + $0x708] sm:$0xff] %v3786
          %4043 = vst [vmem:[%s215 + $0x710] sm:$0xff] %v3787
          %4044 = vst [vmem:[%s215 + $0x718] sm:$0xff] %v3788
          %4045 = vst [vmem:[%s215 + $0x720] sm:$0xff] %v3789
          %4046 = vst [vmem:[%s215 + $0x728] sm:$0xff] %v3790
          %4047 = vst [vmem:[%s215 + $0x730] sm:$0xff] %v3791
          %4048 = vst [vmem:[%s215 + $0x738] sm:$0xff] %v3792
          %4049 = vst [vmem:[%s215 + $0x740] sm:$0xff] %v3793
          %4050 = vst [vmem:[%s215 + $0x748] sm:$0xff] %v3794
          %4051 = vst [vmem:[%s215 + $0x750] sm:$0xff] %v3795
          %4052 = vst [vmem:[%s215 + $0x758] sm:$0xff] %v3796
          %4053 = vst [vmem:[%s215 + $0x760] sm:$0xff] %v3797
          %4054 = vst [vmem:[%s215 + $0x768] sm:$0xff] %v3798
          %4055 = vst [vmem:[%s215 + $0x770] sm:$0xff] %v3799
          %4056 = vst [vmem:[%s215 + $0x778] sm:$0xff] %v3800
          %4057 = vst [vmem:[%s215 + $0x780] sm:$0xff] %v3801
          %4058 = vst [vmem:[%s215 + $0x788] sm:$0xff] %v3802
          %4059 = vst [vmem:[%s215 + $0x790] sm:$0xff] %v3803
          %4060 = vst [vmem:[%s215 + $0x798] sm:$0xff] %v3804
          %4061 = vst [vmem:[%s215 + $0x7a0] sm:$0xff] %v3805
          %4062 = vst [vmem:[%s215 + $0x7a8] sm:$0xff] %v3806
          %4063 = vst [vmem:[%s215 + $0x7b0] sm:$0xff] %v3807
          %4064 = vst [vmem:[%s215 + $0x7b8] sm:$0xff] %v3808
          %4065 = vst [vmem:[%s215 + $0x7c0] sm:$0xff] %v3809
          %4066 = vst [vmem:[%s215 + $0x7c8] sm:$0xff] %v3810
          %4067 = vst [vmem:[%s215 + $0x7d0] sm:$0xff] %v3811
          %4068 = vst [vmem:[%s215 + $0x7d8] sm:$0xff] %v3812
          %4069 = vst [vmem:[%s215 + $0x7e0] sm:$0xff] %v3813
          %4070 = vst [vmem:[%s215 + $0x7e8] sm:$0xff] %v3814
          %4071 = vst [vmem:[%s215 + $0x7f0] sm:$0xff] %v3815
          %4072 = vst [vmem:[%s215 + $0x7f8] sm:$0xff] %v3816
        $region44: #{tpu_custom_call.1} parent=27 // pred_fallthru
          _
        %s4073 = sand.u32 %s105, 1
        %s4074 = scalar_lea.sflag [#allocation5], %s4073
        %s4075 = sand.u32 %s105, 1
        %s4076 = smul.addr %s4075, 2048
        %s4077 = scalar_lea.vmem [#allocation8], %s4076
        // Predicated region
        $region45: #{tpu_custom_call.1} parent=27 // pred_check
          %p4078 = pneg %p115
        $region46: #{tpu_custom_call.1} parent=27 // pred_check_branch
          %4080 = sbr.rel (%p4078) target = $region48
        $region47: #{tpu_custom_call.1} parent=27 // pred_region
          %s4081 = smul.u32 64, %s25
          %s4082 = smul.u32 4, %s26
          %s4084 = ssub.s32 32768, 32768
          %4085 = vsyncadd %s4074, %s4084
          %s4086 = smul.addr %s4081, 8
          %s4087 = sadd.s32 %s4082, %s4086
          %s4088 = smul.addr %s4087, 128
          %s4089 = scalar_lea.hbm %s2, %s4088
          %s4090 = sshll.u32 %s4077, 4
          %s4091 = int_to_ptr.vmem [resolvable:$true] %s4090
          %4096 = dma.vmem_to_hbm [thread:$0]  %s4091, 32768, %s4089, %s4074, 512, 1024, 32
        $region48: #{tpu_custom_call.1} parent=27 // pred_fallthru
          _
      $region28: #{tpu_custom_call.1} parent=5 // pred_fallthru
        _
      %p4097 = scmp.le.s32.totalorder 2, %s15
      // Predicated region
      $region49: #{tpu_custom_call.1} parent=5 // pred_check
        %p4098 = pneg %p4097
      $region50: #{tpu_custom_call.1} parent=5 // pred_check_branch
        %4100 = sbr.rel (%p4098) target = $region52
      $region51: #{tpu_custom_call.1} parent=5 // pred_region
        %s4101 = ssub.s32 %s15, 2
        // Predicated region
        $region53: #{tpu_custom_call.1} parent=51 // pred_check
          %p4102 = pneg %p121
        $region54: #{tpu_custom_call.1} parent=51 // pred_check_branch
          %4104 = sbr.rel (%p4102) target = $region56
        $region55: #{tpu_custom_call.1} parent=51 // pred_region
          %s4105 = sand.u32 %s106, 1
          %s4106 = scalar_lea.sflag [#allocation5], %s4105
          %s4107 = sand.u32 %s106, 1
          %s4108 = smul.addr %s4107, 2048
          %s4109 = scalar_lea.vmem [#allocation8], %s4108
          %4110 = dma.done %s4106, 32768
        $region56: #{tpu_custom_call.1} parent=51 // pred_fallthru
          _
      $region52: #{tpu_custom_call.1} parent=5 // pred_fallthru
        _
    $region6: #{tpu_custom_call.1} parent=1 // loop_footer
      %s19 = sadd.s32 1, %s15
    $region7: #{tpu_custom_call.1} parent=1 // loop_footer_branch
      %14 = sbr.rel target = $region3
    $region8: #{tpu_custom_call.1} parent=1 // loop_exit
      _
    %4111 = vsyncpa [#allocation4], 1
    %s4112 = scalar_lea.sflag [#allocation4], 1
    %4113 = vsyncpa %s4112, 1
    %4114 = vsyncpa [#allocation7], 1
    %s4115 = scalar_lea.sflag [#allocation7], 1
    %4116 = vsyncpa %s4115, 1
    %4117 = vsyncpa [#allocation5], 1
    %s4118 = scalar_lea.sflag [#allocation5], 1
    %4119 = vsyncpa %s4118, 1

</llo_original>
